<compile_context>
chip_gen: v7x
topology: tpu7x:2x2x1
jax: 0.10.0
libtpu: 0.0.40
codegen_flags: <defaults>
</compile_context>

<pallas_src>
import functools
import math

import jax
import jax.numpy as jnp
from jax import lax
from jax.experimental import pallas as pl
from jax.experimental.pallas import tpu as pltpu


# -----------------------------------------------------------------------------
# tiling helper
# -----------------------------------------------------------------------------
def _pick_row_tile(n_rows, bytes_per_row, resident_bytes,
                   vmem_budget=24 << 20, cap=512):
    """Largest row tile (multiple of 8, divides n_rows, <= cap) whose double-buffered
    in/out tiles plus resident weights fit the VMEM budget; prefer >= 2 grid steps so
    the 'parallel' axis can be sharded across TensorCores."""
    if n_rows % 8 != 0:
        return n_rows  # tiny / odd case: one full block (block == full array dim)
    best = None
    tm = 8
    while tm <= min(n_rows, cap):
        if n_rows % tm == 0:
            need = 2 * resident_bytes + 4 * tm * bytes_per_row  # 2 bufs x (in + out)
            if need <= vmem_budget:
                best = tm
        tm += 8
    if best is None:
        best = 8
    if best == n_rows and n_rows >= 16 and (n_rows // 2) % 8 == 0:
        best = n_rows // 2  # keep grid >= 2 for megacore
    return best


# -----------------------------------------------------------------------------
# Kernel 1: embedding gather (one-hot matmul, MXU-friendly) + positional add
# -----------------------------------------------------------------------------
def _embed_kernel(ids_ref, emb_ref, pos_ref, o_ref):
    # ids_ref: (tm, 1) int32, emb_ref: (V, E), pos_ref / o_ref: (tm, E)
    ids = ids_ref[...]
    tm = ids.shape[0]
    V = emb_ref.shape[0]
    onehot = (ids == lax.broadcasted_iota(jnp.int32, (tm, V), 1)).astype(emb_ref.dtype)
    gathered = jnp.dot(onehot, emb_ref[...], preferred_element_type=jnp.float32)
    # TODO(synk): encoder-level dropout after the positional add is eval-mode identity.
    o_ref[...] = (gathered + pos_ref[...]).astype(o_ref.dtype)


def embed_with_positions(token_ids_2d, emb_table, pos_2d):
    M = token_ids_2d.shape[0]
    V, E = emb_table.shape
    tm = _pick_row_tile(M, E * 4, V * E * 4)
    return pl.pallas_call(
        _embed_kernel,
        out_shape=jax.ShapeDtypeStruct((M, E), jnp.float32),
        grid_spec=pltpu.PrefetchScalarGridSpec(
            num_scalar_prefetch=0,
            grid=(M // tm,),
            in_specs=[
                pl.BlockSpec((tm, 1), lambda i: (i, 0)),   # token ids
                pl.BlockSpec((V, E), lambda i: (0, 0)),    # embedding table (resident)
                pl.BlockSpec((tm, E), lambda i: (i, 0)),   # positional rows
            ],
            out_specs=pl.BlockSpec((tm, E), lambda i: (i, 0)),
        ),
        compiler_params=pltpu.CompilerParams(dimension_semantics=("parallel",)),
    )(token_ids_2d, emb_table, pos_2d)


# -----------------------------------------------------------------------------
# Kernel 2: fused multi-head self-attention + out-proj + residual + LayerNorm
#            (grid over batch; static unroll over heads; per-head weight slabs)
# -----------------------------------------------------------------------------
def _mhsa_kernel(x_ref, wq_ref, bq_ref, wk_ref, bk_ref, wv_ref, bv_ref,
                 wo_ref, bo_ref, g_ref, beta_ref,
                 y_ref, k_out_ref, v_out_ref):
    # x_ref: (1, S, E); w{q,k,v}: (nH, E, Dh); b{q,k,v}: (nH, 1, Dh)
    # wo: (nH, Dh, E); bo/g/beta: (1, E); y_ref: (1, S, E); k/v_out: (1, nH, S, Dh)
    x = x_ref[0]                                   # (S, E) f32
    nH, _, Dh = wq_ref.shape
    cd = wq_ref.dtype                              # MXU input dtype (f32 or bf16)
    xq = x.astype(cd)
    scale = 1.0 / math.sqrt(Dh)

    acc = jnp.zeros(x.shape, jnp.float32)          # output-projection accumulator
    for h in range(nH):                            # static unroll over heads
        q = jnp.dot(xq, wq_ref[h], preferred_element_type=jnp.float32) + bq_ref[h]
        k = jnp.dot(xq, wk_ref[h], preferred_element_type=jnp.float32) + bk_ref[h]
        v = jnp.dot(xq, wv_ref[h], preferred_element_type=jnp.float32) + bv_ref[h]
        k_out_ref[0, h] = k.astype(k_out_ref.dtype)
        v_out_ref[0, h] = v.astype(v_out_ref.dtype)

        # scores = q @ k^T / sqrt(Dh); non-causal (encoder unit builds MHSA with
        # is_autoregressive=False); softmax in f32.
        s = jnp.einsum("qd,kd->qk", q.astype(cd), k.astype(cd),
                       preferred_element_type=jnp.float32) * scale
        s = s - jnp.max(s, axis=-1, keepdims=True)
        p = jnp.exp(s)
        attn = p / jnp.sum(p, axis=-1, keepdims=True)
        # TODO(synk): attention-weight dropout is eval-mode identity here.
        ctx = jnp.dot(attn.astype(cd), v.astype(cd),
                      preferred_element_type=jnp.float32)            # (S, Dh)
        acc = acc + jnp.dot(ctx.astype(cd), wo_ref[h],
                            preferred_element_type=jnp.float32)      # (S, E)

    attn_out = acc + bo_ref[...] + x               # final-proj bias + residual
    mu = jnp.mean(attn_out, axis=-1, keepdims=True)
    var = jnp.mean(jnp.square(attn_out - mu), axis=-1, keepdims=True)
    yn = (attn_out - mu) * lax.rsqrt(var + 1e-5)
    y_ref[0] = (yn * g_ref[...] + beta_ref[...]).astype(y_ref.dtype)


def mhsa_add_layernorm(x, layer, *, num_heads, mm_dtype):
    B, S, E = x.shape
    assert E % num_heads == 0
    Dh = E // num_heads

    def per_head_in(w):    # (E, E) -> (nH, E, Dh), column block per head
        return w.reshape(E, num_heads, Dh).transpose(1, 0, 2).astype(mm_dtype)

    def per_head_bias(b):  # (E,) -> (nH, 1, Dh)
        return b.reshape(num_heads, 1, Dh)

    wq, wk, wv = per_head_in(layer["wq"]), per_head_in(layer["wk"]), per_head_in(layer["wv"])
    bq, bk, bv = per_head_bias(layer["bq"]), per_head_bias(layer["bk"]), per_head_bias(layer["bv"])
    wo = layer["wo"].reshape(num_heads, Dh, E).astype(mm_dtype)
    bo = layer["bo"].reshape(1, E)
    g = layer["ln1_g"].reshape(1, E)
    beta = layer["ln1_b"].reshape(1, E)

    def full(shape):
        return pl.BlockSpec(shape, lambda b, _s=shape: (0,) * len(_s))

    out_shape = (
        jax.ShapeDtypeStruct((B, S, E), x.dtype),
        jax.ShapeDtypeStruct((B, num_heads, S, Dh), x.dtype),
        jax.ShapeDtypeStruct((B, num_heads, S, Dh), x.dtype),
    )
    return pl.pallas_call(
        _mhsa_kernel,
        out_shape=out_shape,
        grid_spec=pltpu.PrefetchScalarGridSpec(
            num_scalar_prefetch=0,
            grid=(B,),
            in_specs=[
                pl.BlockSpec((1, S, E), lambda b: (b, 0, 0)),
                full((num_heads, E, Dh)), full((num_heads, 1, Dh)),
                full((num_heads, E, Dh)), full((num_heads, 1, Dh)),
                full((num_heads, E, Dh)), full((num_heads, 1, Dh)),
                full((num_heads, Dh, E)), full((1, E)),
                full((1, E)), full((1, E)),
            ],
            out_specs=[
                pl.BlockSpec((1, S, E), lambda b: (b, 0, 0)),
                pl.BlockSpec((1, num_heads, S, Dh), lambda b: (b, 0, 0, 0)),
                pl.BlockSpec((1, num_heads, S, Dh), lambda b: (b, 0, 0, 0)),
            ],
        ),
        compiler_params=pltpu.CompilerParams(dimension_semantics=("parallel",)),
    )(x, wq, bq, wk, bk, wv, bv, wo, bo, g, beta)


# -----------------------------------------------------------------------------
# Kernel 3: fused FFN (Linear -> ReLU -> Linear) + residual + LayerNorm
#            (grid over row tiles; weights resident in VMEM)
# -----------------------------------------------------------------------------
def _ffn_kernel(y_ref, w1_ref, b1_ref, w2_ref, b2_ref, g_ref, beta_ref, o_ref):
    # y_ref: (tm, E); w1: (E, H); b1: (1, H); w2: (H, E); b2/g/beta: (1, E)
    y = y_ref[...]
    cd = w1_ref.dtype
    h = jnp.dot(y.astype(cd), w1_ref[...], preferred_element_type=jnp.float32) + b1_ref[...]
    h = jnp.maximum(h, 0.0)                                   # ReLU in f32 (VPU)
    f = jnp.dot(h.astype(cd), w2_ref[...], preferred_element_type=jnp.float32) + b2_ref[...]
    # TODO(synk): FFN dropout and the encoder-unit output dropout are eval-mode identity.
    z = f + y                                                 # residual
    mu = jnp.mean(z, axis=-1, keepdims=True)
    var = jnp.mean(jnp.square(z - mu), axis=-1, keepdims=True)
    zn = (z - mu) * lax.rsqrt(var + 1e-5)
    o_ref[...] = (zn * g_ref[...] + beta_ref[...]).astype(o_ref.dtype)


def ffn_add_layernorm(y2d, layer, *, mm_dtype):
    M, E = y2d.shape
    H = layer["w1"].shape[1]
    w1 = layer["w1"].astype(mm_dtype)
    w2 = layer["w2"].astype(mm_dtype)
    b1 = layer["b1"].reshape(1, H)
    b2 = layer["b2"].reshape(1, E)
    g = layer["ln2_g"].reshape(1, E)
    beta = layer["ln2_b"].reshape(1, E)

    resident = 2 * E * H * jnp.dtype(mm_dtype).itemsize + (H + 5 * E) * 4
    tm = _pick_row_tile(M, E * 4, resident)
    return pl.pallas_call(
        _ffn_kernel,
        out_shape=jax.ShapeDtypeStruct((M, E), y2d.dtype),
        grid_spec=pltpu.PrefetchScalarGridSpec(
            num_scalar_prefetch=0,
            grid=(M // tm,),
            in_specs=[
                pl.BlockSpec((tm, E), lambda i: (i, 0)),   # activations (tiled)
                pl.BlockSpec((E, H), lambda i: (0, 0)),    # W1 (resident)
                pl.BlockSpec((1, H), lambda i: (0, 0)),    # b1
                pl.BlockSpec((H, E), lambda i: (0, 0)),    # W2 (resident)
                pl.BlockSpec((1, E), lambda i: (0, 0)),    # b2
                pl.BlockSpec((1, E), lambda i: (0, 0)),    # LN gamma
                pl.BlockSpec((1, E), lambda i: (0, 0)),    # LN beta
            ],
            out_specs=pl.BlockSpec((tm, E), lambda i: (i, 0)),
        ),
        compiler_params=pltpu.CompilerParams(dimension_semantics=("parallel",)),
    )(y2d, w1, b1, w2, b2, g, beta)


# -----------------------------------------------------------------------------
# Full TransformerEncoder forward (eval mode, inference=False path)
# -----------------------------------------------------------------------------
def transformer_encoder_forward(token_ids, params, pos_enc, *, num_heads, use_bf16=False):
    """Returns (x, past_k, past_v) matching the PyTorch TransformerEncoder.forward."""
    # TODO(synk): inference-time KV-cache concatenation (past_k/past_v reuse) not implemented;
    #             this is the default inference=False forward.
    B, S = token_ids.shape
    V, E = params["emb"].shape
    M = B * S
    mm_dtype = jnp.bfloat16 if use_bf16 else jnp.float32

    ids2d = token_ids.reshape(M, 1).astype(jnp.int32)
    pos2d = jnp.tile(pos_enc, (B, 1))                               # (M, E)
    x = embed_with_positions(ids2d, params["emb"], pos2d).reshape(B, S, E)

    past_k, past_v = [], []
    for layer in params["layers"]:
        y, k, v = mhsa_add_layernorm(x, layer, num_heads=num_heads, mm_dtype=mm_dtype)
        past_k.append(k)
        past_v.append(v)
        x = ffn_add_layernorm(y.reshape(M, E), layer, mm_dtype=mm_dtype).reshape(B, S, E)
    return x, past_k, past_v


# -----------------------------------------------------------------------------
# Parameter init (matches PyTorch defaults), positional encoding, pure-JAX reference
# -----------------------------------------------------------------------------
def _linear_init(kw, kb, fan_in, fan_out):
    bound = 1.0 / math.sqrt(fan_in)
    w = jax.random.uniform(kw, (fan_in, fan_out), jnp.float32, -bound, bound)
    b = jax.random.uniform(kb, (fan_out,), jnp.float32, -bound, bound)
    return w, b


def init_transformer_params(key, vocab_size, embed_dim, hidden_dim, num_layers):
    keys = jax.random.split(key, num_layers + 1)
    emb = jax.random.normal(keys[0], (vocab_size, embed_dim), jnp.float32)  # nn.Embedding N(0,1)
    layers = []
    for li in range(num_layers):
        k = jax.random.split(keys[li + 1], 12)
        wq, bq = _linear_init(k[0], k[1], embed_dim, embed_dim)
        wk, bk = _linear_init(k[2], k[3], embed_dim, embed_dim)
        wv, bv = _linear_init(k[4], k[5], embed_dim, embed_dim)
        wo, bo = _linear_init(k[6], k[7], embed_dim, embed_dim)
        w1, b1 = _linear_init(k[8], k[9], embed_dim, hidden_dim)
        w2, b2 = _linear_init(k[10], k[11], hidden_dim, embed_dim)
        layers.append(dict(
            wq=wq, bq=bq, wk=wk, bk=bk, wv=wv, bv=bv, wo=wo, bo=bo,
            w1=w1, b1=b1, w2=w2, b2=b2,
            ln1_g=jnp.ones((embed_dim,), jnp.float32),
            ln1_b=jnp.zeros((embed_dim,), jnp.float32),
            ln2_g=jnp.ones((embed_dim,), jnp.float32),
            ln2_b=jnp.zeros((embed_dim,), jnp.float32)))
    return dict(emb=emb, layers=layers)


def sin_positional_encoding(seq_len, embed_dim):
    pos = jnp.arange(seq_len, dtype=jnp.float32)[:, None]
    dim = jnp.arange(0, embed_dim, 2, dtype=jnp.float32)[None, :]
    angle = pos / jnp.power(10000.0, dim / embed_dim)
    pe = jnp.zeros((seq_len, embed_dim), jnp.float32)
    pe = pe.at[:, 0::2].set(jnp.sin(angle))
    pe = pe.at[:, 1::2].set(jnp.cos(angle))
    return pe


def reference_forward(token_ids, params, pos_enc, num_heads):
    """Pure-JAX mirror of the PyTorch TransformerEncoder eval-mode forward."""
    x = params["emb"][token_ids] + pos_enc[None, :, :]
    B, S, E = x.shape
    Dh = E // num_heads

    def layernorm(z, g, b):
        mu = jnp.mean(z, -1, keepdims=True)
        var = jnp.mean(jnp.square(z - mu), -1, keepdims=True)
        return (z - mu) * lax.rsqrt(var + 1e-5) * g + b

    pk, pv = [], []
    for L in params["layers"]:
        q = x @ L["wq"] + L["bq"]
        k = x @ L["wk"] + L["bk"]
        v = x @ L["wv"] + L["bv"]

        def split(t):
            return t.reshape(B, S, num_heads, Dh).transpose(0, 2, 1, 3)

        qh, kh, vh = split(q), split(k), split(v)
        pk.append(kh)
        pv.append(vh)
        s = jnp.einsum("bhqd,bhkd->bhqk", qh, kh) / math.sqrt(Dh)
        s = s - jnp.max(s, -1, keepdims=True)
        a = jax.nn.softmax(s, -1)
        ctx = jnp.einsum("bhqk,bhkd->bhqd", a, vh).transpose(0, 2, 1, 3).reshape(B, S, E)
        attn_out = ctx @ L["wo"] + L["bo"]
        y = layernorm(attn_out + x, L["ln1_g"], L["ln1_b"])
        f = jnp.maximum(y @ L["w1"] + L["b1"], 0.0) @ L["w2"] + L["b2"]
        x = layernorm(f + y, L["ln2_g"], L["ln2_b"])
    return x, pk, pv


# -----------------------------------------------------------------------------
# Demo / correctness check
# -----------------------------------------------------------------------------
if __name__ == "__main__":
    # Small but lane-dense shapes (last dims multiples of 128).
    vocab_size, batch, seq_len = 128, 4, 16
    embed_dim, num_heads, hidden_dim, num_layers = 128, 2, 256, 2

    key = jax.random.PRNGKey(0)
    k_ids, k_params = jax.random.split(key)
    token_ids = jax.random.randint(k_ids, (batch, seq_len), 0, vocab_size, dtype=jnp.int32)
    params = init_transformer_params(k_params, vocab_size, embed_dim, hidden_dim, num_layers)
    pos_enc = sin_positional_encoding(seq_len, embed_dim)

    # f32 path
    fwd_f32 = jax.jit(functools.partial(transformer_encoder_forward,
                                        num_heads=num_heads, use_bf16=False))
    out, past_k, past_v = fwd_f32(token_ids, params, pos_enc)
    jax.block_until_ready(out)

    ref_out, ref_k, ref_v = reference_forward(token_ids, params, pos_enc, num_heads)
    assert jnp.allclose(out, ref_out, atol=3e-2, rtol=3e-2), "f32 kernel mismatch vs reference"
    assert jnp.allclose(past_k[0], ref_k[0], atol=3e-2, rtol=3e-2), "past_k mismatch vs reference"
    assert jnp.allclose(past_v[-1], ref_v[-1], atol=3e-2, rtol=3e-2), "past_v mismatch vs reference"

    # bf16-MXU path (f32 accumulation): halves resident weight VMEM, feeds the bf16 MXU.
    fwd_bf16 = jax.jit(functools.partial(transformer_encoder_forward,
                                         num_heads=num_heads, use_bf16=True))
    out_bf16, _, _ = fwd_bf16(token_ids, params, pos_enc)
    jax.block_until_ready(out_bf16)
    assert jnp.allclose(out_bf16, ref_out, atol=1.5e-1, rtol=1.5e-1), "bf16 kernel drifted too far"

    print("KERNEL_OK")
</pallas_src>

<mosaic_0001>
module attributes {stable_mosaic.version = 11 : i64} {
  func.func @_embed_kernel(%arg0: i32, %arg1: memref<32x1xi32, #tpu.memory_space<vmem>>, %arg2: memref<128x128xf32, #tpu.memory_space<vmem>>, %arg3: memref<32x128xf32, #tpu.memory_space<vmem>>, %arg4: memref<32x128xf32, #tpu.memory_space<vmem>>) attributes {dimension_semantics = [#tpu.dimension_semantics<parallel>], iteration_bounds = array<i64: 2>, scalar_prefetch = 0 : i64, scratch_operands = 0 : i64, tpu.core_type = #tpu.core_type<tc>, window_params = [{transform_indices = @transform_0, window_bounds = array<i64: 32, 1>}, {pipeline_mode = #tpu.pipeline_mode<synchronous>, transform_indices = @transform_1, window_bounds = array<i64: 128, 128>}, {transform_indices = @transform_2, window_bounds = array<i64: 32, 128>}, {transform_indices = @transform_3, window_bounds = array<i64: 32, 128>}]} {
    %c0 = arith.constant 0 : index
    %c0_0 = arith.constant 0 : index
    %0 = vector.load %arg1[%c0, %c0_0] : memref<32x1xi32, #tpu.memory_space<vmem>>, vector<32x1xi32>
    %1 = tpu.iota {dimensions = array<i32: 1>} : vector<32x128xi32>
    %2 = vector.broadcast %0 : vector<32x1xi32> to vector<32x128xi32>
    %3 = arith.cmpi eq, %2, %1 : vector<32x128xi32>
    %4 = arith.extui %3 : vector<32x128xi1> to vector<32x128xi32>
    %5 = arith.sitofp %4 : vector<32x128xi32> to vector<32x128xf32>
    %c0_1 = arith.constant 0 : index
    %c0_2 = arith.constant 0 : index
    %6 = vector.load %arg2[%c0_1, %c0_2] : memref<128x128xf32, #tpu.memory_space<vmem>>, vector<128x128xf32>
    %cst = arith.constant dense<0.000000e+00> : vector<32x128xf32>
    %7 = tpu.matmul %5, %6, %cst {dimension_numbers = #tpu.dot_dimension_numbers<[1], [0], [0], [1], [0, 0, 1, 1], [], []>} : vector<32x128xf32>, vector<128x128xf32>, vector<32x128xf32> -> vector<32x128xf32>
    %c0_3 = arith.constant 0 : index
    %c0_4 = arith.constant 0 : index
    %8 = vector.load %arg3[%c0_3, %c0_4] : memref<32x128xf32, #tpu.memory_space<vmem>>, vector<32x128xf32>
    %9 = arith.addf %7, %8 : vector<32x128xf32>
    %c0_5 = arith.constant 0 : index
    %c0_6 = arith.constant 0 : index
    %10 = vector.load %arg4[%c0_5, %c0_6] : memref<32x128xf32, #tpu.memory_space<vmem>>, vector<32x128xf32>
    tpu.vector_store %arg4[%c0_5, %c0_6], %9 {strides = array<i32>} : memref<32x128xf32, #tpu.memory_space<vmem>>, vector<32x128xf32>,
    return
  }
  func.func @transform_0(%arg0: i32) -> (i32, i32) {
    %c0_i32 = arith.constant 0 : i32
    %c0_i32_0 = arith.constant 0 : i32
    return %arg0, %c0_i32 : i32, i32
  }
  func.func @transform_1(%arg0: i32) -> (i32, i32) {
    %c0_i32 = arith.constant 0 : i32
    %c0_i32_0 = arith.constant 0 : i32
    %c0_i32_1 = arith.constant 0 : i32
    return %c0_i32, %c0_i32_0 : i32, i32
  }
  func.func @transform_2(%arg0: i32) -> (i32, i32) {
    %c0_i32 = arith.constant 0 : i32
    %c0_i32_0 = arith.constant 0 : i32
    return %arg0, %c0_i32 : i32, i32
  }
  func.func @transform_3(%arg0: i32) -> (i32, i32) {
    %c0_i32 = arith.constant 0 : i32
    %c0_i32_0 = arith.constant 0 : i32
    return %arg0, %c0_i32 : i32, i32
  }
}

module attributes {stable_mosaic.version = 11 : i64} {
  func.func @_mhsa_kernel(%arg0: i32, %arg1: memref<1x16x128xf32, #tpu.memory_space<vmem>>, %arg2: memref<2x128x64xf32, #tpu.memory_space<vmem>>, %arg3: memref<2x1x64xf32, #tpu.memory_space<vmem>>, %arg4: memref<2x128x64xf32, #tpu.memory_space<vmem>>, %arg5: memref<2x1x64xf32, #tpu.memory_space<vmem>>, %arg6: memref<2x128x64xf32, #tpu.memory_space<vmem>>, %arg7: memref<2x1x64xf32, #tpu.memory_space<vmem>>, %arg8: memref<2x64x128xf32, #tpu.memory_space<vmem>>, %arg9: memref<1x128xf32, #tpu.memory_space<vmem>>, %arg10: memref<1x128xf32, #tpu.memory_space<vmem>>, %arg11: memref<1x128xf32, #tpu.memory_space<vmem>>, %arg12: memref<1x16x128xf32, #tpu.memory_space<vmem>>, %arg13: memref<1x2x16x64xf32, #tpu.memory_space<vmem>>, %arg14: memref<1x2x16x64xf32, #tpu.memory_space<vmem>>) attributes {dimension_semantics = [#tpu.dimension_semantics<parallel>], iteration_bounds = array<i64: 4>, scalar_prefetch = 0 : i64, scratch_operands = 0 : i64, tpu.core_type = #tpu.core_type<tc>, window_params = [{transform_indices = @transform_0, window_bounds = array<i64: 1, 16, 128>}, {pipeline_mode = #tpu.pipeline_mode<synchronous>, transform_indices = @transform_1, window_bounds = array<i64: 2, 128, 64>}, {pipeline_mode = #tpu.pipeline_mode<synchronous>, transform_indices = @transform_2, window_bounds = array<i64: 2, 1, 64>}, {pipeline_mode = #tpu.pipeline_mode<synchronous>, transform_indices = @transform_3, window_bounds = array<i64: 2, 128, 64>}, {pipeline_mode = #tpu.pipeline_mode<synchronous>, transform_indices = @transform_4, window_bounds = array<i64: 2, 1, 64>}, {pipeline_mode = #tpu.pipeline_mode<synchronous>, transform_indices = @transform_5, window_bounds = array<i64: 2, 128, 64>}, {pipeline_mode = #tpu.pipeline_mode<synchronous>, transform_indices = @transform_6, window_bounds = array<i64: 2, 1, 64>}, {pipeline_mode = #tpu.pipeline_mode<synchronous>, transform_indices = @transform_7, window_bounds = array<i64: 2, 64, 128>}, {pipeline_mode = #tpu.pipeline_mode<synchronous>, transform_indices = @transform_8, window_bounds = array<i64: 1, 128>}, {pipeline_mode = #tpu.pipeline_mode<synchronous>, transform_indices = @transform_9, window_bounds = array<i64: 1, 128>}, {pipeline_mode = #tpu.pipeline_mode<synchronous>, transform_indices = @transform_10, window_bounds = array<i64: 1, 128>}, {transform_indices = @transform_11, window_bounds = array<i64: 1, 16, 128>}, {transform_indices = @transform_12, window_bounds = array<i64: 1, 2, 16, 64>}, {transform_indices = @transform_13, window_bounds = array<i64: 1, 2, 16, 64>}]} {
    %c0 = arith.constant 0 : index
    %c0_0 = arith.constant 0 : index
    %c0_1 = arith.constant 0 : index
    %0 = vector.load %arg1[%c0, %c0_0, %c0_1] : memref<1x16x128xf32, #tpu.memory_space<vmem>>, vector<1x16x128xf32>
    %1 = vector.shape_cast %0 : vector<1x16x128xf32> to vector<16x128xf32>
    %cst = arith.constant 0.000000e+00 : f32
    %2 = vector.broadcast %cst : f32 to vector<16x128xf32>
    %c0_2 = arith.constant 0 : index
    %c0_3 = arith.constant 0 : index
    %c0_4 = arith.constant 0 : index
    %3 = vector.load %arg2[%c0_2, %c0_3, %c0_4] : memref<2x128x64xf32, #tpu.memory_space<vmem>>, vector<1x128x64xf32>
    %4 = vector.shape_cast %3 : vector<1x128x64xf32> to vector<128x64xf32>
    %cst_5 = arith.constant dense<0.000000e+00> : vector<16x64xf32>
    %5 = tpu.matmul %1, %4, %cst_5 {dimension_numbers = #tpu.dot_dimension_numbers<[1], [0], [0], [1], [0, 0, 1, 1], [], []>} : vector<16x128xf32>, vector<128x64xf32>, vector<16x64xf32> -> vector<16x64xf32>
    %c0_6 = arith.constant 0 : index
    %c0_7 = arith.constant 0 : index
    %c0_8 = arith.constant 0 : index
    %6 = vector.load %arg3[%c0_6, %c0_7, %c0_8] : memref<2x1x64xf32, #tpu.memory_space<vmem>>, vector<1x1x64xf32>
    %7 = vector.shape_cast %6 : vector<1x1x64xf32> to vector<1x64xf32>
    %8 = vector.broadcast %7 : vector<1x64xf32> to vector<16x64xf32>
    %9 = arith.addf %5, %8 : vector<16x64xf32>
    %c0_9 = arith.constant 0 : index
    %c0_10 = arith.constant 0 : index
    %c0_11 = arith.constant 0 : index
    %10 = vector.load %arg4[%c0_9, %c0_10, %c0_11] : memref<2x128x64xf32, #tpu.memory_space<vmem>>, vector<1x128x64xf32>
    %11 = vector.shape_cast %10 : vector<1x128x64xf32> to vector<128x64xf32>
    %cst_12 = arith.constant dense<0.000000e+00> : vector<16x64xf32>
    %12 = tpu.matmul %1, %11, %cst_12 {dimension_numbers = #tpu.dot_dimension_numbers<[1], [0], [0], [1], [0, 0, 1, 1], [], []>} : vector<16x128xf32>, vector<128x64xf32>, vector<16x64xf32> -> vector<16x64xf32>
    %c0_13 = arith.constant 0 : index
    %c0_14 = arith.constant 0 : index
    %c0_15 = arith.constant 0 : index
    %13 = vector.load %arg5[%c0_13, %c0_14, %c0_15] : memref<2x1x64xf32, #tpu.memory_space<vmem>>, vector<1x1x64xf32>
    %14 = vector.shape_cast %13 : vector<1x1x64xf32> to vector<1x64xf32>
    %15 = vector.broadcast %14 : vector<1x64xf32> to vector<16x64xf32>
    %16 = arith.addf %12, %15 : vector<16x64xf32>
    %c0_16 = arith.constant 0 : index
    %c0_17 = arith.constant 0 : index
    %c0_18 = arith.constant 0 : index
    %17 = vector.load %arg6[%c0_16, %c0_17, %c0_18] : memref<2x128x64xf32, #tpu.memory_space<vmem>>, vector<1x128x64xf32>
    %18 = vector.shape_cast %17 : vector<1x128x64xf32> to vector<128x64xf32>
    %cst_19 = arith.constant dense<0.000000e+00> : vector<16x64xf32>
    %19 = tpu.matmul %1, %18, %cst_19 {dimension_numbers = #tpu.dot_dimension_numbers<[1], [0], [0], [1], [0, 0, 1, 1], [], []>} : vector<16x128xf32>, vector<128x64xf32>, vector<16x64xf32> -> vector<16x64xf32>
    %c0_20 = arith.constant 0 : index
    %c0_21 = arith.constant 0 : index
    %c0_22 = arith.constant 0 : index
    %20 = vector.load %arg7[%c0_20, %c0_21, %c0_22] : memref<2x1x64xf32, #tpu.memory_space<vmem>>, vector<1x1x64xf32>
    %21 = vector.shape_cast %20 : vector<1x1x64xf32> to vector<1x64xf32>
    %22 = vector.broadcast %21 : vector<1x64xf32> to vector<16x64xf32>
    %23 = arith.addf %19, %22 : vector<16x64xf32>
    %c0_23 = arith.constant 0 : index
    %c0_24 = arith.constant 0 : index
    %c0_25 = arith.constant 0 : index
    %c0_26 = arith.constant 0 : index
    %24 = vector.load %arg13[%c0_23, %c0_24, %c0_25, %c0_26] : memref<1x2x16x64xf32, #tpu.memory_space<vmem>>, vector<1x1x16x64xf32>
    %25 = vector.shape_cast %24 : vector<1x1x16x64xf32> to vector<16x64xf32>
    %26 = vector.shape_cast %16 : vector<16x64xf32> to vector<1x1x16x64xf32>
    tpu.vector_store %arg13[%c0_23, %c0_24, %c0_25, %c0_26], %26 {strides = array<i32>} : memref<1x2x16x64xf32, #tpu.memory_space<vmem>>, vector<1x1x16x64xf32>,
    %c0_27 = arith.constant 0 : index
    %c0_28 = arith.constant 0 : index
    %c0_29 = arith.constant 0 : index
    %c0_30 = arith.constant 0 : index
    %27 = vector.load %arg14[%c0_27, %c0_28, %c0_29, %c0_30] : memref<1x2x16x64xf32, #tpu.memory_space<vmem>>, vector<1x1x16x64xf32>
    %28 = vector.shape_cast %27 : vector<1x1x16x64xf32> to vector<16x64xf32>
    %29 = vector.shape_cast %23 : vector<16x64xf32> to vector<1x1x16x64xf32>
    tpu.vector_store %arg14[%c0_27, %c0_28, %c0_29, %c0_30], %29 {strides = array<i32>} : memref<1x2x16x64xf32, #tpu.memory_space<vmem>>, vector<1x1x16x64xf32>,
    "tpu.trace_start"() <{level = 10 : i32, message = "qd,kd->qk"}> : () -> ()
    %cst_31 = arith.constant dense<0.000000e+00> : vector<16x16xf32>
    %30 = tpu.matmul %9, %16, %cst_31 {dimension_numbers = #tpu.dot_dimension_numbers<[1], [1], [0], [0], [0, 0, 1, 0], [], []>} : vector<16x64xf32>, vector<16x64xf32>, vector<16x16xf32> -> vector<16x16xf32>
    "tpu.trace_stop"() : () -> ()
    %cst_32 = arith.constant 1.250000e-01 : f32
    %31 = vector.broadcast %cst_32 : f32 to vector<16x16xf32>
    %32 = arith.mulf %30, %31 : vector<16x16xf32>
    %cst_33 = arith.constant dense<0xFF800000> : vector<16xf32>
    %33 = vector.multi_reduction <maximumf>, %32, %cst_33 [1] : vector<16x16xf32> to vector<16xf32>
    %34 = vector.shape_cast %33 : vector<16xf32> to vector<16x1xf32>
    %35 = vector.broadcast %34 : vector<16x1xf32> to vector<16x16xf32>
    %36 = arith.subf %32, %35 : vector<16x16xf32>
    %37 = math.exp %36 : vector<16x16xf32>
    %cst_34 = arith.constant dense<0.000000e+00> : vector<16xf32>
    %38 = vector.multi_reduction <add>, %37, %cst_34 [1] : vector<16x16xf32> to vector<16xf32>
    %39 = vector.shape_cast %38 : vector<16xf32> to vector<16x1xf32>
    %40 = vector.broadcast %39 : vector<16x1xf32> to vector<16x16xf32>
    %41 = arith.divf %37, %40 : vector<16x16xf32>
    %cst_35 = arith.constant dense<0.000000e+00> : vector<16x64xf32>
    %42 = tpu.matmul %41, %23, %cst_35 {dimension_numbers = #tpu.dot_dimension_numbers<[1], [0], [0], [1], [0, 0, 1, 1], [], []>} : vector<16x16xf32>, vector<16x64xf32>, vector<16x64xf32> -> vector<16x64xf32>
    %c0_36 = arith.constant 0 : index
    %c0_37 = arith.constant 0 : index
    %c0_38 = arith.constant 0 : index
    %43 = vector.load %arg8[%c0_36, %c0_37, %c0_38] : memref<2x64x128xf32, #tpu.memory_space<vmem>>, vector<1x64x128xf32>
    %44 = vector.shape_cast %43 : vector<1x64x128xf32> to vector<64x128xf32>
    %cst_39 = arith.constant dense<0.000000e+00> : vector<16x128xf32>
    %45 = tpu.matmul %42, %44, %cst_39 {dimension_numbers = #tpu.dot_dimension_numbers<[1], [0], [0], [1], [0, 0, 1, 1], [], []>} : vector<16x64xf32>, vector<64x128xf32>, vector<16x128xf32> -> vector<16x128xf32>
    %46 = arith.addf %2, %45 : vector<16x128xf32>
    %c1 = arith.constant 1 : index
    %c0_40 = arith.constant 0 : index
    %c0_41 = arith.constant 0 : index
    %47 = vector.load %arg2[%c1, %c0_40, %c0_41] : memref<2x128x64xf32, #tpu.memory_space<vmem>>, vector<1x128x64xf32>
    %48 = vector.shape_cast %47 : vector<1x128x64xf32> to vector<128x64xf32>
    %cst_42 = arith.constant dense<0.000000e+00> : vector<16x64xf32>
    %49 = tpu.matmul %1, %48, %cst_42 {dimension_numbers = #tpu.dot_dimension_numbers<[1], [0], [0], [1], [0, 0, 1, 1], [], []>} : vector<16x128xf32>, vector<128x64xf32>, vector<16x64xf32> -> vector<16x64xf32>
    %c1_43 = arith.constant 1 : index
    %c0_44 = arith.constant 0 : index
    %c0_45 = arith.constant 0 : index
    %50 = vector.load %arg3[%c1_43, %c0_44, %c0_45] : memref<2x1x64xf32, #tpu.memory_space<vmem>>, vector<1x1x64xf32>
    %51 = vector.shape_cast %50 : vector<1x1x64xf32> to vector<1x64xf32>
    %52 = vector.broadcast %51 : vector<1x64xf32> to vector<16x64xf32>
    %53 = arith.addf %49, %52 : vector<16x64xf32>
    %c1_46 = arith.constant 1 : index
    %c0_47 = arith.constant 0 : index
    %c0_48 = arith.constant 0 : index
    %54 = vector.load %arg4[%c1_46, %c0_47, %c0_48] : memref<2x128x64xf32, #tpu.memory_space<vmem>>, vector<1x128x64xf32>
    %55 = vector.shape_cast %54 : vector<1x128x64xf32> to vector<128x64xf32>
    %cst_49 = arith.constant dense<0.000000e+00> : vector<16x64xf32>
    %56 = tpu.matmul %1, %55, %cst_49 {dimension_numbers = #tpu.dot_dimension_numbers<[1], [0], [0], [1], [0, 0, 1, 1], [], []>} : vector<16x128xf32>, vector<128x64xf32>, vector<16x64xf32> -> vector<16x64xf32>
    %c1_50 = arith.constant 1 : index
    %c0_51 = arith.constant 0 : index
    %c0_52 = arith.constant 0 : index
    %57 = vector.load %arg5[%c1_50, %c0_51, %c0_52] : memref<2x1x64xf32, #tpu.memory_space<vmem>>, vector<1x1x64xf32>
    %58 = vector.shape_cast %57 : vector<1x1x64xf32> to vector<1x64xf32>
    %59 = vector.broadcast %58 : vector<1x64xf32> to vector<16x64xf32>
    %60 = arith.addf %56, %59 : vector<16x64xf32>
    %c1_53 = arith.constant 1 : index
    %c0_54 = arith.constant 0 : index
    %c0_55 = arith.constant 0 : index
    %61 = vector.load %arg6[%c1_53, %c0_54, %c0_55] : memref<2x128x64xf32, #tpu.memory_space<vmem>>, vector<1x128x64xf32>
    %62 = vector.shape_cast %61 : vector<1x128x64xf32> to vector<128x64xf32>
    %cst_56 = arith.constant dense<0.000000e+00> : vector<16x64xf32>
    %63 = tpu.matmul %1, %62, %cst_56 {dimension_numbers = #tpu.dot_dimension_numbers<[1], [0], [0], [1], [0, 0, 1, 1], [], []>} : vector<16x128xf32>, vector<128x64xf32>, vector<16x64xf32> -> vector<16x64xf32>
    %c1_57 = arith.constant 1 : index
    %c0_58 = arith.constant 0 : index
    %c0_59 = arith.constant 0 : index
    %64 = vector.load %arg7[%c1_57, %c0_58, %c0_59] : memref<2x1x64xf32, #tpu.memory_space<vmem>>, vector<1x1x64xf32>
    %65 = vector.shape_cast %64 : vector<1x1x64xf32> to vector<1x64xf32>
    %66 = vector.broadcast %65 : vector<1x64xf32> to vector<16x64xf32>
    %67 = arith.addf %63, %66 : vector<16x64xf32>
    %c0_60 = arith.constant 0 : index
    %c1_61 = arith.constant 1 : index
    %c0_62 = arith.constant 0 : index
    %c0_63 = arith.constant 0 : index
    %68 = vector.load %arg13[%c0_60, %c1_61, %c0_62, %c0_63] : memref<1x2x16x64xf32, #tpu.memory_space<vmem>>, vector<1x1x16x64xf32>
    %69 = vector.shape_cast %68 : vector<1x1x16x64xf32> to vector<16x64xf32>
    %70 = vector.shape_cast %60 : vector<16x64xf32> to vector<1x1x16x64xf32>
    tpu.vector_store %arg13[%c0_60, %c1_61, %c0_62, %c0_63], %70 {strides = array<i32>} : memref<1x2x16x64xf32, #tpu.memory_space<vmem>>, vector<1x1x16x64xf32>,
    %c0_64 = arith.constant 0 : index
    %c1_65 = arith.constant 1 : index
    %c0_66 = arith.constant 0 : index
    %c0_67 = arith.constant 0 : index
    %71 = vector.load %arg14[%c0_64, %c1_65, %c0_66, %c0_67] : memref<1x2x16x64xf32, #tpu.memory_space<vmem>>, vector<1x1x16x64xf32>
    %72 = vector.shape_cast %71 : vector<1x1x16x64xf32> to vector<16x64xf32>
    %73 = vector.shape_cast %67 : vector<16x64xf32> to vector<1x1x16x64xf32>
    tpu.vector_store %arg14[%c0_64, %c1_65, %c0_66, %c0_67], %73 {strides = array<i32>} : memref<1x2x16x64xf32, #tpu.memory_space<vmem>>, vector<1x1x16x64xf32>,
    "tpu.trace_start"() <{level = 10 : i32, message = "qd,kd->qk"}> : () -> ()
    %cst_68 = arith.constant dense<0.000000e+00> : vector<16x16xf32>
    %74 = tpu.matmul %53, %60, %cst_68 {dimension_numbers = #tpu.dot_dimension_numbers<[1], [1], [0], [0], [0, 0, 1, 0], [], []>} : vector<16x64xf32>, vector<16x64xf32>, vector<16x16xf32> -> vector<16x16xf32>
    "tpu.trace_stop"() : () -> ()
    %cst_69 = arith.constant 1.250000e-01 : f32
    %75 = vector.broadcast %cst_69 : f32 to vector<16x16xf32>
    %76 = arith.mulf %74, %75 : vector<16x16xf32>
    %cst_70 = arith.constant dense<0xFF800000> : vector<16xf32>
    %77 = vector.multi_reduction <maximumf>, %76, %cst_70 [1] : vector<16x16xf32> to vector<16xf32>
    %78 = vector.shape_cast %77 : vector<16xf32> to vector<16x1xf32>
    %79 = vector.broadcast %78 : vector<16x1xf32> to vector<16x16xf32>
    %80 = arith.subf %76, %79 : vector<16x16xf32>
    %81 = math.exp %80 : vector<16x16xf32>
    %cst_71 = arith.constant dense<0.000000e+00> : vector<16xf32>
    %82 = vector.multi_reduction <add>, %81, %cst_71 [1] : vector<16x16xf32> to vector<16xf32>
    %83 = vector.shape_cast %82 : vector<16xf32> to vector<16x1xf32>
    %84 = vector.broadcast %83 : vector<16x1xf32> to vector<16x16xf32>
    %85 = arith.divf %81, %84 : vector<16x16xf32>
    %cst_72 = arith.constant dense<0.000000e+00> : vector<16x64xf32>
    %86 = tpu.matmul %85, %67, %cst_72 {dimension_numbers = #tpu.dot_dimension_numbers<[1], [0], [0], [1], [0, 0, 1, 1], [], []>} : vector<16x16xf32>, vector<16x64xf32>, vector<16x64xf32> -> vector<16x64xf32>
    %c1_73 = arith.constant 1 : index
    %c0_74 = arith.constant 0 : index
    %c0_75 = arith.constant 0 : index
    %87 = vector.load %arg8[%c1_73, %c0_74, %c0_75] : memref<2x64x128xf32, #tpu.memory_space<vmem>>, vector<1x64x128xf32>
    %88 = vector.shape_cast %87 : vector<1x64x128xf32> to vector<64x128xf32>
    %cst_76 = arith.constant dense<0.000000e+00> : vector<16x128xf32>
    %89 = tpu.matmul %86, %88, %cst_76 {dimension_numbers = #tpu.dot_dimension_numbers<[1], [0], [0], [1], [0, 0, 1, 1], [], []>} : vector<16x64xf32>, vector<64x128xf32>, vector<16x128xf32> -> vector<16x128xf32>
    %90 = arith.addf %46, %89 : vector<16x128xf32>
    %c0_77 = arith.constant 0 : index
    %c0_78 = arith.constant 0 : index
    %91 = vector.load %arg9[%c0_77, %c0_78] : memref<1x128xf32, #tpu.memory_space<vmem>>, vector<1x128xf32>
    %92 = vector.broadcast %91 : vector<1x128xf32> to vector<16x128xf32>
    %93 = arith.addf %90, %92 : vector<16x128xf32>
    %94 = arith.addf %93, %1 : vector<16x128xf32>
    %cst_79 = arith.constant dense<0.000000e+00> : vector<16xf32>
    %95 = vector.multi_reduction <add>, %94, %cst_79 [1] : vector<16x128xf32> to vector<16xf32>
    %96 = vector.shape_cast %95 : vector<16xf32> to vector<16x1xf32>
    %cst_80 = arith.constant 1.280000e+02 : f32
    %97 = vector.broadcast %cst_80 : f32 to vector<16x1xf32>
    %98 = arith.divf %96, %97 : vector<16x1xf32>
    %99 = vector.broadcast %98 : vector<16x1xf32> to vector<16x128xf32>
    %100 = arith.subf %94, %99 : vector<16x128xf32>
    %101 = arith.mulf %100, %100 : vector<16x128xf32>
    %cst_81 = arith.constant dense<0.000000e+00> : vector<16xf32>
    %102 = vector.multi_reduction <add>, %101, %cst_81 [1] : vector<16x128xf32> to vector<16xf32>
    %103 = vector.shape_cast %102 : vector<16xf32> to vector<16x1xf32>
    %cst_82 = arith.constant 1.280000e+02 : f32
    %104 = vector.broadcast %cst_82 : f32 to vector<16x1xf32>
    %105 = arith.divf %103, %104 : vector<16x1xf32>
    %106 = vector.broadcast %98 : vector<16x1xf32> to vector<16x128xf32>
    %107 = arith.subf %94, %106 : vector<16x128xf32>
    %cst_83 = arith.constant 9.99999974E-6 : f32
    %108 = vector.broadcast %cst_83 : f32 to vector<16x1xf32>
    %109 = arith.addf %105, %108 : vector<16x1xf32>
    %110 = math.rsqrt %109 : vector<16x1xf32>
    %111 = vector.broadcast %110 : vector<16x1xf32> to vector<16x128xf32>
    %112 = arith.mulf %107, %111 : vector<16x128xf32>
    %c0_84 = arith.constant 0 : index
    %c0_85 = arith.constant 0 : index
    %113 = vector.load %arg10[%c0_84, %c0_85] : memref<1x128xf32, #tpu.memory_space<vmem>>, vector<1x128xf32>
    %114 = vector.broadcast %113 : vector<1x128xf32> to vector<16x128xf32>
    %115 = arith.mulf %112, %114 : vector<16x128xf32>
    %c0_86 = arith.constant 0 : index
    %c0_87 = arith.constant 0 : index
    %116 = vector.load %arg11[%c0_86, %c0_87] : memref<1x128xf32, #tpu.memory_space<vmem>>, vector<1x128xf32>
    %117 = vector.broadcast %116 : vector<1x128xf32> to vector<16x128xf32>
    %118 = arith.addf %115, %117 : vector<16x128xf32>
    %c0_88 = arith.constant 0 : index
    %c0_89 = arith.constant 0 : index
    %c0_90 = arith.constant 0 : index
    %119 = vector.load %arg12[%c0_88, %c0_89, %c0_90] : memref<1x16x128xf32, #tpu.memory_space<vmem>>, vector<1x16x128xf32>
    %120 = vector.shape_cast %119 : vector<1x16x128xf32> to vector<16x128xf32>
    %121 = vector.shape_cast %118 : vector<16x128xf32> to vector<1x16x128xf32>
    tpu.vector_store %arg12[%c0_88, %c0_89, %c0_90], %121 {strides = array<i32>} : memref<1x16x128xf32, #tpu.memory_space<vmem>>, vector<1x16x128xf32>,
    return
  }
  func.func @transform_0(%arg0: i32) -> (i32, i32, i32) {
    %c0_i32 = arith.constant 0 : i32
    %c0_i32_0 = arith.constant 0 : i32
    %c0_i32_1 = arith.constant 0 : i32
    return %arg0, %c0_i32, %c0_i32_0 : i32, i32, i32
  }
  func.func @transform_1(%arg0: i32) -> (i32, i32, i32) {
    %c0_i32 = arith.constant 0 : i32
    %c0_i32_0 = arith.constant 0 : i32
    %c0_i32_1 = arith.constant 0 : i32
    %c0_i32_2 = arith.constant 0 : i32
    return %c0_i32, %c0_i32_0, %c0_i32_1 : i32, i32, i32
  }
  func.func @transform_2(%arg0: i32) -> (i32, i32, i32) {
    %c0_i32 = arith.constant 0 : i32
    %c0_i32_0 = arith.constant 0 : i32
    %c0_i32_1 = arith.constant 0 : i32
    %c0_i32_2 = arith.constant 0 : i32
    return %c0_i32, %c0_i32_0, %c0_i32_1 : i32, i32, i32
  }
  func.func @transform_3(%arg0: i32) -> (i32, i32, i32) {
    %c0_i32 = arith.constant 0 : i32
    %c0_i32_0 = arith.constant 0 : i32
    %c0_i32_1 = arith.constant 0 : i32
    %c0_i32_2 = arith.constant 0 : i32
    return %c0_i32, %c0_i32_0, %c0_i32_1 : i32, i32, i32
  }
  func.func @transform_4(%arg0: i32) -> (i32, i32, i32) {
    %c0_i32 = arith.constant 0 : i32
    %c0_i32_0 = arith.constant 0 : i32
    %c0_i32_1 = arith.constant 0 : i32
    %c0_i32_2 = arith.constant 0 : i32
    return %c0_i32, %c0_i32_0, %c0_i32_1 : i32, i32, i32
  }
  func.func @transform_5(%arg0: i32) -> (i32, i32, i32) {
    %c0_i32 = arith.constant 0 : i32
    %c0_i32_0 = arith.constant 0 : i32
    %c0_i32_1 = arith.constant 0 : i32
    %c0_i32_2 = arith.constant 0 : i32
    return %c0_i32, %c0_i32_0, %c0_i32_1 : i32, i32, i32
  }
  func.func @transform_6(%arg0: i32) -> (i32, i32, i32) {
    %c0_i32 = arith.constant 0 : i32
    %c0_i32_0 = arith.constant 0 : i32
    %c0_i32_1 = arith.constant 0 : i32
    %c0_i32_2 = arith.constant 0 : i32
    return %c0_i32, %c0_i32_0, %c0_i32_1 : i32, i32, i32
  }
  func.func @transform_7(%arg0: i32) -> (i32, i32, i32) {
    %c0_i32 = arith.constant 0 : i32
    %c0_i32_0 = arith.constant 0 : i32
    %c0_i32_1 = arith.constant 0 : i32
    %c0_i32_2 = arith.constant 0 : i32
    return %c0_i32, %c0_i32_0, %c0_i32_1 : i32, i32, i32
  }
  func.func @transform_8(%arg0: i32) -> (i32, i32) {
    %c0_i32 = arith.constant 0 : i32
    %c0_i32_0 = arith.constant 0 : i32
    %c0_i32_1 = arith.constant 0 : i32
    return %c0_i32, %c0_i32_0 : i32, i32
  }
  func.func @transform_9(%arg0: i32) -> (i32, i32) {
    %c0_i32 = arith.constant 0 : i32
    %c0_i32_0 = arith.constant 0 : i32
    %c0_i32_1 = arith.constant 0 : i32
    return %c0_i32, %c0_i32_0 : i32, i32
  }
  func.func @transform_10(%arg0: i32) -> (i32, i32) {
    %c0_i32 = arith.constant 0 : i32
    %c0_i32_0 = arith.constant 0 : i32
    %c0_i32_1 = arith.constant 0 : i32
    return %c0_i32, %c0_i32_0 : i32, i32
  }
  func.func @transform_11(%arg0: i32) -> (i32, i32, i32) {
    %c0_i32 = arith.constant 0 : i32
    %c0_i32_0 = arith.constant 0 : i32
    %c0_i32_1 = arith.constant 0 : i32
    return %arg0, %c0_i32, %c0_i32_0 : i32, i32, i32
  }
  func.func @transform_12(%arg0: i32) -> (i32, i32, i32, i32) {
    %c0_i32 = arith.constant 0 : i32
    %c0_i32_0 = arith.constant 0 : i32
    %c0_i32_1 = arith.constant 0 : i32
    %c0_i32_2 = arith.constant 0 : i32
    return %arg0, %c0_i32, %c0_i32_0, %c0_i32_1 : i32, i32, i32, i32
  }
  func.func @transform_13(%arg0: i32) -> (i32, i32, i32, i32) {
    %c0_i32 = arith.constant 0 : i32
    %c0_i32_0 = arith.constant 0 : i32
    %c0_i32_1 = arith.constant 0 : i32
    %c0_i32_2 = arith.constant 0 : i32
    return %arg0, %c0_i32, %c0_i32_0, %c0_i32_1 : i32, i32, i32, i32
  }
}

module attributes {stable_mosaic.version = 11 : i64} {
  func.func @_ffn_kernel(%arg0: i32, %arg1: memref<32x128xf32, #tpu.memory_space<vmem>>, %arg2: memref<128x256xf32, #tpu.memory_space<vmem>>, %arg3: memref<1x256xf32, #tpu.memory_space<vmem>>, %arg4: memref<256x128xf32, #tpu.memory_space<vmem>>, %arg5: memref<1x128xf32, #tpu.memory_space<vmem>>, %arg6: memref<1x128xf32, #tpu.memory_space<vmem>>, %arg7: memref<1x128xf32, #tpu.memory_space<vmem>>, %arg8: memref<32x128xf32, #tpu.memory_space<vmem>>) attributes {dimension_semantics = [#tpu.dimension_semantics<parallel>], iteration_bounds = array<i64: 2>, scalar_prefetch = 0 : i64, scratch_operands = 0 : i64, tpu.core_type = #tpu.core_type<tc>, window_params = [{transform_indices = @transform_0, window_bounds = array<i64: 32, 128>}, {pipeline_mode = #tpu.pipeline_mode<synchronous>, transform_indices = @transform_1, window_bounds = array<i64: 128, 256>}, {pipeline_mode = #tpu.pipeline_mode<synchronous>, transform_indices = @transform_2, window_bounds = array<i64: 1, 256>}, {pipeline_mode = #tpu.pipeline_mode<synchronous>, transform_indices = @transform_3, window_bounds = array<i64: 256, 128>}, {pipeline_mode = #tpu.pipeline_mode<synchronous>, transform_indices = @transform_4, window_bounds = array<i64: 1, 128>}, {pipeline_mode = #tpu.pipeline_mode<synchronous>, transform_indices = @transform_5, window_bounds = array<i64: 1, 128>}, {pipeline_mode = #tpu.pipeline_mode<synchronous>, transform_indices = @transform_6, window_bounds = array<i64: 1, 128>}, {transform_indices = @transform_7, window_bounds = array<i64: 32, 128>}]} {
    %c0 = arith.constant 0 : index
    %c0_0 = arith.constant 0 : index
    %0 = vector.load %arg1[%c0, %c0_0] : memref<32x128xf32, #tpu.memory_space<vmem>>, vector<32x128xf32>
    %c0_1 = arith.constant 0 : index
    %c0_2 = arith.constant 0 : index
    %1 = vector.load %arg2[%c0_1, %c0_2] : memref<128x256xf32, #tpu.memory_space<vmem>>, vector<128x256xf32>
    %cst = arith.constant dense<0.000000e+00> : vector<32x256xf32>
    %2 = tpu.matmul %0, %1, %cst {dimension_numbers = #tpu.dot_dimension_numbers<[1], [0], [0], [1], [0, 0, 1, 1], [], []>} : vector<32x128xf32>, vector<128x256xf32>, vector<32x256xf32> -> vector<32x256xf32>
    %c0_3 = arith.constant 0 : index
    %c0_4 = arith.constant 0 : index
    %3 = vector.load %arg3[%c0_3, %c0_4] : memref<1x256xf32, #tpu.memory_space<vmem>>, vector<1x256xf32>
    %4 = vector.broadcast %3 : vector<1x256xf32> to vector<32x256xf32>
    %5 = arith.addf %2, %4 : vector<32x256xf32>
    %cst_5 = arith.constant 0.000000e+00 : f32
    %6 = vector.broadcast %cst_5 : f32 to vector<32x256xf32>
    %7 = arith.maximumf %5, %6 : vector<32x256xf32>
    %c0_6 = arith.constant 0 : index
    %c0_7 = arith.constant 0 : index
    %8 = vector.load %arg4[%c0_6, %c0_7] : memref<256x128xf32, #tpu.memory_space<vmem>>, vector<256x128xf32>
    %cst_8 = arith.constant dense<0.000000e+00> : vector<32x128xf32>
    %9 = tpu.matmul %7, %8, %cst_8 {dimension_numbers = #tpu.dot_dimension_numbers<[1], [0], [0], [1], [0, 0, 1, 1], [], []>} : vector<32x256xf32>, vector<256x128xf32>, vector<32x128xf32> -> vector<32x128xf32>
    %c0_9 = arith.constant 0 : index
    %c0_10 = arith.constant 0 : index
    %10 = vector.load %arg5[%c0_9, %c0_10] : memref<1x128xf32, #tpu.memory_space<vmem>>, vector<1x128xf32>
    %11 = vector.broadcast %10 : vector<1x128xf32> to vector<32x128xf32>
    %12 = arith.addf %9, %11 : vector<32x128xf32>
    %13 = arith.addf %12, %0 : vector<32x128xf32>
    %cst_11 = arith.constant dense<0.000000e+00> : vector<32xf32>
    %14 = vector.multi_reduction <add>, %13, %cst_11 [1] : vector<32x128xf32> to vector<32xf32>
    %15 = vector.shape_cast %14 : vector<32xf32> to vector<32x1xf32>
    %cst_12 = arith.constant 1.280000e+02 : f32
    %16 = vector.broadcast %cst_12 : f32 to vector<32x1xf32>
    %17 = arith.divf %15, %16 : vector<32x1xf32>
    %18 = vector.broadcast %17 : vector<32x1xf32> to vector<32x128xf32>
    %19 = arith.subf %13, %18 : vector<32x128xf32>
    %20 = arith.mulf %19, %19 : vector<32x128xf32>
    %cst_13 = arith.constant dense<0.000000e+00> : vector<32xf32>
    %21 = vector.multi_reduction <add>, %20, %cst_13 [1] : vector<32x128xf32> to vector<32xf32>
    %22 = vector.shape_cast %21 : vector<32xf32> to vector<32x1xf32>
    %cst_14 = arith.constant 1.280000e+02 : f32
    %23 = vector.broadcast %cst_14 : f32 to vector<32x1xf32>
    %24 = arith.divf %22, %23 : vector<32x1xf32>
    %25 = vector.broadcast %17 : vector<32x1xf32> to vector<32x128xf32>
    %26 = arith.subf %13, %25 : vector<32x128xf32>
    %cst_15 = arith.constant 9.99999974E-6 : f32
    %27 = vector.broadcast %cst_15 : f32 to vector<32x1xf32>
    %28 = arith.addf %24, %27 : vector<32x1xf32>
    %29 = math.rsqrt %28 : vector<32x1xf32>
    %30 = vector.broadcast %29 : vector<32x1xf32> to vector<32x128xf32>
    %31 = arith.mulf %26, %30 : vector<32x128xf32>
    %c0_16 = arith.constant 0 : index
    %c0_17 = arith.constant 0 : index
    %32 = vector.load %arg6[%c0_16, %c0_17] : memref<1x128xf32, #tpu.memory_space<vmem>>, vector<1x128xf32>
    %33 = vector.broadcast %32 : vector<1x128xf32> to vector<32x128xf32>
    %34 = arith.mulf %31, %33 : vector<32x128xf32>
    %c0_18 = arith.constant 0 : index
    %c0_19 = arith.constant 0 : index
    %35 = vector.load %arg7[%c0_18, %c0_19] : memref<1x128xf32, #tpu.memory_space<vmem>>, vector<1x128xf32>
    %36 = vector.broadcast %35 : vector<1x128xf32> to vector<32x128xf32>
    %37 = arith.addf %34, %36 : vector<32x128xf32>
    %c0_20 = arith.constant 0 : index
    %c0_21 = arith.constant 0 : index
    %38 = vector.load %arg8[%c0_20, %c0_21] : memref<32x128xf32, #tpu.memory_space<vmem>>, vector<32x128xf32>
    tpu.vector_store %arg8[%c0_20, %c0_21], %37 {strides = array<i32>} : memref<32x128xf32, #tpu.memory_space<vmem>>, vector<32x128xf32>,
    return
  }
  func.func @transform_0(%arg0: i32) -> (i32, i32) {
    %c0_i32 = arith.constant 0 : i32
    %c0_i32_0 = arith.constant 0 : i32
    return %arg0, %c0_i32 : i32, i32
  }
  func.func @transform_1(%arg0: i32) -> (i32, i32) {
    %c0_i32 = arith.constant 0 : i32
    %c0_i32_0 = arith.constant 0 : i32
    %c0_i32_1 = arith.constant 0 : i32
    return %c0_i32, %c0_i32_0 : i32, i32
  }
  func.func @transform_2(%arg0: i32) -> (i32, i32) {
    %c0_i32 = arith.constant 0 : i32
    %c0_i32_0 = arith.constant 0 : i32
    %c0_i32_1 = arith.constant 0 : i32
    return %c0_i32, %c0_i32_0 : i32, i32
  }
  func.func @transform_3(%arg0: i32) -> (i32, i32) {
    %c0_i32 = arith.constant 0 : i32
    %c0_i32_0 = arith.constant 0 : i32
    %c0_i32_1 = arith.constant 0 : i32
    return %c0_i32, %c0_i32_0 : i32, i32
  }
  func.func @transform_4(%arg0: i32) -> (i32, i32) {
    %c0_i32 = arith.constant 0 : i32
    %c0_i32_0 = arith.constant 0 : i32
    %c0_i32_1 = arith.constant 0 : i32
    return %c0_i32, %c0_i32_0 : i32, i32
  }
  func.func @transform_5(%arg0: i32) -> (i32, i32) {
    %c0_i32 = arith.constant 0 : i32
    %c0_i32_0 = arith.constant 0 : i32
    %c0_i32_1 = arith.constant 0 : i32
    return %c0_i32, %c0_i32_0 : i32, i32
  }
  func.func @transform_6(%arg0: i32) -> (i32, i32) {
    %c0_i32 = arith.constant 0 : i32
    %c0_i32_0 = arith.constant 0 : i32
    %c0_i32_1 = arith.constant 0 : i32
    return %c0_i32, %c0_i32_0 : i32, i32
  }
  func.func @transform_7(%arg0: i32) -> (i32, i32) {
    %c0_i32 = arith.constant 0 : i32
    %c0_i32_0 = arith.constant 0 : i32
    return %arg0, %c0_i32 : i32, i32
  }
}

module attributes {stable_mosaic.version = 11 : i64} {
  func.func @_ffn_kernel(%arg0: i32, %arg1: memref<32x128xf32, #tpu.memory_space<vmem>>, %arg2: memref<128x256xf32, #tpu.memory_space<vmem>>, %arg3: memref<1x256xf32, #tpu.memory_space<vmem>>, %arg4: memref<256x128xf32, #tpu.memory_space<vmem>>, %arg5: memref<1x128xf32, #tpu.memory_space<vmem>>, %arg6: memref<1x128xf32, #tpu.memory_space<vmem>>, %arg7: memref<1x128xf32, #tpu.memory_space<vmem>>, %arg8: memref<32x128xf32, #tpu.memory_space<vmem>>) attributes {dimension_semantics = [#tpu.dimension_semantics<parallel>], iteration_bounds = array<i64: 2>, scalar_prefetch = 0 : i64, scratch_operands = 0 : i64, tpu.core_type = #tpu.core_type<tc>, window_params = [{transform_indices = @transform_0, window_bounds = array<i64: 32, 128>}, {pipeline_mode = #tpu.pipeline_mode<synchronous>, transform_indices = @transform_1, window_bounds = array<i64: 128, 256>}, {pipeline_mode = #tpu.pipeline_mode<synchronous>, transform_indices = @transform_2, window_bounds = array<i64: 1, 256>}, {pipeline_mode = #tpu.pipeline_mode<synchronous>, transform_indices = @transform_3, window_bounds = array<i64: 256, 128>}, {pipeline_mode = #tpu.pipeline_mode<synchronous>, transform_indices = @transform_4, window_bounds = array<i64: 1, 128>}, {pipeline_mode = #tpu.pipeline_mode<synchronous>, transform_indices = @transform_5, window_bounds = array<i64: 1, 128>}, {pipeline_mode = #tpu.pipeline_mode<synchronous>, transform_indices = @transform_6, window_bounds = array<i64: 1, 128>}, {transform_indices = @transform_7, window_bounds = array<i64: 32, 128>}]} {
    %c0 = arith.constant 0 : index
    %c0_0 = arith.constant 0 : index
    %0 = vector.load %arg1[%c0, %c0_0] : memref<32x128xf32, #tpu.memory_space<vmem>>, vector<32x128xf32>
    %c0_1 = arith.constant 0 : index
    %c0_2 = arith.constant 0 : index
    %1 = vector.load %arg2[%c0_1, %c0_2] : memref<128x256xf32, #tpu.memory_space<vmem>>, vector<128x256xf32>
    %cst = arith.constant dense<0.000000e+00> : vector<32x256xf32>
    %2 = tpu.matmul %0, %1, %cst {dimension_numbers = #tpu.dot_dimension_numbers<[1], [0], [0], [1], [0, 0, 1, 1], [], []>} : vector<32x128xf32>, vector<128x256xf32>, vector<32x256xf32> -> vector<32x256xf32>
    %c0_3 = arith.constant 0 : index
    %c0_4 = arith.constant 0 : index
    %3 = vector.load %arg3[%c0_3, %c0_4] : memref<1x256xf32, #tpu.memory_space<vmem>>, vector<1x256xf32>
    %4 = vector.broadcast %3 : vector<1x256xf32> to vector<32x256xf32>
    %5 = arith.addf %2, %4 : vector<32x256xf32>
    %cst_5 = arith.constant 0.000000e+00 : f32
    %6 = vector.broadcast %cst_5 : f32 to vector<32x256xf32>
    %7 = arith.maximumf %5, %6 : vector<32x256xf32>
    %c0_6 = arith.constant 0 : index
    %c0_7 = arith.constant 0 : index
    %8 = vector.load %arg4[%c0_6, %c0_7] : memref<256x128xf32, #tpu.memory_space<vmem>>, vector<256x128xf32>
    %cst_8 = arith.constant dense<0.000000e+00> : vector<32x128xf32>
    %9 = tpu.matmul %7, %8, %cst_8 {dimension_numbers = #tpu.dot_dimension_numbers<[1], [0], [0], [1], [0, 0, 1, 1], [], []>} : vector<32x256xf32>, vector<256x128xf32>, vector<32x128xf32> -> vector<32x128xf32>
    %c0_9 = arith.constant 0 : index
    %c0_10 = arith.constant 0 : index
    %10 = vector.load %arg5[%c0_9, %c0_10] : memref<1x128xf32, #tpu.memory_space<vmem>>, vector<1x128xf32>
    %11 = vector.broadcast %10 : vector<1x128xf32> to vector<32x128xf32>
    %12 = arith.addf %9, %11 : vector<32x128xf32>
    %13 = arith.addf %12, %0 : vector<32x128xf32>
    %cst_11 = arith.constant dense<0.000000e+00> : vector<32xf32>
    %14 = vector.multi_reduction <add>, %13, %cst_11 [1] : vector<32x128xf32> to vector<32xf32>
    %15 = vector.shape_cast %14 : vector<32xf32> to vector<32x1xf32>
    %cst_12 = arith.constant 1.280000e+02 : f32
    %16 = vector.broadcast %cst_12 : f32 to vector<32x1xf32>
    %17 = arith.divf %15, %16 : vector<32x1xf32>
    %18 = vector.broadcast %17 : vector<32x1xf32> to vector<32x128xf32>
    %19 = arith.subf %13, %18 : vector<32x128xf32>
    %20 = arith.mulf %19, %19 : vector<32x128xf32>
    %cst_13 = arith.constant dense<0.000000e+00> : vector<32xf32>
    %21 = vector.multi_reduction <add>, %20, %cst_13 [1] : vector<32x128xf32> to vector<32xf32>
    %22 = vector.shape_cast %21 : vector<32xf32> to vector<32x1xf32>
    %cst_14 = arith.constant 1.280000e+02 : f32
    %23 = vector.broadcast %cst_14 : f32 to vector<32x1xf32>
    %24 = arith.divf %22, %23 : vector<32x1xf32>
    %25 = vector.broadcast %17 : vector<32x1xf32> to vector<32x128xf32>
    %26 = arith.subf %13, %25 : vector<32x128xf32>
    %cst_15 = arith.constant 9.99999974E-6 : f32
    %27 = vector.broadcast %cst_15 : f32 to vector<32x1xf32>
    %28 = arith.addf %24, %27 : vector<32x1xf32>
    %29 = math.rsqrt %28 : vector<32x1xf32>
    %30 = vector.broadcast %29 : vector<32x1xf32> to vector<32x128xf32>
    %31 = arith.mulf %26, %30 : vector<32x128xf32>
    %c0_16 = arith.constant 0 : index
    %c0_17 = arith.constant 0 : index
    %32 = vector.load %arg6[%c0_16, %c0_17] : memref<1x128xf32, #tpu.memory_space<vmem>>, vector<1x128xf32>
    %33 = vector.broadcast %32 : vector<1x128xf32> to vector<32x128xf32>
    %34 = arith.mulf %31, %33 : vector<32x128xf32>
    %c0_18 = arith.constant 0 : index
    %c0_19 = arith.constant 0 : index
    %35 = vector.load %arg7[%c0_18, %c0_19] : memref<1x128xf32, #tpu.memory_space<vmem>>, vector<1x128xf32>
    %36 = vector.broadcast %35 : vector<1x128xf32> to vector<32x128xf32>
    %37 = arith.addf %34, %36 : vector<32x128xf32>
    %c0_20 = arith.constant 0 : index
    %c0_21 = arith.constant 0 : index
    %38 = vector.load %arg8[%c0_20, %c0_21] : memref<32x128xf32, #tpu.memory_space<vmem>>, vector<32x128xf32>
    tpu.vector_store %arg8[%c0_20, %c0_21], %37 {strides = array<i32>} : memref<32x128xf32, #tpu.memory_space<vmem>>, vector<32x128xf32>,
    return
  }
  func.func @transform_0(%arg0: i32) -> (i32, i32) {
    %c0_i32 = arith.constant 0 : i32
    %c0_i32_0 = arith.constant 0 : i32
    return %arg0, %c0_i32 : i32, i32
  }
  func.func @transform_1(%arg0: i32) -> (i32, i32) {
    %c0_i32 = arith.constant 0 : i32
    %c0_i32_0 = arith.constant 0 : i32
    %c0_i32_1 = arith.constant 0 : i32
    return %c0_i32, %c0_i32_0 : i32, i32
  }
  func.func @transform_2(%arg0: i32) -> (i32, i32) {
    %c0_i32 = arith.constant 0 : i32
    %c0_i32_0 = arith.constant 0 : i32
    %c0_i32_1 = arith.constant 0 : i32
    return %c0_i32, %c0_i32_0 : i32, i32
  }
  func.func @transform_3(%arg0: i32) -> (i32, i32) {
    %c0_i32 = arith.constant 0 : i32
    %c0_i32_0 = arith.constant 0 : i32
    %c0_i32_1 = arith.constant 0 : i32
    return %c0_i32, %c0_i32_0 : i32, i32
  }
  func.func @transform_4(%arg0: i32) -> (i32, i32) {
    %c0_i32 = arith.constant 0 : i32
    %c0_i32_0 = arith.constant 0 : i32
    %c0_i32_1 = arith.constant 0 : i32
    return %c0_i32, %c0_i32_0 : i32, i32
  }
  func.func @transform_5(%arg0: i32) -> (i32, i32) {
    %c0_i32 = arith.constant 0 : i32
    %c0_i32_0 = arith.constant 0 : i32
    %c0_i32_1 = arith.constant 0 : i32
    return %c0_i32, %c0_i32_0 : i32, i32
  }
  func.func @transform_6(%arg0: i32) -> (i32, i32) {
    %c0_i32 = arith.constant 0 : i32
    %c0_i32_0 = arith.constant 0 : i32
    %c0_i32_1 = arith.constant 0 : i32
    return %c0_i32, %c0_i32_0 : i32, i32
  }
  func.func @transform_7(%arg0: i32) -> (i32, i32) {
    %c0_i32 = arith.constant 0 : i32
    %c0_i32_0 = arith.constant 0 : i32
    return %arg0, %c0_i32 : i32, i32
  }
}

</mosaic_0001>

<llo_original>
// kernel: transformer_encoder_forward.5
$region0: #{transformer_encoder_forward.5}
  #allocation0 [shape = 'u32[]', space=smem, size = 0x4, offset = 0x4, fixed_abs, tag = 'smem constant byte address 0x4 - core index']
  #allocation1 [shape = 'u32[144,128]{1,0:T(1,128)}', space=vmem, size = 0x12000, scoped, tag = 'internal scratch']
  %s0 = inlined_call_operand.vmem [shape: s32[64,1], index: 0, kind: input, shape index: {}]
  %s1 = inlined_call_operand.vmem [shape: f32[128,128], index: 1, kind: input, shape index: {}]
  %s2 = inlined_call_operand.vmem [shape: f32[64,128], index: 2, kind: input, shape index: {}]
  %s3 = inlined_call_operand.vmem [shape: f32[64,128], index: 3, kind: output, shape index: {}]
  %s4 = sld [smem:[#allocation0]]
  $region45: #{transformer_encoder_forward.5} parent=0
    _
  %s6 = ssub.s32 1, %s4
  %s7 = scalar_select 0, %s6, %s4
  loop: start=0, step=1, limit=4
  $region2: #{transformer_encoder_forward.5} parent=0 // loop_pre_header
    _
  $region3: #{transformer_encoder_forward.5} parent=0 // loop_header
    %s9 = sphi 0, %s13
    %p10 = scmp.ge.s32.totalorder %s9, 4
    %s19 = sphi 0, %s21
    %s22 = sphi 0, %s19
    %s23 = sphi 0, %s22
    %s39 = sphi 0, %s23
    %s43 = sphi 0, %s43
    %s45 = sphi 0, %s43
    %s46 = sphi 0, %s45
    %s60 = sphi 0, %s46
    %s66 = sphi 0, %s68
    %s69 = sphi 0, %s66
    %s70 = sphi 0, %s69
    %s86 = sphi 0, %s70
    %s92 = sphi 0, %s94
    %s95 = sphi 0, %s92
    %s96 = sphi 0, %s95
    %s112 = sphi 0, %s96
  $region4: #{transformer_encoder_forward.5} parent=0 // loop_header_branch
    %12 = sbr.rel (%p10) target = $region8
  $region5: #{transformer_encoder_forward.5} parent=0 // loop_body
    %s14 = ssub.s32 %s9, 1
    %s15 = ssub.s32 %s9, 2
    %s16 = sadd.s32 %s9, 1
    %s17 = ssub.s32 %s9, %s16
    %p18 = scmp.eq.s32.totalorder %s17, 0
    %s20 = sadd.s32 %s19, 1
    %s21 = scalar_select %p18, %s19, %s20
    %p24 = pneg %p18
    %p25 = scmp.eq.s32.totalorder %s9, 1
    %p26 = por %p24, %p25
    %p27 = scmp.ne.s32.totalorder %s19, %s22
    %p28 = scmp.eq.s32.totalorder %s9, 0
    %p29 = por %p27, %p28
    %p30 = scmp.ne.s32.totalorder %s19, %s22
    %p31 = scmp.eq.s32.totalorder %s14, 1
    %p32 = por %p30, %p31
    %p33 = scmp.ne.s32.totalorder %s22, %s23
    %p34 = scmp.eq.s32.totalorder %s14, 0
    %p35 = por %p33, %p34
    %p36 = scmp.ne.s32.totalorder %s22, %s23
    %p37 = scmp.eq.s32.totalorder %s15, 1
    %p38 = por %p36, %p37
    %p40 = scmp.ne.s32.totalorder %s23, %s39
    %p41 = scmp.eq.s32.totalorder %s15, 0
    %p42 = por %p40, %p41
    %s44 = sadd.s32 %s43, 1
    %p47 = scmp.eq.s32.totalorder %s9, 1
    %p48 = scmp.ne.s32.totalorder %s43, %s45
    %p49 = scmp.eq.s32.totalorder %s9, 0
    %p50 = por %p48, %p49
    %p51 = scmp.ne.s32.totalorder %s43, %s45
    %p52 = scmp.eq.s32.totalorder %s14, 1
    %p53 = por %p51, %p52
    %p54 = scmp.ne.s32.totalorder %s45, %s46
    %p55 = scmp.eq.s32.totalorder %s14, 0
    %p56 = por %p54, %p55
    %p57 = scmp.ne.s32.totalorder %s45, %s46
    %p58 = scmp.eq.s32.totalorder %s15, 1
    %p59 = por %p57, %p58
    %p61 = scmp.ne.s32.totalorder %s46, %s60
    %p62 = scmp.eq.s32.totalorder %s15, 0
    %p63 = por %p61, %p62
    %s64 = ssub.s32 %s9, %s16
    %p65 = scmp.eq.s32.totalorder %s64, 0
    %s67 = sadd.s32 %s66, 1
    %s68 = scalar_select %p65, %s66, %s67
    %p71 = pneg %p65
    %p72 = scmp.eq.s32.totalorder %s9, 1
    %p73 = por %p71, %p72
    %p74 = scmp.ne.s32.totalorder %s66, %s69
    %p75 = scmp.eq.s32.totalorder %s9, 0
    %p76 = por %p74, %p75
    %p77 = scmp.ne.s32.totalorder %s66, %s69
    %p78 = scmp.eq.s32.totalorder %s14, 1
    %p79 = por %p77, %p78
    %p80 = scmp.ne.s32.totalorder %s69, %s70
    %p81 = scmp.eq.s32.totalorder %s14, 0
    %p82 = por %p80, %p81
    %p83 = scmp.ne.s32.totalorder %s69, %s70
    %p84 = scmp.eq.s32.totalorder %s15, 1
    %p85 = por %p83, %p84
    %p87 = scmp.ne.s32.totalorder %s70, %s86
    %p88 = scmp.eq.s32.totalorder %s15, 0
    %p89 = por %p87, %p88
    %s90 = ssub.s32 %s9, %s16
    %p91 = scmp.eq.s32.totalorder %s90, 0
    %s93 = sadd.s32 %s92, 1
    %s94 = scalar_select %p91, %s92, %s93
    %p97 = pneg %p91
    %p98 = scmp.eq.s32.totalorder %s9, 1
    %p99 = por %p97, %p98
    %p100 = scmp.ne.s32.totalorder %s92, %s95
    %p101 = scmp.eq.s32.totalorder %s9, 0
    %p102 = por %p100, %p101
    %p103 = scmp.ne.s32.totalorder %s92, %s95
    %p104 = scmp.eq.s32.totalorder %s14, 1
    %p105 = por %p103, %p104
    %p106 = scmp.ne.s32.totalorder %s95, %s96
    %p107 = scmp.eq.s32.totalorder %s14, 0
    %p108 = por %p106, %p107
    %p109 = scmp.ne.s32.totalorder %s95, %s96
    %p110 = scmp.eq.s32.totalorder %s15, 1
    %p111 = por %p109, %p110
    %p113 = scmp.ne.s32.totalorder %s96, %s112
    %p114 = scmp.eq.s32.totalorder %s15, 0
    %p115 = por %p113, %p114
    %p116 = scmp.le.s32.totalorder 1, %s9
    %p117 = scmp.lt.s32.totalorder %s9, 3
    %p118 = pnand %p116, %p117
    %p119 = pneg %p118
    // Predicated region
    $region9: #{transformer_encoder_forward.5} parent=5 // pred_check
      _
    $region10: #{transformer_encoder_forward.5} parent=5 // pred_check_branch
      %121 = sbr.rel (%p118) target = $region12
    $region11: #{transformer_encoder_forward.5} parent=5 // pred_region
      %s122 = ssub.s32 %s9, 1
      // Predicated region
      $region13: #{transformer_encoder_forward.5} parent=11 // pred_check
        %p123 = pneg %p56
      $region14: #{transformer_encoder_forward.5} parent=11 // pred_check_branch
        %125 = sbr.rel (%p123) target = $region16
      $region15: #{transformer_encoder_forward.5} parent=11 // pred_region
        _
      $region16: #{transformer_encoder_forward.5} parent=11 // pred_fallthru
        _
    $region12: #{transformer_encoder_forward.5} parent=5 // pred_fallthru
      _
    %p126 = scmp.lt.s32.totalorder %s9, 2
    // Predicated region
    $region17: #{transformer_encoder_forward.5} parent=5 // pred_check
      %p127 = pneg %p126
    $region18: #{transformer_encoder_forward.5} parent=5 // pred_check_branch
      %129 = sbr.rel (%p127) target = $region20
    $region19: #{transformer_encoder_forward.5} parent=5 // pred_region
      // Predicated region
      $region21: #{transformer_encoder_forward.5} parent=19 // pred_check
        %p130 = pneg %p29
      $region22: #{transformer_encoder_forward.5} parent=19 // pred_check_branch
        %132 = sbr.rel (%p130) target = $region24
      $region23: #{transformer_encoder_forward.5} parent=19 // pred_region
        %s133 = smul.u32 4, %s9
        %p134 = scmp.lt.s32.totalorder %s133, 7
        %s135 = scalar_select %p134, %s133, 7
        %s136 = smul.addr %s135, 8
        %s137 = scalar_lea.vmem %s0, %s136
        %s138 = smul.u32 4, %s9
      $region24: #{transformer_encoder_forward.5} parent=19 // pred_fallthru
        _
      // Predicated region
      $region25: #{transformer_encoder_forward.5} parent=19 // pred_check
        %p139 = pneg %p76
      $region26: #{transformer_encoder_forward.5} parent=19 // pred_check_branch
        %141 = sbr.rel (%p139) target = $region28
      $region27: #{transformer_encoder_forward.5} parent=19 // pred_region
        %s142 = smul.u32 4, %s9
        %p143 = scmp.lt.s32.totalorder %s142, 7
        %s144 = scalar_select %p143, %s142, 7
        %s145 = smul.addr %s144, 8
        %s146 = scalar_lea.vmem %s2, %s145
        %s147 = smul.u32 4, %s9
      $region28: #{transformer_encoder_forward.5} parent=19 // pred_fallthru
        _
    $region20: #{transformer_encoder_forward.5} parent=5 // pred_fallthru
      _
    %p148 = scmp.le.s32.totalorder 1, %s9
    %p149 = scmp.lt.s32.totalorder %s9, 3
    %p150 = pnand %p148, %p149
    %p151 = pneg %p150
    // Predicated region
    $region29: #{transformer_encoder_forward.5} parent=5 // pred_check
      _
    $region30: #{transformer_encoder_forward.5} parent=5 // pred_check_branch
      %153 = sbr.rel (%p150) target = $region32
    $region31: #{transformer_encoder_forward.5} parent=5 // pred_region
      %s154 = ssub.s32 %s9, 1
      %s155 = smul.u32 4, %s14
      %p156 = scmp.lt.s32.totalorder %s155, 7
      %s157 = scalar_select %p156, %s155, 7
      %s158 = smul.addr %s157, 8
      %s159 = scalar_lea.vmem %s0, %s158
      %p160 = pneg %p35
      %p161 = pneg %p32
      %p162 = pneg %p56
      %p163 = pneg %p53
      %s164 = smul.u32 4, %s14
      %p165 = scmp.lt.s32.totalorder %s164, 7
      %s166 = scalar_select %p165, %s164, 7
      %s167 = smul.addr %s166, 8
      %s168 = scalar_lea.vmem %s2, %s167
      %p169 = pneg %p82
      %p170 = pneg %p79
      %p171 = pneg %p108
      %p172 = pneg %p105
      %s173 = smul.u32 4, %s14
      %p174 = scmp.lt.s32.totalorder %s173, 7
      %s175 = scalar_select %p174, %s173, 7
      %s176 = smul.addr %s175, 8
      %s177 = scalar_lea.vmem %s3, %s176
      %s178 = smul.u32 4, %s14
      %p179 = scmp.lt.s32.totalorder %s178, 7
      %s180 = scalar_select %p179, %s178, 7
      %s181 = smul.addr %s180, 8
      %s182 = scalar_lea.vmem %s0, %s181
      %s183 = smul.u32 4, %s14
      %s184 = smul.u32 4, %s14
      %p185 = scmp.lt.s32.totalorder %s184, 7
      %s186 = scalar_select %p185, %s184, 7
      %s187 = smul.addr %s186, 8
      %s188 = scalar_lea.vmem %s2, %s187
      %s189 = smul.u32 4, %s14
      %s190 = smul.u32 4, %s14
      %p191 = scmp.lt.s32.totalorder %s190, 7
      %s192 = scalar_select %p191, %s190, 7
      %s193 = smul.addr %s192, 8
      %s194 = scalar_lea.vmem %s3, %s193
      %s195 = smul.u32 4, %s14
      %v196 = vld [vmem:[%s182] sm:$0xff]
      %v197 = vld [vmem:[%s182 + $0x8] sm:$0xff]
      %v198 = vld [vmem:[%s182 + $0x10] sm:$0xff]
      %v199 = vld [vmem:[%s182 + $0x18] sm:$0xff]
      %v200 = vlaneseq
      %v201 = vand.u32 %v200, 127
      %202 = vset.pattern.permute.xlu0 0
      %203 = vperm.xlu0 %202, %v196
      %v204 = vpop.permute.xlu0 %203
      %205 = vset.pattern.permute.xlu0 0
      %206 = vperm.xlu0 %205, %v197
      %v207 = vpop.permute.xlu0 %206
      %208 = vset.pattern.permute.xlu0 0
      %209 = vperm.xlu0 %208, %v198
      %v210 = vpop.permute.xlu0 %209
      %211 = vset.pattern.permute.xlu0 0
      %212 = vperm.xlu0 %211, %v199
      %v213 = vpop.permute.xlu0 %212
      %vm214 = vcmp.eq.s32.totalorder %v204, %v201
      %vm215 = vcmp.eq.s32.totalorder %v207, %v201
      %vm216 = vcmp.eq.s32.totalorder %v210, %v201
      %vm217 = vcmp.eq.s32.totalorder %v213, %v201
      %v218 = vsel %vm214, 1, 0
      %v219 = vsel %vm215, 1, 0
      %v220 = vsel %vm216, 1, 0
      %v221 = vsel %vm217, 1, 0
      %v222 = vcvt.s32.f32 %v218
      %v223 = vcvt.s32.f32 %v219
      %v224 = vcvt.s32.f32 %v220
      %v225 = vcvt.s32.f32 %v221
      %v226 = vld [vmem:[%s1] sm:$0xff]
      %v227 = vld [vmem:[%s1 + $0x8] sm:$0xff]
      %v228 = vld [vmem:[%s1 + $0x10] sm:$0xff]
      %v229 = vld [vmem:[%s1 + $0x18] sm:$0xff]
      %v230 = vld [vmem:[%s1 + $0x20] sm:$0xff]
      %v231 = vld [vmem:[%s1 + $0x28] sm:$0xff]
      %v232 = vld [vmem:[%s1 + $0x30] sm:$0xff]
      %v233 = vld [vmem:[%s1 + $0x38] sm:$0xff]
      %v234 = vld [vmem:[%s1 + $0x40] sm:$0xff]
      %v235 = vld [vmem:[%s1 + $0x48] sm:$0xff]
      %v236 = vld [vmem:[%s1 + $0x50] sm:$0xff]
      %v237 = vld [vmem:[%s1 + $0x58] sm:$0xff]
      %v238 = vld [vmem:[%s1 + $0x60] sm:$0xff]
      %v239 = vld [vmem:[%s1 + $0x68] sm:$0xff]
      %v240 = vld [vmem:[%s1 + $0x70] sm:$0xff]
      %v241 = vld [vmem:[%s1 + $0x78] sm:$0xff]
      %v242 = vld [vmem:[%s188] sm:$0xff]
      %v243 = vld [vmem:[%s188 + $0x8] sm:$0xff]
      %v244 = vld [vmem:[%s188 + $0x10] sm:$0xff]
      %v245 = vld [vmem:[%s188 + $0x18] sm:$0xff]
      %246 = vmatprep.subr.mxu0 0.0
      %247 = vmatpush1.msra.mxu0 %v226
      %248 = vmatprep.subr.mxu0 0.0
      %249 = vmatpush1.msra.mxu0 %v227
      %250 = vmatprep.subr.mxu0 0.0
      %251 = vmatpush1.msra.mxu0 %v228
      %252 = vmatprep.subr.mxu0 0.0
      %253 = vmatpush1.msra.mxu0 %v229
      %254 = vmatprep.subr.mxu0 0.0
      %255 = vmatpush1.msra.mxu0 %v230
      %256 = vmatprep.subr.mxu0 0.0
      %257 = vmatpush1.msra.mxu0 %v231
      %258 = vmatprep.subr.mxu0 0.0
      %259 = vmatpush1.msra.mxu0 %v232
      %260 = vmatprep.subr.mxu0 0.0
      %261 = vmatpush1.msra.mxu0 %v233
      %262 = vmatprep.subr.mxu0 0.0
      %263 = vmatpush1.msra.mxu0 %v234
      %264 = vmatprep.subr.mxu0 0.0
      %265 = vmatpush1.msra.mxu0 %v235
      %266 = vmatprep.subr.mxu0 0.0
      %267 = vmatpush1.msra.mxu0 %v236
      %268 = vmatprep.subr.mxu0 0.0
      %269 = vmatpush1.msra.mxu0 %v237
      %270 = vmatprep.subr.mxu0 0.0
      %271 = vmatpush1.msra.mxu0 %v238
      %272 = vmatprep.subr.mxu0 0.0
      %273 = vmatpush1.msra.mxu0 %v239
      %274 = vmatprep.subr.mxu0 0.0
      %275 = vmatpush1.msra.mxu0 %v240
      %276 = vmatprep.subr.mxu0 0.0
      %277 = vmatpush1.msra.mxu0 %v241
      %278 = vmatprep.subr.mxu0 0.0
      %279 = vmatpush1.msra.mxu0 0.0
      %280 = vmatprep.subr.mxu0 0.0
      %281 = vmatpush1.msra.mxu0 0.0
      %282 = vmatprep.subr.mxu0 0.0
      %283 = vmatpush1.msra.mxu0 0.0
      %284 = vmatprep.subr.mxu0 0.0
      %285 = vmatpush1.msra.mxu0 0.0
      %286 = vmatprep.subr.mxu0 0.0
      %287 = vmatpush1.msra.mxu0 0.0
      %288 = vmatprep.subr.mxu0 0.0
      %289 = vmatpush1.msra.mxu0 0.0
      %290 = vmatprep.subr.mxu0 0.0
      %291 = vmatpush1.msra.mxu0 0.0
      %292 = vmatprep.subr.mxu0 0.0
      %293 = vmatpush1.msra.mxu0 0.0
      %294 = vmatprep.subr.mxu0 0.0
      %295 = vmatpush1.msra.mxu0 0.0
      %296 = vmatprep.subr.mxu0 0.0
      %297 = vmatpush1.msra.mxu0 0.0
      %298 = vmatprep.subr.mxu0 0.0
      %299 = vmatpush1.msra.mxu0 0.0
      %300 = vmatprep.subr.mxu0 0.0
      %301 = vmatpush1.msra.mxu0 0.0
      %302 = vmatprep.subr.mxu0 0.0
      %303 = vmatpush1.msra.mxu0 0.0
      %304 = vmatprep.subr.mxu0 0.0
      %305 = vmatpush1.msra.mxu0 0.0
      %306 = vmatprep.subr.mxu0 0.0
      %307 = vmatpush1.msra.mxu0 0.0
      %308 = vmatprep.subr.mxu0 0.0
      %309 = vmatpush1.msra.mxu0 0.0
      %310 = vmatprep.mubr.f32.mxu0 0.0
      %311 = vmatmul.mubr.f32.gmra.mrb[0].mxu0 %v222
      %v312 = vpop.f32.mrb[0].mxu0
      %v313 = vadd.f32 %v242, %v312
      %v314 = vpop.f32.mrb[0].mxu0
      %315 = vmatprep.mubr.f32.mxu0 0.0
      %316 = vmatmul.mubr.f32.gmra.mrb[0].mxu0 %v223
      %v317 = vpop.f32.mrb[0].mxu0
      %v318 = vadd.f32 %v243, %v317
      %v319 = vpop.f32.mrb[0].mxu0
      %320 = vmatprep.mubr.f32.mxu0 0.0
      %321 = vmatmul.mubr.f32.gmra.mrb[0].mxu0 %v224
      %v322 = vpop.f32.mrb[0].mxu0
      %v323 = vadd.f32 %v244, %v322
      %v324 = vpop.f32.mrb[0].mxu0
      %325 = vmatprep.mubr.f32.mxu0 0.0
      %326 = vmatmul.mubr.f32.gmra.mrb[0].mxu0 %v225
      %v327 = vpop.f32.mrb[0].mxu0
      %v328 = vadd.f32 %v245, %v327
      %v329 = vpop.f32.mrb[0].mxu0
      %330 = vdwg.mxu0
      %331 = vst [vmem:[%s194] sm:$0xff] %v313
      %332 = vst [vmem:[%s194 + $0x8] sm:$0xff] %v318
      %333 = vst [vmem:[%s194 + $0x10] sm:$0xff] %v323
      %334 = vst [vmem:[%s194 + $0x18] sm:$0xff] %v328
      %s335 = smul.u32 4, %s14
      %p336 = scmp.lt.s32.totalorder %s335, 7
      %s337 = scalar_select %p336, %s335, 7
      %s338 = smul.addr %s337, 8
      %s339 = scalar_lea.vmem %s3, %s338
      // Predicated region
      $region33: #{transformer_encoder_forward.5} parent=31 // pred_check
        %p340 = pneg %p105
      $region34: #{transformer_encoder_forward.5} parent=31 // pred_check_branch
        %342 = sbr.rel (%p340) target = $region36
      $region35: #{transformer_encoder_forward.5} parent=31 // pred_region
        %s343 = smul.u32 4, %s14
      $region36: #{transformer_encoder_forward.5} parent=31 // pred_fallthru
        _
    $region32: #{transformer_encoder_forward.5} parent=5 // pred_fallthru
      _
    %p344 = scmp.le.s32.totalorder 2, %s9
    // Predicated region
    $region37: #{transformer_encoder_forward.5} parent=5 // pred_check
      %p345 = pneg %p344
    $region38: #{transformer_encoder_forward.5} parent=5 // pred_check_branch
      %347 = sbr.rel (%p345) target = $region40
    $region39: #{transformer_encoder_forward.5} parent=5 // pred_region
      %s348 = ssub.s32 %s9, 2
      // Predicated region
      $region41: #{transformer_encoder_forward.5} parent=39 // pred_check
        %p349 = pneg %p111
      $region42: #{transformer_encoder_forward.5} parent=39 // pred_check_branch
        %351 = sbr.rel (%p349) target = $region44
      $region43: #{transformer_encoder_forward.5} parent=39 // pred_region
        %s352 = smul.u32 4, %s15
        %p353 = scmp.lt.s32.totalorder %s352, 7
        %s354 = scalar_select %p353, %s352, 7
        %s355 = smul.addr %s354, 8
        %s356 = scalar_lea.vmem %s3, %s355
      $region44: #{transformer_encoder_forward.5} parent=39 // pred_fallthru
        _
    $region40: #{transformer_encoder_forward.5} parent=5 // pred_fallthru
      _
  $region6: #{transformer_encoder_forward.5} parent=0 // loop_footer
    %s13 = sadd.s32 1, %s9
  $region7: #{transformer_encoder_forward.5} parent=0 // loop_footer_branch
    %8 = sbr.rel target = $region3
  $region8: #{transformer_encoder_forward.5} parent=0 // loop_exit
    _

// kernel: transformer_encoder_forward.9
$region0: #{transformer_encoder_forward.9}
  #allocation0 [shape = 'u32[]', space=smem, size = 0x4, offset = 0x4, fixed_abs, tag = 'smem constant byte address 0x4 - core index']
  #allocation1 [shape = 'u32[144,128]{1,0:T(1,128)}', space=vmem, size = 0x12000, scoped, tag = 'internal scratch']
  %s0 = inlined_call_operand.vmem [shape: f32[64,128], index: 0, kind: input, shape index: {}]
  %s1 = inlined_call_operand.vmem [shape: f32[128,256], index: 1, kind: input, shape index: {}]
  %s2 = inlined_call_operand.vmem [shape: f32[1,256], index: 2, kind: input, shape index: {}]
  %s3 = inlined_call_operand.vmem [shape: f32[256,128], index: 3, kind: input, shape index: {}]
  %s4 = inlined_call_operand.vmem [shape: f32[1,128], index: 4, kind: input, shape index: {}]
  %s5 = inlined_call_operand.vmem [shape: f32[1,128], index: 5, kind: input, shape index: {}]
  %s6 = inlined_call_operand.vmem [shape: f32[1,128], index: 6, kind: input, shape index: {}]
  %s7 = inlined_call_operand.hbm [shape: f32[64,128], index: 7, kind: output, shape index: {}]
  %s8 = sld [smem:[#allocation0]]
  $region61: #{transformer_encoder_forward.9} parent=0
    _
  %s10 = ssub.s32 1, %s8
  %s11 = scalar_select 0, %s10, %s8
  $region1: #{transformer_encoder_forward.9} parent=0
    #allocation2 [shape = 'u8[32768]{0}', space=vmem, size = 0x8000, scoped, tag = 'output window, operand 0']
    #allocation3 [shape = 's32[2]{0}', space=sflag, size = 0x8, scoped, tag = 'scoped memory for transformer_encoder_forward.9']
    %12 = vsyncpa [#allocation3], 0
    %s13 = scalar_lea.sflag [#allocation3], 1
    %14 = vsyncpa %s13, 0
    loop: start=0, step=1, limit=4
    $region2: #{transformer_encoder_forward.9} parent=1 // loop_pre_header
      _
    $region3: #{transformer_encoder_forward.9} parent=1 // loop_header
      %s16 = sphi 0, %s20
      %p17 = scmp.ge.s32.totalorder %s16, 4
      %s26 = sphi 0, %s28
      %s29 = sphi 0, %s26
      %s30 = sphi 0, %s29
      %s46 = sphi 0, %s30
      %s50 = sphi 0, %s50
      %s52 = sphi 0, %s50
      %s53 = sphi 0, %s52
      %s67 = sphi 0, %s53
      %s71 = sphi 0, %s71
      %s73 = sphi 0, %s71
      %s74 = sphi 0, %s73
      %s88 = sphi 0, %s74
      %s92 = sphi 0, %s92
      %s94 = sphi 0, %s92
      %s95 = sphi 0, %s94
      %s109 = sphi 0, %s95
      %s113 = sphi 0, %s113
      %s115 = sphi 0, %s113
      %s116 = sphi 0, %s115
      %s130 = sphi 0, %s116
      %s134 = sphi 0, %s134
      %s136 = sphi 0, %s134
      %s137 = sphi 0, %s136
      %s151 = sphi 0, %s137
      %s155 = sphi 0, %s155
      %s157 = sphi 0, %s155
      %s158 = sphi 0, %s157
      %s172 = sphi 0, %s158
      %s178 = sphi 0, %s180
      %s181 = sphi 0, %s178
      %s182 = sphi 0, %s181
      %s198 = sphi 0, %s182
    $region4: #{transformer_encoder_forward.9} parent=1 // loop_header_branch
      %19 = sbr.rel (%p17) target = $region8
    $region5: #{transformer_encoder_forward.9} parent=1 // loop_body
      %s21 = ssub.s32 %s16, 1
      %s22 = ssub.s32 %s16, 2
      %s23 = sadd.s32 %s16, 1
      %s24 = ssub.s32 %s16, %s23
      %p25 = scmp.eq.s32.totalorder %s24, 0
      %s27 = sadd.s32 %s26, 1
      %s28 = scalar_select %p25, %s26, %s27
      %p31 = pneg %p25
      %p32 = scmp.eq.s32.totalorder %s16, 1
      %p33 = por %p31, %p32
      %p34 = scmp.ne.s32.totalorder %s26, %s29
      %p35 = scmp.eq.s32.totalorder %s16, 0
      %p36 = por %p34, %p35
      %p37 = scmp.ne.s32.totalorder %s26, %s29
      %p38 = scmp.eq.s32.totalorder %s21, 1
      %p39 = por %p37, %p38
      %p40 = scmp.ne.s32.totalorder %s29, %s30
      %p41 = scmp.eq.s32.totalorder %s21, 0
      %p42 = por %p40, %p41
      %p43 = scmp.ne.s32.totalorder %s29, %s30
      %p44 = scmp.eq.s32.totalorder %s22, 1
      %p45 = por %p43, %p44
      %p47 = scmp.ne.s32.totalorder %s30, %s46
      %p48 = scmp.eq.s32.totalorder %s22, 0
      %p49 = por %p47, %p48
      %s51 = sadd.s32 %s50, 1
      %p54 = scmp.eq.s32.totalorder %s16, 1
      %p55 = scmp.ne.s32.totalorder %s50, %s52
      %p56 = scmp.eq.s32.totalorder %s16, 0
      %p57 = por %p55, %p56
      %p58 = scmp.ne.s32.totalorder %s50, %s52
      %p59 = scmp.eq.s32.totalorder %s21, 1
      %p60 = por %p58, %p59
      %p61 = scmp.ne.s32.totalorder %s52, %s53
      %p62 = scmp.eq.s32.totalorder %s21, 0
      %p63 = por %p61, %p62
      %p64 = scmp.ne.s32.totalorder %s52, %s53
      %p65 = scmp.eq.s32.totalorder %s22, 1
      %p66 = por %p64, %p65
      %p68 = scmp.ne.s32.totalorder %s53, %s67
      %p69 = scmp.eq.s32.totalorder %s22, 0
      %p70 = por %p68, %p69
      %s72 = sadd.s32 %s71, 1
      %p75 = scmp.eq.s32.totalorder %s16, 1
      %p76 = scmp.ne.s32.totalorder %s71, %s73
      %p77 = scmp.eq.s32.totalorder %s16, 0
      %p78 = por %p76, %p77
      %p79 = scmp.ne.s32.totalorder %s71, %s73
      %p80 = scmp.eq.s32.totalorder %s21, 1
      %p81 = por %p79, %p80
      %p82 = scmp.ne.s32.totalorder %s73, %s74
      %p83 = scmp.eq.s32.totalorder %s21, 0
      %p84 = por %p82, %p83
      %p85 = scmp.ne.s32.totalorder %s73, %s74
      %p86 = scmp.eq.s32.totalorder %s22, 1
      %p87 = por %p85, %p86
      %p89 = scmp.ne.s32.totalorder %s74, %s88
      %p90 = scmp.eq.s32.totalorder %s22, 0
      %p91 = por %p89, %p90
      %s93 = sadd.s32 %s92, 1
      %p96 = scmp.eq.s32.totalorder %s16, 1
      %p97 = scmp.ne.s32.totalorder %s92, %s94
      %p98 = scmp.eq.s32.totalorder %s16, 0
      %p99 = por %p97, %p98
      %p100 = scmp.ne.s32.totalorder %s92, %s94
      %p101 = scmp.eq.s32.totalorder %s21, 1
      %p102 = por %p100, %p101
      %p103 = scmp.ne.s32.totalorder %s94, %s95
      %p104 = scmp.eq.s32.totalorder %s21, 0
      %p105 = por %p103, %p104
      %p106 = scmp.ne.s32.totalorder %s94, %s95
      %p107 = scmp.eq.s32.totalorder %s22, 1
      %p108 = por %p106, %p107
      %p110 = scmp.ne.s32.totalorder %s95, %s109
      %p111 = scmp.eq.s32.totalorder %s22, 0
      %p112 = por %p110, %p111
      %s114 = sadd.s32 %s113, 1
      %p117 = scmp.eq.s32.totalorder %s16, 1
      %p118 = scmp.ne.s32.totalorder %s113, %s115
      %p119 = scmp.eq.s32.totalorder %s16, 0
      %p120 = por %p118, %p119
      %p121 = scmp.ne.s32.totalorder %s113, %s115
      %p122 = scmp.eq.s32.totalorder %s21, 1
      %p123 = por %p121, %p122
      %p124 = scmp.ne.s32.totalorder %s115, %s116
      %p125 = scmp.eq.s32.totalorder %s21, 0
      %p126 = por %p124, %p125
      %p127 = scmp.ne.s32.totalorder %s115, %s116
      %p128 = scmp.eq.s32.totalorder %s22, 1
      %p129 = por %p127, %p128
      %p131 = scmp.ne.s32.totalorder %s116, %s130
      %p132 = scmp.eq.s32.totalorder %s22, 0
      %p133 = por %p131, %p132
      %s135 = sadd.s32 %s134, 1
      %p138 = scmp.eq.s32.totalorder %s16, 1
      %p139 = scmp.ne.s32.totalorder %s134, %s136
      %p140 = scmp.eq.s32.totalorder %s16, 0
      %p141 = por %p139, %p140
      %p142 = scmp.ne.s32.totalorder %s134, %s136
      %p143 = scmp.eq.s32.totalorder %s21, 1
      %p144 = por %p142, %p143
      %p145 = scmp.ne.s32.totalorder %s136, %s137
      %p146 = scmp.eq.s32.totalorder %s21, 0
      %p147 = por %p145, %p146
      %p148 = scmp.ne.s32.totalorder %s136, %s137
      %p149 = scmp.eq.s32.totalorder %s22, 1
      %p150 = por %p148, %p149
      %p152 = scmp.ne.s32.totalorder %s137, %s151
      %p153 = scmp.eq.s32.totalorder %s22, 0
      %p154 = por %p152, %p153
      %s156 = sadd.s32 %s155, 1
      %p159 = scmp.eq.s32.totalorder %s16, 1
      %p160 = scmp.ne.s32.totalorder %s155, %s157
      %p161 = scmp.eq.s32.totalorder %s16, 0
      %p162 = por %p160, %p161
      %p163 = scmp.ne.s32.totalorder %s155, %s157
      %p164 = scmp.eq.s32.totalorder %s21, 1
      %p165 = por %p163, %p164
      %p166 = scmp.ne.s32.totalorder %s157, %s158
      %p167 = scmp.eq.s32.totalorder %s21, 0
      %p168 = por %p166, %p167
      %p169 = scmp.ne.s32.totalorder %s157, %s158
      %p170 = scmp.eq.s32.totalorder %s22, 1
      %p171 = por %p169, %p170
      %p173 = scmp.ne.s32.totalorder %s158, %s172
      %p174 = scmp.eq.s32.totalorder %s22, 0
      %p175 = por %p173, %p174
      %s176 = ssub.s32 %s16, %s23
      %p177 = scmp.eq.s32.totalorder %s176, 0
      %s179 = sadd.s32 %s178, 1
      %s180 = scalar_select %p177, %s178, %s179
      %p183 = pneg %p177
      %p184 = scmp.eq.s32.totalorder %s16, 1
      %p185 = por %p183, %p184
      %p186 = scmp.ne.s32.totalorder %s178, %s181
      %p187 = scmp.eq.s32.totalorder %s16, 0
      %p188 = por %p186, %p187
      %p189 = scmp.ne.s32.totalorder %s178, %s181
      %p190 = scmp.eq.s32.totalorder %s21, 1
      %p191 = por %p189, %p190
      %p192 = scmp.ne.s32.totalorder %s181, %s182
      %p193 = scmp.eq.s32.totalorder %s21, 0
      %p194 = por %p192, %p193
      %p195 = scmp.ne.s32.totalorder %s181, %s182
      %p196 = scmp.eq.s32.totalorder %s22, 1
      %p197 = por %p195, %p196
      %p199 = scmp.ne.s32.totalorder %s182, %s198
      %p200 = scmp.eq.s32.totalorder %s22, 0
      %p201 = por %p199, %p200
      %p202 = scmp.le.s32.totalorder 1, %s16
      %p203 = scmp.lt.s32.totalorder %s16, 3
      %p204 = pnand %p202, %p203
      %p205 = pneg %p204
      // Predicated region
      $region9: #{transformer_encoder_forward.9} parent=5 // pred_check
        _
      $region10: #{transformer_encoder_forward.9} parent=5 // pred_check_branch
        %207 = sbr.rel (%p204) target = $region12
      $region11: #{transformer_encoder_forward.9} parent=5 // pred_region
        %s208 = ssub.s32 %s16, 1
        // Predicated region
        $region13: #{transformer_encoder_forward.9} parent=11 // pred_check
          %p209 = pneg %p63
        $region14: #{transformer_encoder_forward.9} parent=11 // pred_check_branch
          %211 = sbr.rel (%p209) target = $region16
        $region15: #{transformer_encoder_forward.9} parent=11 // pred_region
          _
        $region16: #{transformer_encoder_forward.9} parent=11 // pred_fallthru
          _
        // Predicated region
        $region17: #{transformer_encoder_forward.9} parent=11 // pred_check
          %p212 = pneg %p84
        $region18: #{transformer_encoder_forward.9} parent=11 // pred_check_branch
          %214 = sbr.rel (%p212) target = $region20
        $region19: #{transformer_encoder_forward.9} parent=11 // pred_region
          _
        $region20: #{transformer_encoder_forward.9} parent=11 // pred_fallthru
          _
        // Predicated region
        $region21: #{transformer_encoder_forward.9} parent=11 // pred_check
          %p215 = pneg %p105
        $region22: #{transformer_encoder_forward.9} parent=11 // pred_check_branch
          %217 = sbr.rel (%p215) target = $region24
        $region23: #{transformer_encoder_forward.9} parent=11 // pred_region
          _
        $region24: #{transformer_encoder_forward.9} parent=11 // pred_fallthru
          _
        // Predicated region
        $region25: #{transformer_encoder_forward.9} parent=11 // pred_check
          %p218 = pneg %p126
        $region26: #{transformer_encoder_forward.9} parent=11 // pred_check_branch
          %220 = sbr.rel (%p218) target = $region28
        $region27: #{transformer_encoder_forward.9} parent=11 // pred_region
          _
        $region28: #{transformer_encoder_forward.9} parent=11 // pred_fallthru
          _
        // Predicated region
        $region29: #{transformer_encoder_forward.9} parent=11 // pred_check
          %p221 = pneg %p147
        $region30: #{transformer_encoder_forward.9} parent=11 // pred_check_branch
          %223 = sbr.rel (%p221) target = $region32
        $region31: #{transformer_encoder_forward.9} parent=11 // pred_region
          _
        $region32: #{transformer_encoder_forward.9} parent=11 // pred_fallthru
          _
        // Predicated region
        $region33: #{transformer_encoder_forward.9} parent=11 // pred_check
          %p224 = pneg %p168
        $region34: #{transformer_encoder_forward.9} parent=11 // pred_check_branch
          %226 = sbr.rel (%p224) target = $region36
        $region35: #{transformer_encoder_forward.9} parent=11 // pred_region
          _
        $region36: #{transformer_encoder_forward.9} parent=11 // pred_fallthru
          _
      $region12: #{transformer_encoder_forward.9} parent=5 // pred_fallthru
        _
      %p227 = scmp.lt.s32.totalorder %s16, 2
      // Predicated region
      $region37: #{transformer_encoder_forward.9} parent=5 // pred_check
        %p228 = pneg %p227
      $region38: #{transformer_encoder_forward.9} parent=5 // pred_check_branch
        %230 = sbr.rel (%p228) target = $region40
      $region39: #{transformer_encoder_forward.9} parent=5 // pred_region
        // Predicated region
        $region41: #{transformer_encoder_forward.9} parent=39 // pred_check
          %p231 = pneg %p36
        $region42: #{transformer_encoder_forward.9} parent=39 // pred_check_branch
          %233 = sbr.rel (%p231) target = $region44
        $region43: #{transformer_encoder_forward.9} parent=39 // pred_region
          %s234 = smul.u32 4, %s16
          %p235 = scmp.lt.s32.totalorder %s234, 7
          %s236 = scalar_select %p235, %s234, 7
          %s237 = smul.addr %s236, 8
          %s238 = scalar_lea.vmem %s0, %s237
          %s239 = smul.u32 4, %s16
        $region44: #{transformer_encoder_forward.9} parent=39 // pred_fallthru
          _
      $region40: #{transformer_encoder_forward.9} parent=5 // pred_fallthru
        _
      %p240 = scmp.le.s32.totalorder 1, %s16
      %p241 = scmp.lt.s32.totalorder %s16, 3
      %p242 = pnand %p240, %p241
      %p243 = pneg %p242
      // Predicated region
      $region45: #{transformer_encoder_forward.9} parent=5 // pred_check
        _
      $region46: #{transformer_encoder_forward.9} parent=5 // pred_check_branch
        %245 = sbr.rel (%p242) target = $region48
      $region47: #{transformer_encoder_forward.9} parent=5 // pred_region
        %s246 = ssub.s32 %s16, 1
        %s247 = smul.u32 4, %s21
        %p248 = scmp.lt.s32.totalorder %s247, 7
        %s249 = scalar_select %p248, %s247, 7
        %s250 = smul.addr %s249, 8
        %s251 = scalar_lea.vmem %s0, %s250
        %p252 = pneg %p42
        %p253 = pneg %p39
        %p254 = pneg %p63
        %p255 = pneg %p60
        %p256 = pneg %p84
        %p257 = pneg %p81
        %p258 = pneg %p105
        %p259 = pneg %p102
        %p260 = pneg %p126
        %p261 = pneg %p123
        %p262 = pneg %p147
        %p263 = pneg %p144
        %p264 = pneg %p168
        %p265 = pneg %p165
        %p266 = pneg %p194
        %p267 = pneg %p191
        %s268 = sand.u32 %s181, 1
        %s269 = scalar_lea.sflag [#allocation3], %s268
        %s270 = sand.u32 %s181, 1
        %s271 = smul.addr %s270, 32
        %s272 = scalar_lea.vmem [#allocation2], %s271
        %s273 = smul.u32 4, %s21
        %p274 = scmp.lt.s32.totalorder %s273, 7
        %s275 = scalar_select %p274, %s273, 7
        %s276 = smul.addr %s275, 8
        %s277 = scalar_lea.vmem %s0, %s276
        %s278 = smul.u32 4, %s21
        %s279 = smul.u32 4, %s21
        %v280 = vld [vmem:[%s277] sm:$0xff]
        %v281 = vld [vmem:[%s277 + $0x8] sm:$0xff]
        %v282 = vld [vmem:[%s277 + $0x10] sm:$0xff]
        %v283 = vld [vmem:[%s277 + $0x18] sm:$0xff]
        %v284 = vld [vmem:[%s1] sm:$0xff]
        %v285 = vld [vmem:[%s1 + $0x8] sm:$0xff]
        %v286 = vld [vmem:[%s1 + $0x10] sm:$0xff]
        %v287 = vld [vmem:[%s1 + $0x18] sm:$0xff]
        %v288 = vld [vmem:[%s1 + $0x20] sm:$0xff]
        %v289 = vld [vmem:[%s1 + $0x28] sm:$0xff]
        %v290 = vld [vmem:[%s1 + $0x30] sm:$0xff]
        %v291 = vld [vmem:[%s1 + $0x38] sm:$0xff]
        %v292 = vld [vmem:[%s1 + $0x40] sm:$0xff]
        %v293 = vld [vmem:[%s1 + $0x48] sm:$0xff]
        %v294 = vld [vmem:[%s1 + $0x50] sm:$0xff]
        %v295 = vld [vmem:[%s1 + $0x58] sm:$0xff]
        %v296 = vld [vmem:[%s1 + $0x60] sm:$0xff]
        %v297 = vld [vmem:[%s1 + $0x68] sm:$0xff]
        %v298 = vld [vmem:[%s1 + $0x70] sm:$0xff]
        %v299 = vld [vmem:[%s1 + $0x78] sm:$0xff]
        %v300 = vld [vmem:[%s1 + $0x80] sm:$0xff]
        %v301 = vld [vmem:[%s1 + $0x88] sm:$0xff]
        %v302 = vld [vmem:[%s1 + $0x90] sm:$0xff]
        %v303 = vld [vmem:[%s1 + $0x98] sm:$0xff]
        %v304 = vld [vmem:[%s1 + $0xa0] sm:$0xff]
        %v305 = vld [vmem:[%s1 + $0xa8] sm:$0xff]
        %v306 = vld [vmem:[%s1 + $0xb0] sm:$0xff]
        %v307 = vld [vmem:[%s1 + $0xb8] sm:$0xff]
        %v308 = vld [vmem:[%s1 + $0xc0] sm:$0xff]
        %v309 = vld [vmem:[%s1 + $0xc8] sm:$0xff]
        %v310 = vld [vmem:[%s1 + $0xd0] sm:$0xff]
        %v311 = vld [vmem:[%s1 + $0xd8] sm:$0xff]
        %v312 = vld [vmem:[%s1 + $0xe0] sm:$0xff]
        %v313 = vld [vmem:[%s1 + $0xe8] sm:$0xff]
        %v314 = vld [vmem:[%s1 + $0xf0] sm:$0xff]
        %v315 = vld [vmem:[%s1 + $0xf8] sm:$0xff]
        %v316 = vld [vmem:[%s2] sm:$0x3]
        %v318 = vlaneseq
        %v319 = vshrl.u32 %v318, 7
        %v320 = vsub.s32 0, %v319
        %v321 = vrot.slane %v316, %v320
        %v322 = vlaneseq
        %v323 = vshrl.u32 %v322, 7
        %v324 = vsub.s32 1, %v323
        %v325 = vrot.slane %v316, %v324
        %328 = vmatprep.subr.mxu0 %v285
        %329 = vmatpush1.msra.mxu0 %v284
        %330 = vmatprep.subr.mxu0 %v287
        %331 = vmatpush1.msra.mxu0 %v286
        %332 = vmatprep.subr.mxu0 %v289
        %333 = vmatpush1.msra.mxu0 %v288
        %334 = vmatprep.subr.mxu0 %v291
        %335 = vmatpush1.msra.mxu0 %v290
        %336 = vmatprep.subr.mxu0 %v293
        %337 = vmatpush1.msra.mxu0 %v292
        %338 = vmatprep.subr.mxu0 %v295
        %339 = vmatpush1.msra.mxu0 %v294
        %340 = vmatprep.subr.mxu0 %v297
        %341 = vmatpush1.msra.mxu0 %v296
        %342 = vmatprep.subr.mxu0 %v299
        %343 = vmatpush1.msra.mxu0 %v298
        %344 = vmatprep.subr.mxu0 %v301
        %345 = vmatpush1.msra.mxu0 %v300
        %346 = vmatprep.subr.mxu0 %v303
        %347 = vmatpush1.msra.mxu0 %v302
        %348 = vmatprep.subr.mxu0 %v305
        %349 = vmatpush1.msra.mxu0 %v304
        %350 = vmatprep.subr.mxu0 %v307
        %351 = vmatpush1.msra.mxu0 %v306
        %352 = vmatprep.subr.mxu0 %v309
        %353 = vmatpush1.msra.mxu0 %v308
        %354 = vmatprep.subr.mxu0 %v311
        %355 = vmatpush1.msra.mxu0 %v310
        %356 = vmatprep.subr.mxu0 %v313
        %357 = vmatpush1.msra.mxu0 %v312
        %358 = vmatprep.subr.mxu0 %v315
        %359 = vmatpush1.msra.mxu0 %v314
        %360 = vmatprep.subr.mxu0 0.0
        %361 = vmatpush1.msra.mxu0 0.0
        %362 = vmatprep.subr.mxu0 0.0
        %363 = vmatpush1.msra.mxu0 0.0
        %364 = vmatprep.subr.mxu0 0.0
        %365 = vmatpush1.msra.mxu0 0.0
        %366 = vmatprep.subr.mxu0 0.0
        %367 = vmatpush1.msra.mxu0 0.0
        %368 = vmatprep.subr.mxu0 0.0
        %369 = vmatpush1.msra.mxu0 0.0
        %370 = vmatprep.subr.mxu0 0.0
        %371 = vmatpush1.msra.mxu0 0.0
        %372 = vmatprep.subr.mxu0 0.0
        %373 = vmatpush1.msra.mxu0 0.0
        %374 = vmatprep.subr.mxu0 0.0
        %375 = vmatpush1.msra.mxu0 0.0
        %376 = vmatprep.subr.mxu0 0.0
        %377 = vmatpush1.msra.mxu0 0.0
        %378 = vmatprep.subr.mxu0 0.0
        %379 = vmatpush1.msra.mxu0 0.0
        %380 = vmatprep.subr.mxu0 0.0
        %381 = vmatpush1.msra.mxu0 0.0
        %382 = vmatprep.subr.mxu0 0.0
        %383 = vmatpush1.msra.mxu0 0.0
        %384 = vmatprep.subr.mxu0 0.0
        %385 = vmatpush1.msra.mxu0 0.0
        %386 = vmatprep.subr.mxu0 0.0
        %387 = vmatpush1.msra.mxu0 0.0
        %388 = vmatprep.subr.mxu0 0.0
        %389 = vmatpush1.msra.mxu0 0.0
        %390 = vmatprep.subr.mxu0 0.0
        %391 = vmatpush1.msra.mxu0 0.0
        %392 = vmatprep.mubr.f32.mxu0 0.0
        %393 = vmatmul.mubr.f32.gmra.mrb[0].mxu0 %v280
        %v394 = vpop.f32.mrb[0].mxu0
        %v395 = vadd.f32 %v321, %v394
        %v396 = vpop.f32.mrb[0].mxu0
        %v397 = vadd.f32 %v325, %v396
        %398 = vmatprep.mubr.f32.mxu0 0.0
        %399 = vmatmul.mubr.f32.gmra.mrb[0].mxu0 %v281
        %v400 = vpop.f32.mrb[0].mxu0
        %v401 = vadd.f32 %v321, %v400
        %v402 = vpop.f32.mrb[0].mxu0
        %v403 = vadd.f32 %v325, %v402
        %404 = vmatprep.mubr.f32.mxu0 0.0
        %405 = vmatmul.mubr.f32.gmra.mrb[0].mxu0 %v282
        %v406 = vpop.f32.mrb[0].mxu0
        %v407 = vadd.f32 %v321, %v406
        %v408 = vpop.f32.mrb[0].mxu0
        %v409 = vadd.f32 %v325, %v408
        %410 = vmatprep.mubr.f32.mxu0 0.0
        %411 = vmatmul.mubr.f32.gmra.mrb[0].mxu0 %v283
        %v412 = vpop.f32.mrb[0].mxu0
        %v413 = vadd.f32 %v321, %v412
        %v414 = vpop.f32.mrb[0].mxu0
        %v415 = vadd.f32 %v325, %v414
        %416 = vdwg.mxu0
        %v417 = vmax.f32 %v395, 0.0
        %v418 = vmax.f32 %v397, 0.0
        %v419 = vmax.f32 %v401, 0.0
        %v420 = vmax.f32 %v403, 0.0
        %v421 = vmax.f32 %v407, 0.0
        %v422 = vmax.f32 %v409, 0.0
        %v423 = vmax.f32 %v413, 0.0
        %v424 = vmax.f32 %v415, 0.0
        %v425 = vld [vmem:[%s3] sm:$0xff]
        %v426 = vld [vmem:[%s3 + $0x8] sm:$0xff]
        %v427 = vld [vmem:[%s3 + $0x10] sm:$0xff]
        %v428 = vld [vmem:[%s3 + $0x18] sm:$0xff]
        %v429 = vld [vmem:[%s3 + $0x20] sm:$0xff]
        %v430 = vld [vmem:[%s3 + $0x28] sm:$0xff]
        %v431 = vld [vmem:[%s3 + $0x30] sm:$0xff]
        %v432 = vld [vmem:[%s3 + $0x38] sm:$0xff]
        %v433 = vld [vmem:[%s3 + $0x40] sm:$0xff]
        %v434 = vld [vmem:[%s3 + $0x48] sm:$0xff]
        %v435 = vld [vmem:[%s3 + $0x50] sm:$0xff]
        %v436 = vld [vmem:[%s3 + $0x58] sm:$0xff]
        %v437 = vld [vmem:[%s3 + $0x60] sm:$0xff]
        %v438 = vld [vmem:[%s3 + $0x68] sm:$0xff]
        %v439 = vld [vmem:[%s3 + $0x70] sm:$0xff]
        %v440 = vld [vmem:[%s3 + $0x78] sm:$0xff]
        %v441 = vld [vmem:[%s3 + $0x80] sm:$0xff]
        %v442 = vld [vmem:[%s3 + $0x88] sm:$0xff]
        %v443 = vld [vmem:[%s3 + $0x90] sm:$0xff]
        %v444 = vld [vmem:[%s3 + $0x98] sm:$0xff]
        %v445 = vld [vmem:[%s3 + $0xa0] sm:$0xff]
        %v446 = vld [vmem:[%s3 + $0xa8] sm:$0xff]
        %v447 = vld [vmem:[%s3 + $0xb0] sm:$0xff]
        %v448 = vld [vmem:[%s3 + $0xb8] sm:$0xff]
        %v449 = vld [vmem:[%s3 + $0xc0] sm:$0xff]
        %v450 = vld [vmem:[%s3 + $0xc8] sm:$0xff]
        %v451 = vld [vmem:[%s3 + $0xd0] sm:$0xff]
        %v452 = vld [vmem:[%s3 + $0xd8] sm:$0xff]
        %v453 = vld [vmem:[%s3 + $0xe0] sm:$0xff]
        %v454 = vld [vmem:[%s3 + $0xe8] sm:$0xff]
        %v455 = vld [vmem:[%s3 + $0xf0] sm:$0xff]
        %v456 = vld [vmem:[%s3 + $0xf8] sm:$0xff]
        %v457 = vld [vmem:[%s4] sm:$0x1]
        %v459 = vlaneseq
        %v460 = vshrl.u32 %v459, 7
        %v461 = vsub.s32 0, %v460
        %v462 = vrot.slane %v457, %v461
        %464 = vmatprep.subr.mxu0 0.0
        %465 = vmatpush1.msra.mxu0 %v425
        %466 = vmatprep.subr.mxu0 0.0
        %467 = vmatpush1.msra.mxu0 %v426
        %468 = vmatprep.subr.mxu0 0.0
        %469 = vmatpush1.msra.mxu0 %v427
        %470 = vmatprep.subr.mxu0 0.0
        %471 = vmatpush1.msra.mxu0 %v428
        %472 = vmatprep.subr.mxu0 0.0
        %473 = vmatpush1.msra.mxu0 %v429
        %474 = vmatprep.subr.mxu0 0.0
        %475 = vmatpush1.msra.mxu0 %v430
        %476 = vmatprep.subr.mxu0 0.0
        %477 = vmatpush1.msra.mxu0 %v431
        %478 = vmatprep.subr.mxu0 0.0
        %479 = vmatpush1.msra.mxu0 %v432
        %480 = vmatprep.subr.mxu0 0.0
        %481 = vmatpush1.msra.mxu0 %v433
        %482 = vmatprep.subr.mxu0 0.0
        %483 = vmatpush1.msra.mxu0 %v434
        %484 = vmatprep.subr.mxu0 0.0
        %485 = vmatpush1.msra.mxu0 %v435
        %486 = vmatprep.subr.mxu0 0.0
        %487 = vmatpush1.msra.mxu0 %v436
        %488 = vmatprep.subr.mxu0 0.0
        %489 = vmatpush1.msra.mxu0 %v437
        %490 = vmatprep.subr.mxu0 0.0
        %491 = vmatpush1.msra.mxu0 %v438
        %492 = vmatprep.subr.mxu0 0.0
        %493 = vmatpush1.msra.mxu0 %v439
        %494 = vmatprep.subr.mxu0 0.0
        %495 = vmatpush1.msra.mxu0 %v440
        %496 = vmatprep.subr.mxu0 0.0
        %497 = vmatpush1.msra.mxu0 %v441
        %498 = vmatprep.subr.mxu0 0.0
        %499 = vmatpush1.msra.mxu0 %v442
        %500 = vmatprep.subr.mxu0 0.0
        %501 = vmatpush1.msra.mxu0 %v443
        %502 = vmatprep.subr.mxu0 0.0
        %503 = vmatpush1.msra.mxu0 %v444
        %504 = vmatprep.subr.mxu0 0.0
        %505 = vmatpush1.msra.mxu0 %v445
        %506 = vmatprep.subr.mxu0 0.0
        %507 = vmatpush1.msra.mxu0 %v446
        %508 = vmatprep.subr.mxu0 0.0
        %509 = vmatpush1.msra.mxu0 %v447
        %510 = vmatprep.subr.mxu0 0.0
        %511 = vmatpush1.msra.mxu0 %v448
        %512 = vmatprep.subr.mxu0 0.0
        %513 = vmatpush1.msra.mxu0 %v449
        %514 = vmatprep.subr.mxu0 0.0
        %515 = vmatpush1.msra.mxu0 %v450
        %516 = vmatprep.subr.mxu0 0.0
        %517 = vmatpush1.msra.mxu0 %v451
        %518 = vmatprep.subr.mxu0 0.0
        %519 = vmatpush1.msra.mxu0 %v452
        %520 = vmatprep.subr.mxu0 0.0
        %521 = vmatpush1.msra.mxu0 %v453
        %522 = vmatprep.subr.mxu0 0.0
        %523 = vmatpush1.msra.mxu0 %v454
        %524 = vmatprep.subr.mxu0 0.0
        %525 = vmatpush1.msra.mxu0 %v455
        %526 = vmatprep.subr.mxu0 0.0
        %527 = vmatpush1.msra.mxu0 %v456
        %528 = vmatprep.mubr.f32.mxu0 %v418
        %529 = vmatmul.mubr.f32.gmra.mrb[0].mxu0 %v417
        %v530 = vpop.f32.mrb[0].mxu0
        %v531 = vadd.f32 %v462, %v530
        %v532 = vpop.f32.mrb[0].mxu0
        %533 = vmatprep.mubr.f32.mxu0 %v420
        %534 = vmatmul.mubr.f32.gmra.mrb[0].mxu0 %v419
        %v535 = vpop.f32.mrb[0].mxu0
        %v536 = vadd.f32 %v462, %v535
        %v537 = vpop.f32.mrb[0].mxu0
        %538 = vmatprep.mubr.f32.mxu0 %v422
        %539 = vmatmul.mubr.f32.gmra.mrb[0].mxu0 %v421
        %v540 = vpop.f32.mrb[0].mxu0
        %v541 = vadd.f32 %v462, %v540
        %v542 = vpop.f32.mrb[0].mxu0
        %543 = vmatprep.mubr.f32.mxu0 %v424
        %544 = vmatmul.mubr.f32.gmra.mrb[0].mxu0 %v423
        %v545 = vpop.f32.mrb[0].mxu0
        %v546 = vadd.f32 %v462, %v545
        %v547 = vpop.f32.mrb[0].mxu0
        %548 = vdwg.mxu0
        %v549 = vadd.f32 %v531, %v280
        %v550 = vadd.f32 %v536, %v281
        %v551 = vadd.f32 %v541, %v282
        %v552 = vadd.f32 %v546, %v283
        %553 = vadd.xlane.f32.xlu0 %v549
        %v554 = vpop.xlane.xlu0 %553
        %555 = vadd.xlane.f32.xlu0 %v550
        %v556 = vpop.xlane.xlu0 %555
        %557 = vadd.xlane.f32.xlu0 %v551
        %v558 = vpop.xlane.xlu0 %557
        %559 = vadd.xlane.f32.xlu0 %v552
        %v560 = vpop.xlane.xlu0 %559
        %v561 = vrcp.pop 128.0
        %v562 = vmul.f32 %v554, %v561
        %v563 = vmul.f32 %v556, %v561
        %v564 = vmul.f32 %v558, %v561
        %v565 = vmul.f32 %v560, %v561
        %v566 = vsub.f32 %v549, %v562
        %v567 = vsub.f32 %v550, %v563
        %v568 = vsub.f32 %v551, %v564
        %v569 = vsub.f32 %v552, %v565
        %v570 = vmul.f32 %v566, %v566
        %v571 = vmul.f32 %v567, %v567
        %v572 = vmul.f32 %v568, %v568
        %v573 = vmul.f32 %v569, %v569
        %574 = vadd.xlane.f32.xlu0 %v570
        %v575 = vpop.xlane.xlu0 %574
        %576 = vadd.xlane.f32.xlu0 %v571
        %v577 = vpop.xlane.xlu0 %576
        %578 = vadd.xlane.f32.xlu0 %v572
        %v579 = vpop.xlane.xlu0 %578
        %580 = vadd.xlane.f32.xlu0 %v573
        %v581 = vpop.xlane.xlu0 %580
        %v582 = vmul.f32 %v575, %v561
        %v583 = vmul.f32 %v577, %v561
        %v584 = vmul.f32 %v579, %v561
        %v585 = vmul.f32 %v581, %v561
        %v586 = vadd.f32 %v582, 1e-05
        %v587 = vadd.f32 %v583, 1e-05
        %v588 = vadd.f32 %v584, 1e-05
        %v589 = vadd.f32 %v585, 1e-05
        %v590 = vrsqrt.pop %v586
        %v591 = vrsqrt.pop %v587
        %v592 = vrsqrt.pop %v588
        %v593 = vrsqrt.pop %v589
        %v594 = vmul.f32 %v566, %v590
        %v595 = vmul.f32 %v567, %v591
        %v596 = vmul.f32 %v568, %v592
        %v597 = vmul.f32 %v569, %v593
        %v598 = vld [vmem:[%s5] sm:$0x1]
        %v600 = vlaneseq
        %v601 = vshrl.u32 %v600, 7
        %v602 = vsub.s32 0, %v601
        %v603 = vrot.slane %v598, %v602
        %v605 = vmul.f32 %v594, %v603
        %v606 = vmul.f32 %v595, %v603
        %v607 = vmul.f32 %v596, %v603
        %v608 = vmul.f32 %v597, %v603
        %v609 = vld [vmem:[%s6] sm:$0x1]
        %v611 = vlaneseq
        %v612 = vshrl.u32 %v611, 7
        %v613 = vsub.s32 0, %v612
        %v614 = vrot.slane %v609, %v613
        %v616 = vadd.f32 %v605, %v614
        %v617 = vadd.f32 %v606, %v614
        %v618 = vadd.f32 %v607, %v614
        %v619 = vadd.f32 %v608, %v614
        %620 = vst [vmem:[%s272] sm:$0xff] %v616
        %621 = vst [vmem:[%s272 + $0x8] sm:$0xff] %v617
        %622 = vst [vmem:[%s272 + $0x10] sm:$0xff] %v618
        %623 = vst [vmem:[%s272 + $0x18] sm:$0xff] %v619
        %s624 = sand.u32 %s181, 1
        %s625 = scalar_lea.sflag [#allocation3], %s624
        %s626 = sand.u32 %s181, 1
        %s627 = smul.addr %s626, 32
        %s628 = scalar_lea.vmem [#allocation2], %s627
        // Predicated region
        $region49: #{transformer_encoder_forward.9} parent=47 // pred_check
          %p629 = pneg %p191
        $region50: #{transformer_encoder_forward.9} parent=47 // pred_check_branch
          %631 = sbr.rel (%p629) target = $region52
        $region51: #{transformer_encoder_forward.9} parent=47 // pred_region
          %s632 = smul.u32 4, %s21
          %s634 = ssub.s32 512, 512
          %635 = vsyncadd %s625, %s634
          %s636 = smul.addr %s632, 128
          %s637 = scalar_lea.hbm %s7, %s636
          %s638 = sshll.u32 %s628, 4
          %s639 = int_to_ptr.vmem [resolvable:$true] %s638
          %644 = dma.vmem_to_hbm [thread:$0]  %s639, 512, %s637, %s625, 128, 128, 8
        $region52: #{transformer_encoder_forward.9} parent=47 // pred_fallthru
          _
      $region48: #{transformer_encoder_forward.9} parent=5 // pred_fallthru
        _
      %p645 = scmp.le.s32.totalorder 2, %s16
      // Predicated region
      $region53: #{transformer_encoder_forward.9} parent=5 // pred_check
        %p646 = pneg %p645
      $region54: #{transformer_encoder_forward.9} parent=5 // pred_check_branch
        %648 = sbr.rel (%p646) target = $region56
      $region55: #{transformer_encoder_forward.9} parent=5 // pred_region
        %s649 = ssub.s32 %s16, 2
        // Predicated region
        $region57: #{transformer_encoder_forward.9} parent=55 // pred_check
          %p650 = pneg %p197
        $region58: #{transformer_encoder_forward.9} parent=55 // pred_check_branch
          %652 = sbr.rel (%p650) target = $region60
        $region59: #{transformer_encoder_forward.9} parent=55 // pred_region
          %s653 = sand.u32 %s182, 1
          %s654 = scalar_lea.sflag [#allocation3], %s653
          %s655 = sand.u32 %s182, 1
          %s656 = smul.addr %s655, 32
          %s657 = scalar_lea.vmem [#allocation2], %s656
          %658 = dma.done %s654, 512
        $region60: #{transformer_encoder_forward.9} parent=55 // pred_fallthru
          _
      $region56: #{transformer_encoder_forward.9} parent=5 // pred_fallthru
        _
    $region6: #{transformer_encoder_forward.9} parent=1 // loop_footer
      %s20 = sadd.s32 1, %s16
    $region7: #{transformer_encoder_forward.9} parent=1 // loop_footer_branch
      %15 = sbr.rel target = $region3
    $region8: #{transformer_encoder_forward.9} parent=1 // loop_exit
      _
    %659 = vsyncpa [#allocation3], 1
    %s660 = scalar_lea.sflag [#allocation3], 1
    %661 = vsyncpa %s660, 1

// kernel: transformer_encoder_forward.7
$region0: #{transformer_encoder_forward.7}
  #allocation0 [shape = 'u32[]', space=smem, size = 0x4, offset = 0x4, fixed_abs, tag = 'smem constant byte address 0x4 - core index']
  #allocation1 [shape = 'u32[144,128]{1,0:T(1,128)}', space=vmem, size = 0x12000, scoped, tag = 'internal scratch']
  %s0 = inlined_call_operand.vmem [shape: f32[64,128], index: 0, kind: input, shape index: {}]
  %s1 = inlined_call_operand.vmem [shape: f32[128,256], index: 1, kind: input, shape index: {}]
  %s2 = inlined_call_operand.vmem [shape: f32[1,256], index: 2, kind: input, shape index: {}]
  %s3 = inlined_call_operand.vmem [shape: f32[256,128], index: 3, kind: input, shape index: {}]
  %s4 = inlined_call_operand.vmem [shape: f32[1,128], index: 4, kind: input, shape index: {}]
  %s5 = inlined_call_operand.vmem [shape: f32[1,128], index: 5, kind: input, shape index: {}]
  %s6 = inlined_call_operand.vmem [shape: f32[1,128], index: 6, kind: input, shape index: {}]
  %s7 = inlined_call_operand.vmem [shape: f32[64,128], index: 7, kind: output, shape index: {}]
  %s8 = sld [smem:[#allocation0]]
  $region61: #{transformer_encoder_forward.7} parent=0
    _
  %s10 = ssub.s32 1, %s8
  %s11 = scalar_select 0, %s10, %s8
  loop: start=0, step=1, limit=4
  $region2: #{transformer_encoder_forward.7} parent=0 // loop_pre_header
    _
  $region3: #{transformer_encoder_forward.7} parent=0 // loop_header
    %s13 = sphi 0, %s17
    %p14 = scmp.ge.s32.totalorder %s13, 4
    %s23 = sphi 0, %s25
    %s26 = sphi 0, %s23
    %s27 = sphi 0, %s26
    %s43 = sphi 0, %s27
    %s47 = sphi 0, %s47
    %s49 = sphi 0, %s47
    %s50 = sphi 0, %s49
    %s64 = sphi 0, %s50
    %s68 = sphi 0, %s68
    %s70 = sphi 0, %s68
    %s71 = sphi 0, %s70
    %s85 = sphi 0, %s71
    %s89 = sphi 0, %s89
    %s91 = sphi 0, %s89
    %s92 = sphi 0, %s91
    %s106 = sphi 0, %s92
    %s110 = sphi 0, %s110
    %s112 = sphi 0, %s110
    %s113 = sphi 0, %s112
    %s127 = sphi 0, %s113
    %s131 = sphi 0, %s131
    %s133 = sphi 0, %s131
    %s134 = sphi 0, %s133
    %s148 = sphi 0, %s134
    %s152 = sphi 0, %s152
    %s154 = sphi 0, %s152
    %s155 = sphi 0, %s154
    %s169 = sphi 0, %s155
    %s175 = sphi 0, %s177
    %s178 = sphi 0, %s175
    %s179 = sphi 0, %s178
    %s195 = sphi 0, %s179
  $region4: #{transformer_encoder_forward.7} parent=0 // loop_header_branch
    %16 = sbr.rel (%p14) target = $region8
  $region5: #{transformer_encoder_forward.7} parent=0 // loop_body
    %s18 = ssub.s32 %s13, 1
    %s19 = ssub.s32 %s13, 2
    %s20 = sadd.s32 %s13, 1
    %s21 = ssub.s32 %s13, %s20
    %p22 = scmp.eq.s32.totalorder %s21, 0
    %s24 = sadd.s32 %s23, 1
    %s25 = scalar_select %p22, %s23, %s24
    %p28 = pneg %p22
    %p29 = scmp.eq.s32.totalorder %s13, 1
    %p30 = por %p28, %p29
    %p31 = scmp.ne.s32.totalorder %s23, %s26
    %p32 = scmp.eq.s32.totalorder %s13, 0
    %p33 = por %p31, %p32
    %p34 = scmp.ne.s32.totalorder %s23, %s26
    %p35 = scmp.eq.s32.totalorder %s18, 1
    %p36 = por %p34, %p35
    %p37 = scmp.ne.s32.totalorder %s26, %s27
    %p38 = scmp.eq.s32.totalorder %s18, 0
    %p39 = por %p37, %p38
    %p40 = scmp.ne.s32.totalorder %s26, %s27
    %p41 = scmp.eq.s32.totalorder %s19, 1
    %p42 = por %p40, %p41
    %p44 = scmp.ne.s32.totalorder %s27, %s43
    %p45 = scmp.eq.s32.totalorder %s19, 0
    %p46 = por %p44, %p45
    %s48 = sadd.s32 %s47, 1
    %p51 = scmp.eq.s32.totalorder %s13, 1
    %p52 = scmp.ne.s32.totalorder %s47, %s49
    %p53 = scmp.eq.s32.totalorder %s13, 0
    %p54 = por %p52, %p53
    %p55 = scmp.ne.s32.totalorder %s47, %s49
    %p56 = scmp.eq.s32.totalorder %s18, 1
    %p57 = por %p55, %p56
    %p58 = scmp.ne.s32.totalorder %s49, %s50
    %p59 = scmp.eq.s32.totalorder %s18, 0
    %p60 = por %p58, %p59
    %p61 = scmp.ne.s32.totalorder %s49, %s50
    %p62 = scmp.eq.s32.totalorder %s19, 1
    %p63 = por %p61, %p62
    %p65 = scmp.ne.s32.totalorder %s50, %s64
    %p66 = scmp.eq.s32.totalorder %s19, 0
    %p67 = por %p65, %p66
    %s69 = sadd.s32 %s68, 1
    %p72 = scmp.eq.s32.totalorder %s13, 1
    %p73 = scmp.ne.s32.totalorder %s68, %s70
    %p74 = scmp.eq.s32.totalorder %s13, 0
    %p75 = por %p73, %p74
    %p76 = scmp.ne.s32.totalorder %s68, %s70
    %p77 = scmp.eq.s32.totalorder %s18, 1
    %p78 = por %p76, %p77
    %p79 = scmp.ne.s32.totalorder %s70, %s71
    %p80 = scmp.eq.s32.totalorder %s18, 0
    %p81 = por %p79, %p80
    %p82 = scmp.ne.s32.totalorder %s70, %s71
    %p83 = scmp.eq.s32.totalorder %s19, 1
    %p84 = por %p82, %p83
    %p86 = scmp.ne.s32.totalorder %s71, %s85
    %p87 = scmp.eq.s32.totalorder %s19, 0
    %p88 = por %p86, %p87
    %s90 = sadd.s32 %s89, 1
    %p93 = scmp.eq.s32.totalorder %s13, 1
    %p94 = scmp.ne.s32.totalorder %s89, %s91
    %p95 = scmp.eq.s32.totalorder %s13, 0
    %p96 = por %p94, %p95
    %p97 = scmp.ne.s32.totalorder %s89, %s91
    %p98 = scmp.eq.s32.totalorder %s18, 1
    %p99 = por %p97, %p98
    %p100 = scmp.ne.s32.totalorder %s91, %s92
    %p101 = scmp.eq.s32.totalorder %s18, 0
    %p102 = por %p100, %p101
    %p103 = scmp.ne.s32.totalorder %s91, %s92
    %p104 = scmp.eq.s32.totalorder %s19, 1
    %p105 = por %p103, %p104
    %p107 = scmp.ne.s32.totalorder %s92, %s106
    %p108 = scmp.eq.s32.totalorder %s19, 0
    %p109 = por %p107, %p108
    %s111 = sadd.s32 %s110, 1
    %p114 = scmp.eq.s32.totalorder %s13, 1
    %p115 = scmp.ne.s32.totalorder %s110, %s112
    %p116 = scmp.eq.s32.totalorder %s13, 0
    %p117 = por %p115, %p116
    %p118 = scmp.ne.s32.totalorder %s110, %s112
    %p119 = scmp.eq.s32.totalorder %s18, 1
    %p120 = por %p118, %p119
    %p121 = scmp.ne.s32.totalorder %s112, %s113
    %p122 = scmp.eq.s32.totalorder %s18, 0
    %p123 = por %p121, %p122
    %p124 = scmp.ne.s32.totalorder %s112, %s113
    %p125 = scmp.eq.s32.totalorder %s19, 1
    %p126 = por %p124, %p125
    %p128 = scmp.ne.s32.totalorder %s113, %s127
    %p129 = scmp.eq.s32.totalorder %s19, 0
    %p130 = por %p128, %p129
    %s132 = sadd.s32 %s131, 1
    %p135 = scmp.eq.s32.totalorder %s13, 1
    %p136 = scmp.ne.s32.totalorder %s131, %s133
    %p137 = scmp.eq.s32.totalorder %s13, 0
    %p138 = por %p136, %p137
    %p139 = scmp.ne.s32.totalorder %s131, %s133
    %p140 = scmp.eq.s32.totalorder %s18, 1
    %p141 = por %p139, %p140
    %p142 = scmp.ne.s32.totalorder %s133, %s134
    %p143 = scmp.eq.s32.totalorder %s18, 0
    %p144 = por %p142, %p143
    %p145 = scmp.ne.s32.totalorder %s133, %s134
    %p146 = scmp.eq.s32.totalorder %s19, 1
    %p147 = por %p145, %p146
    %p149 = scmp.ne.s32.totalorder %s134, %s148
    %p150 = scmp.eq.s32.totalorder %s19, 0
    %p151 = por %p149, %p150
    %s153 = sadd.s32 %s152, 1
    %p156 = scmp.eq.s32.totalorder %s13, 1
    %p157 = scmp.ne.s32.totalorder %s152, %s154
    %p158 = scmp.eq.s32.totalorder %s13, 0
    %p159 = por %p157, %p158
    %p160 = scmp.ne.s32.totalorder %s152, %s154
    %p161 = scmp.eq.s32.totalorder %s18, 1
    %p162 = por %p160, %p161
    %p163 = scmp.ne.s32.totalorder %s154, %s155
    %p164 = scmp.eq.s32.totalorder %s18, 0
    %p165 = por %p163, %p164
    %p166 = scmp.ne.s32.totalorder %s154, %s155
    %p167 = scmp.eq.s32.totalorder %s19, 1
    %p168 = por %p166, %p167
    %p170 = scmp.ne.s32.totalorder %s155, %s169
    %p171 = scmp.eq.s32.totalorder %s19, 0
    %p172 = por %p170, %p171
    %s173 = ssub.s32 %s13, %s20
    %p174 = scmp.eq.s32.totalorder %s173, 0
    %s176 = sadd.s32 %s175, 1
    %s177 = scalar_select %p174, %s175, %s176
    %p180 = pneg %p174
    %p181 = scmp.eq.s32.totalorder %s13, 1
    %p182 = por %p180, %p181
    %p183 = scmp.ne.s32.totalorder %s175, %s178
    %p184 = scmp.eq.s32.totalorder %s13, 0
    %p185 = por %p183, %p184
    %p186 = scmp.ne.s32.totalorder %s175, %s178
    %p187 = scmp.eq.s32.totalorder %s18, 1
    %p188 = por %p186, %p187
    %p189 = scmp.ne.s32.totalorder %s178, %s179
    %p190 = scmp.eq.s32.totalorder %s18, 0
    %p191 = por %p189, %p190
    %p192 = scmp.ne.s32.totalorder %s178, %s179
    %p193 = scmp.eq.s32.totalorder %s19, 1
    %p194 = por %p192, %p193
    %p196 = scmp.ne.s32.totalorder %s179, %s195
    %p197 = scmp.eq.s32.totalorder %s19, 0
    %p198 = por %p196, %p197
    %p199 = scmp.le.s32.totalorder 1, %s13
    %p200 = scmp.lt.s32.totalorder %s13, 3
    %p201 = pnand %p199, %p200
    %p202 = pneg %p201
    // Predicated region
    $region9: #{transformer_encoder_forward.7} parent=5 // pred_check
      _
    $region10: #{transformer_encoder_forward.7} parent=5 // pred_check_branch
      %204 = sbr.rel (%p201) target = $region12
    $region11: #{transformer_encoder_forward.7} parent=5 // pred_region
      %s205 = ssub.s32 %s13, 1
      // Predicated region
      $region13: #{transformer_encoder_forward.7} parent=11 // pred_check
        %p206 = pneg %p60
      $region14: #{transformer_encoder_forward.7} parent=11 // pred_check_branch
        %208 = sbr.rel (%p206) target = $region16
      $region15: #{transformer_encoder_forward.7} parent=11 // pred_region
        _
      $region16: #{transformer_encoder_forward.7} parent=11 // pred_fallthru
        _
      // Predicated region
      $region17: #{transformer_encoder_forward.7} parent=11 // pred_check
        %p209 = pneg %p81
      $region18: #{transformer_encoder_forward.7} parent=11 // pred_check_branch
        %211 = sbr.rel (%p209) target = $region20
      $region19: #{transformer_encoder_forward.7} parent=11 // pred_region
        _
      $region20: #{transformer_encoder_forward.7} parent=11 // pred_fallthru
        _
      // Predicated region
      $region21: #{transformer_encoder_forward.7} parent=11 // pred_check
        %p212 = pneg %p102
      $region22: #{transformer_encoder_forward.7} parent=11 // pred_check_branch
        %214 = sbr.rel (%p212) target = $region24
      $region23: #{transformer_encoder_forward.7} parent=11 // pred_region
        _
      $region24: #{transformer_encoder_forward.7} parent=11 // pred_fallthru
        _
      // Predicated region
      $region25: #{transformer_encoder_forward.7} parent=11 // pred_check
        %p215 = pneg %p123
      $region26: #{transformer_encoder_forward.7} parent=11 // pred_check_branch
        %217 = sbr.rel (%p215) target = $region28
      $region27: #{transformer_encoder_forward.7} parent=11 // pred_region
        _
      $region28: #{transformer_encoder_forward.7} parent=11 // pred_fallthru
        _
      // Predicated region
      $region29: #{transformer_encoder_forward.7} parent=11 // pred_check
        %p218 = pneg %p144
      $region30: #{transformer_encoder_forward.7} parent=11 // pred_check_branch
        %220 = sbr.rel (%p218) target = $region32
      $region31: #{transformer_encoder_forward.7} parent=11 // pred_region
        _
      $region32: #{transformer_encoder_forward.7} parent=11 // pred_fallthru
        _
      // Predicated region
      $region33: #{transformer_encoder_forward.7} parent=11 // pred_check
        %p221 = pneg %p165
      $region34: #{transformer_encoder_forward.7} parent=11 // pred_check_branch
        %223 = sbr.rel (%p221) target = $region36
      $region35: #{transformer_encoder_forward.7} parent=11 // pred_region
        _
      $region36: #{transformer_encoder_forward.7} parent=11 // pred_fallthru
        _
    $region12: #{transformer_encoder_forward.7} parent=5 // pred_fallthru
      _
    %p224 = scmp.lt.s32.totalorder %s13, 2
    // Predicated region
    $region37: #{transformer_encoder_forward.7} parent=5 // pred_check
      %p225 = pneg %p224
    $region38: #{transformer_encoder_forward.7} parent=5 // pred_check_branch
      %227 = sbr.rel (%p225) target = $region40
    $region39: #{transformer_encoder_forward.7} parent=5 // pred_region
      // Predicated region
      $region41: #{transformer_encoder_forward.7} parent=39 // pred_check
        %p228 = pneg %p33
      $region42: #{transformer_encoder_forward.7} parent=39 // pred_check_branch
        %230 = sbr.rel (%p228) target = $region44
      $region43: #{transformer_encoder_forward.7} parent=39 // pred_region
        %s231 = smul.u32 4, %s13
        %p232 = scmp.lt.s32.totalorder %s231, 7
        %s233 = scalar_select %p232, %s231, 7
        %s234 = smul.addr %s233, 8
        %s235 = scalar_lea.vmem %s0, %s234
        %s236 = smul.u32 4, %s13
      $region44: #{transformer_encoder_forward.7} parent=39 // pred_fallthru
        _
    $region40: #{transformer_encoder_forward.7} parent=5 // pred_fallthru
      _
    %p237 = scmp.le.s32.totalorder 1, %s13
    %p238 = scmp.lt.s32.totalorder %s13, 3
    %p239 = pnand %p237, %p238
    %p240 = pneg %p239
    // Predicated region
    $region45: #{transformer_encoder_forward.7} parent=5 // pred_check
      _
    $region46: #{transformer_encoder_forward.7} parent=5 // pred_check_branch
      %242 = sbr.rel (%p239) target = $region48
    $region47: #{transformer_encoder_forward.7} parent=5 // pred_region
      %s243 = ssub.s32 %s13, 1
      %s244 = smul.u32 4, %s18
      %p245 = scmp.lt.s32.totalorder %s244, 7
      %s246 = scalar_select %p245, %s244, 7
      %s247 = smul.addr %s246, 8
      %s248 = scalar_lea.vmem %s0, %s247
      %p249 = pneg %p39
      %p250 = pneg %p36
      %p251 = pneg %p60
      %p252 = pneg %p57
      %p253 = pneg %p81
      %p254 = pneg %p78
      %p255 = pneg %p102
      %p256 = pneg %p99
      %p257 = pneg %p123
      %p258 = pneg %p120
      %p259 = pneg %p144
      %p260 = pneg %p141
      %p261 = pneg %p165
      %p262 = pneg %p162
      %p263 = pneg %p191
      %p264 = pneg %p188
      %s265 = smul.u32 4, %s18
      %p266 = scmp.lt.s32.totalorder %s265, 7
      %s267 = scalar_select %p266, %s265, 7
      %s268 = smul.addr %s267, 8
      %s269 = scalar_lea.vmem %s7, %s268
      %s270 = smul.u32 4, %s18
      %p271 = scmp.lt.s32.totalorder %s270, 7
      %s272 = scalar_select %p271, %s270, 7
      %s273 = smul.addr %s272, 8
      %s274 = scalar_lea.vmem %s0, %s273
      %s275 = smul.u32 4, %s18
      %s276 = smul.u32 4, %s18
      %p277 = scmp.lt.s32.totalorder %s276, 7
      %s278 = scalar_select %p277, %s276, 7
      %s279 = smul.addr %s278, 8
      %s280 = scalar_lea.vmem %s7, %s279
      %s281 = smul.u32 4, %s18
      %v282 = vld [vmem:[%s274] sm:$0xff]
      %v283 = vld [vmem:[%s274 + $0x8] sm:$0xff]
      %v284 = vld [vmem:[%s274 + $0x10] sm:$0xff]
      %v285 = vld [vmem:[%s274 + $0x18] sm:$0xff]
      %v286 = vld [vmem:[%s1] sm:$0xff]
      %v287 = vld [vmem:[%s1 + $0x8] sm:$0xff]
      %v288 = vld [vmem:[%s1 + $0x10] sm:$0xff]
      %v289 = vld [vmem:[%s1 + $0x18] sm:$0xff]
      %v290 = vld [vmem:[%s1 + $0x20] sm:$0xff]
      %v291 = vld [vmem:[%s1 + $0x28] sm:$0xff]
      %v292 = vld [vmem:[%s1 + $0x30] sm:$0xff]
      %v293 = vld [vmem:[%s1 + $0x38] sm:$0xff]
      %v294 = vld [vmem:[%s1 + $0x40] sm:$0xff]
      %v295 = vld [vmem:[%s1 + $0x48] sm:$0xff]
      %v296 = vld [vmem:[%s1 + $0x50] sm:$0xff]
      %v297 = vld [vmem:[%s1 + $0x58] sm:$0xff]
      %v298 = vld [vmem:[%s1 + $0x60] sm:$0xff]
      %v299 = vld [vmem:[%s1 + $0x68] sm:$0xff]
      %v300 = vld [vmem:[%s1 + $0x70] sm:$0xff]
      %v301 = vld [vmem:[%s1 + $0x78] sm:$0xff]
      %v302 = vld [vmem:[%s1 + $0x80] sm:$0xff]
      %v303 = vld [vmem:[%s1 + $0x88] sm:$0xff]
      %v304 = vld [vmem:[%s1 + $0x90] sm:$0xff]
      %v305 = vld [vmem:[%s1 + $0x98] sm:$0xff]
      %v306 = vld [vmem:[%s1 + $0xa0] sm:$0xff]
      %v307 = vld [vmem:[%s1 + $0xa8] sm:$0xff]
      %v308 = vld [vmem:[%s1 + $0xb0] sm:$0xff]
      %v309 = vld [vmem:[%s1 + $0xb8] sm:$0xff]
      %v310 = vld [vmem:[%s1 + $0xc0] sm:$0xff]
      %v311 = vld [vmem:[%s1 + $0xc8] sm:$0xff]
      %v312 = vld [vmem:[%s1 + $0xd0] sm:$0xff]
      %v313 = vld [vmem:[%s1 + $0xd8] sm:$0xff]
      %v314 = vld [vmem:[%s1 + $0xe0] sm:$0xff]
      %v315 = vld [vmem:[%s1 + $0xe8] sm:$0xff]
      %v316 = vld [vmem:[%s1 + $0xf0] sm:$0xff]
      %v317 = vld [vmem:[%s1 + $0xf8] sm:$0xff]
      %v318 = vld [vmem:[%s2] sm:$0x3]
      %v320 = vlaneseq
      %v321 = vshrl.u32 %v320, 7
      %v322 = vsub.s32 0, %v321
      %v323 = vrot.slane %v318, %v322
      %v324 = vlaneseq
      %v325 = vshrl.u32 %v324, 7
      %v326 = vsub.s32 1, %v325
      %v327 = vrot.slane %v318, %v326
      %330 = vmatprep.subr.mxu0 %v287
      %331 = vmatpush1.msra.mxu0 %v286
      %332 = vmatprep.subr.mxu0 %v289
      %333 = vmatpush1.msra.mxu0 %v288
      %334 = vmatprep.subr.mxu0 %v291
      %335 = vmatpush1.msra.mxu0 %v290
      %336 = vmatprep.subr.mxu0 %v293
      %337 = vmatpush1.msra.mxu0 %v292
      %338 = vmatprep.subr.mxu0 %v295
      %339 = vmatpush1.msra.mxu0 %v294
      %340 = vmatprep.subr.mxu0 %v297
      %341 = vmatpush1.msra.mxu0 %v296
      %342 = vmatprep.subr.mxu0 %v299
      %343 = vmatpush1.msra.mxu0 %v298
      %344 = vmatprep.subr.mxu0 %v301
      %345 = vmatpush1.msra.mxu0 %v300
      %346 = vmatprep.subr.mxu0 %v303
      %347 = vmatpush1.msra.mxu0 %v302
      %348 = vmatprep.subr.mxu0 %v305
      %349 = vmatpush1.msra.mxu0 %v304
      %350 = vmatprep.subr.mxu0 %v307
      %351 = vmatpush1.msra.mxu0 %v306
      %352 = vmatprep.subr.mxu0 %v309
      %353 = vmatpush1.msra.mxu0 %v308
      %354 = vmatprep.subr.mxu0 %v311
      %355 = vmatpush1.msra.mxu0 %v310
      %356 = vmatprep.subr.mxu0 %v313
      %357 = vmatpush1.msra.mxu0 %v312
      %358 = vmatprep.subr.mxu0 %v315
      %359 = vmatpush1.msra.mxu0 %v314
      %360 = vmatprep.subr.mxu0 %v317
      %361 = vmatpush1.msra.mxu0 %v316
      %362 = vmatprep.subr.mxu0 0.0
      %363 = vmatpush1.msra.mxu0 0.0
      %364 = vmatprep.subr.mxu0 0.0
      %365 = vmatpush1.msra.mxu0 0.0
      %366 = vmatprep.subr.mxu0 0.0
      %367 = vmatpush1.msra.mxu0 0.0
      %368 = vmatprep.subr.mxu0 0.0
      %369 = vmatpush1.msra.mxu0 0.0
      %370 = vmatprep.subr.mxu0 0.0
      %371 = vmatpush1.msra.mxu0 0.0
      %372 = vmatprep.subr.mxu0 0.0
      %373 = vmatpush1.msra.mxu0 0.0
      %374 = vmatprep.subr.mxu0 0.0
      %375 = vmatpush1.msra.mxu0 0.0
      %376 = vmatprep.subr.mxu0 0.0
      %377 = vmatpush1.msra.mxu0 0.0
      %378 = vmatprep.subr.mxu0 0.0
      %379 = vmatpush1.msra.mxu0 0.0
      %380 = vmatprep.subr.mxu0 0.0
      %381 = vmatpush1.msra.mxu0 0.0
      %382 = vmatprep.subr.mxu0 0.0
      %383 = vmatpush1.msra.mxu0 0.0
      %384 = vmatprep.subr.mxu0 0.0
      %385 = vmatpush1.msra.mxu0 0.0
      %386 = vmatprep.subr.mxu0 0.0
      %387 = vmatpush1.msra.mxu0 0.0
      %388 = vmatprep.subr.mxu0 0.0
      %389 = vmatpush1.msra.mxu0 0.0
      %390 = vmatprep.subr.mxu0 0.0
      %391 = vmatpush1.msra.mxu0 0.0
      %392 = vmatprep.subr.mxu0 0.0
      %393 = vmatpush1.msra.mxu0 0.0
      %394 = vmatprep.mubr.f32.mxu0 0.0
      %395 = vmatmul.mubr.f32.gmra.mrb[0].mxu0 %v282
      %v396 = vpop.f32.mrb[0].mxu0
      %v397 = vadd.f32 %v323, %v396
      %v398 = vpop.f32.mrb[0].mxu0
      %v399 = vadd.f32 %v327, %v398
      %400 = vmatprep.mubr.f32.mxu0 0.0
      %401 = vmatmul.mubr.f32.gmra.mrb[0].mxu0 %v283
      %v402 = vpop.f32.mrb[0].mxu0
      %v403 = vadd.f32 %v323, %v402
      %v404 = vpop.f32.mrb[0].mxu0
      %v405 = vadd.f32 %v327, %v404
      %406 = vmatprep.mubr.f32.mxu0 0.0
      %407 = vmatmul.mubr.f32.gmra.mrb[0].mxu0 %v284
      %v408 = vpop.f32.mrb[0].mxu0
      %v409 = vadd.f32 %v323, %v408
      %v410 = vpop.f32.mrb[0].mxu0
      %v411 = vadd.f32 %v327, %v410
      %412 = vmatprep.mubr.f32.mxu0 0.0
      %413 = vmatmul.mubr.f32.gmra.mrb[0].mxu0 %v285
      %v414 = vpop.f32.mrb[0].mxu0
      %v415 = vadd.f32 %v323, %v414
      %v416 = vpop.f32.mrb[0].mxu0
      %v417 = vadd.f32 %v327, %v416
      %418 = vdwg.mxu0
      %v419 = vmax.f32 %v397, 0.0
      %v420 = vmax.f32 %v399, 0.0
      %v421 = vmax.f32 %v403, 0.0
      %v422 = vmax.f32 %v405, 0.0
      %v423 = vmax.f32 %v409, 0.0
      %v424 = vmax.f32 %v411, 0.0
      %v425 = vmax.f32 %v415, 0.0
      %v426 = vmax.f32 %v417, 0.0
      %v427 = vld [vmem:[%s3] sm:$0xff]
      %v428 = vld [vmem:[%s3 + $0x8] sm:$0xff]
      %v429 = vld [vmem:[%s3 + $0x10] sm:$0xff]
      %v430 = vld [vmem:[%s3 + $0x18] sm:$0xff]
      %v431 = vld [vmem:[%s3 + $0x20] sm:$0xff]
      %v432 = vld [vmem:[%s3 + $0x28] sm:$0xff]
      %v433 = vld [vmem:[%s3 + $0x30] sm:$0xff]
      %v434 = vld [vmem:[%s3 + $0x38] sm:$0xff]
      %v435 = vld [vmem:[%s3 + $0x40] sm:$0xff]
      %v436 = vld [vmem:[%s3 + $0x48] sm:$0xff]
      %v437 = vld [vmem:[%s3 + $0x50] sm:$0xff]
      %v438 = vld [vmem:[%s3 + $0x58] sm:$0xff]
      %v439 = vld [vmem:[%s3 + $0x60] sm:$0xff]
      %v440 = vld [vmem:[%s3 + $0x68] sm:$0xff]
      %v441 = vld [vmem:[%s3 + $0x70] sm:$0xff]
      %v442 = vld [vmem:[%s3 + $0x78] sm:$0xff]
      %v443 = vld [vmem:[%s3 + $0x80] sm:$0xff]
      %v444 = vld [vmem:[%s3 + $0x88] sm:$0xff]
      %v445 = vld [vmem:[%s3 + $0x90] sm:$0xff]
      %v446 = vld [vmem:[%s3 + $0x98] sm:$0xff]
      %v447 = vld [vmem:[%s3 + $0xa0] sm:$0xff]
      %v448 = vld [vmem:[%s3 + $0xa8] sm:$0xff]
      %v449 = vld [vmem:[%s3 + $0xb0] sm:$0xff]
      %v450 = vld [vmem:[%s3 + $0xb8] sm:$0xff]
      %v451 = vld [vmem:[%s3 + $0xc0] sm:$0xff]
      %v452 = vld [vmem:[%s3 + $0xc8] sm:$0xff]
      %v453 = vld [vmem:[%s3 + $0xd0] sm:$0xff]
      %v454 = vld [vmem:[%s3 + $0xd8] sm:$0xff]
      %v455 = vld [vmem:[%s3 + $0xe0] sm:$0xff]
      %v456 = vld [vmem:[%s3 + $0xe8] sm:$0xff]
      %v457 = vld [vmem:[%s3 + $0xf0] sm:$0xff]
      %v458 = vld [vmem:[%s3 + $0xf8] sm:$0xff]
      %v459 = vld [vmem:[%s4] sm:$0x1]
      %v461 = vlaneseq
      %v462 = vshrl.u32 %v461, 7
      %v463 = vsub.s32 0, %v462
      %v464 = vrot.slane %v459, %v463
      %466 = vmatprep.subr.mxu0 0.0
      %467 = vmatpush1.msra.mxu0 %v427
      %468 = vmatprep.subr.mxu0 0.0
      %469 = vmatpush1.msra.mxu0 %v428
      %470 = vmatprep.subr.mxu0 0.0
      %471 = vmatpush1.msra.mxu0 %v429
      %472 = vmatprep.subr.mxu0 0.0
      %473 = vmatpush1.msra.mxu0 %v430
      %474 = vmatprep.subr.mxu0 0.0
      %475 = vmatpush1.msra.mxu0 %v431
      %476 = vmatprep.subr.mxu0 0.0
      %477 = vmatpush1.msra.mxu0 %v432
      %478 = vmatprep.subr.mxu0 0.0
      %479 = vmatpush1.msra.mxu0 %v433
      %480 = vmatprep.subr.mxu0 0.0
      %481 = vmatpush1.msra.mxu0 %v434
      %482 = vmatprep.subr.mxu0 0.0
      %483 = vmatpush1.msra.mxu0 %v435
      %484 = vmatprep.subr.mxu0 0.0
      %485 = vmatpush1.msra.mxu0 %v436
      %486 = vmatprep.subr.mxu0 0.0
      %487 = vmatpush1.msra.mxu0 %v437
      %488 = vmatprep.subr.mxu0 0.0
      %489 = vmatpush1.msra.mxu0 %v438
      %490 = vmatprep.subr.mxu0 0.0
      %491 = vmatpush1.msra.mxu0 %v439
      %492 = vmatprep.subr.mxu0 0.0
      %493 = vmatpush1.msra.mxu0 %v440
      %494 = vmatprep.subr.mxu0 0.0
      %495 = vmatpush1.msra.mxu0 %v441
      %496 = vmatprep.subr.mxu0 0.0
      %497 = vmatpush1.msra.mxu0 %v442
      %498 = vmatprep.subr.mxu0 0.0
      %499 = vmatpush1.msra.mxu0 %v443
      %500 = vmatprep.subr.mxu0 0.0
      %501 = vmatpush1.msra.mxu0 %v444
      %502 = vmatprep.subr.mxu0 0.0
      %503 = vmatpush1.msra.mxu0 %v445
      %504 = vmatprep.subr.mxu0 0.0
      %505 = vmatpush1.msra.mxu0 %v446
      %506 = vmatprep.subr.mxu0 0.0
      %507 = vmatpush1.msra.mxu0 %v447
      %508 = vmatprep.subr.mxu0 0.0
      %509 = vmatpush1.msra.mxu0 %v448
      %510 = vmatprep.subr.mxu0 0.0
      %511 = vmatpush1.msra.mxu0 %v449
      %512 = vmatprep.subr.mxu0 0.0
      %513 = vmatpush1.msra.mxu0 %v450
      %514 = vmatprep.subr.mxu0 0.0
      %515 = vmatpush1.msra.mxu0 %v451
      %516 = vmatprep.subr.mxu0 0.0
      %517 = vmatpush1.msra.mxu0 %v452
      %518 = vmatprep.subr.mxu0 0.0
      %519 = vmatpush1.msra.mxu0 %v453
      %520 = vmatprep.subr.mxu0 0.0
      %521 = vmatpush1.msra.mxu0 %v454
      %522 = vmatprep.subr.mxu0 0.0
      %523 = vmatpush1.msra.mxu0 %v455
      %524 = vmatprep.subr.mxu0 0.0
      %525 = vmatpush1.msra.mxu0 %v456
      %526 = vmatprep.subr.mxu0 0.0
      %527 = vmatpush1.msra.mxu0 %v457
      %528 = vmatprep.subr.mxu0 0.0
      %529 = vmatpush1.msra.mxu0 %v458
      %530 = vmatprep.mubr.f32.mxu0 %v420
      %531 = vmatmul.mubr.f32.gmra.mrb[0].mxu0 %v419
      %v532 = vpop.f32.mrb[0].mxu0
      %v533 = vadd.f32 %v464, %v532
      %v534 = vpop.f32.mrb[0].mxu0
      %535 = vmatprep.mubr.f32.mxu0 %v422
      %536 = vmatmul.mubr.f32.gmra.mrb[0].mxu0 %v421
      %v537 = vpop.f32.mrb[0].mxu0
      %v538 = vadd.f32 %v464, %v537
      %v539 = vpop.f32.mrb[0].mxu0
      %540 = vmatprep.mubr.f32.mxu0 %v424
      %541 = vmatmul.mubr.f32.gmra.mrb[0].mxu0 %v423
      %v542 = vpop.f32.mrb[0].mxu0
      %v543 = vadd.f32 %v464, %v542
      %v544 = vpop.f32.mrb[0].mxu0
      %545 = vmatprep.mubr.f32.mxu0 %v426
      %546 = vmatmul.mubr.f32.gmra.mrb[0].mxu0 %v425
      %v547 = vpop.f32.mrb[0].mxu0
      %v548 = vadd.f32 %v464, %v547
      %v549 = vpop.f32.mrb[0].mxu0
      %550 = vdwg.mxu0
      %v551 = vadd.f32 %v533, %v282
      %v552 = vadd.f32 %v538, %v283
      %v553 = vadd.f32 %v543, %v284
      %v554 = vadd.f32 %v548, %v285
      %555 = vadd.xlane.f32.xlu0 %v551
      %v556 = vpop.xlane.xlu0 %555
      %557 = vadd.xlane.f32.xlu0 %v552
      %v558 = vpop.xlane.xlu0 %557
      %559 = vadd.xlane.f32.xlu0 %v553
      %v560 = vpop.xlane.xlu0 %559
      %561 = vadd.xlane.f32.xlu0 %v554
      %v562 = vpop.xlane.xlu0 %561
      %v563 = vrcp.pop 128.0
      %v564 = vmul.f32 %v556, %v563
      %v565 = vmul.f32 %v558, %v563
      %v566 = vmul.f32 %v560, %v563
      %v567 = vmul.f32 %v562, %v563
      %v568 = vsub.f32 %v551, %v564
      %v569 = vsub.f32 %v552, %v565
      %v570 = vsub.f32 %v553, %v566
      %v571 = vsub.f32 %v554, %v567
      %v572 = vmul.f32 %v568, %v568
      %v573 = vmul.f32 %v569, %v569
      %v574 = vmul.f32 %v570, %v570
      %v575 = vmul.f32 %v571, %v571
      %576 = vadd.xlane.f32.xlu0 %v572
      %v577 = vpop.xlane.xlu0 %576
      %578 = vadd.xlane.f32.xlu0 %v573
      %v579 = vpop.xlane.xlu0 %578
      %580 = vadd.xlane.f32.xlu0 %v574
      %v581 = vpop.xlane.xlu0 %580
      %582 = vadd.xlane.f32.xlu0 %v575
      %v583 = vpop.xlane.xlu0 %582
      %v584 = vmul.f32 %v577, %v563
      %v585 = vmul.f32 %v579, %v563
      %v586 = vmul.f32 %v581, %v563
      %v587 = vmul.f32 %v583, %v563
      %v588 = vadd.f32 %v584, 1e-05
      %v589 = vadd.f32 %v585, 1e-05
      %v590 = vadd.f32 %v586, 1e-05
      %v591 = vadd.f32 %v587, 1e-05
      %v592 = vrsqrt.pop %v588
      %v593 = vrsqrt.pop %v589
      %v594 = vrsqrt.pop %v590
      %v595 = vrsqrt.pop %v591
      %v596 = vmul.f32 %v568, %v592
      %v597 = vmul.f32 %v569, %v593
      %v598 = vmul.f32 %v570, %v594
      %v599 = vmul.f32 %v571, %v595
      %v600 = vld [vmem:[%s5] sm:$0x1]
      %v602 = vlaneseq
      %v603 = vshrl.u32 %v602, 7
      %v604 = vsub.s32 0, %v603
      %v605 = vrot.slane %v600, %v604
      %v607 = vmul.f32 %v596, %v605
      %v608 = vmul.f32 %v597, %v605
      %v609 = vmul.f32 %v598, %v605
      %v610 = vmul.f32 %v599, %v605
      %v611 = vld [vmem:[%s6] sm:$0x1]
      %v613 = vlaneseq
      %v614 = vshrl.u32 %v613, 7
      %v615 = vsub.s32 0, %v614
      %v616 = vrot.slane %v611, %v615
      %v618 = vadd.f32 %v607, %v616
      %v619 = vadd.f32 %v608, %v616
      %v620 = vadd.f32 %v609, %v616
      %v621 = vadd.f32 %v610, %v616
      %622 = vst [vmem:[%s280] sm:$0xff] %v618
      %623 = vst [vmem:[%s280 + $0x8] sm:$0xff] %v619
      %624 = vst [vmem:[%s280 + $0x10] sm:$0xff] %v620
      %625 = vst [vmem:[%s280 + $0x18] sm:$0xff] %v621
      %s626 = smul.u32 4, %s18
      %p627 = scmp.lt.s32.totalorder %s626, 7
      %s628 = scalar_select %p627, %s626, 7
      %s629 = smul.addr %s628, 8
      %s630 = scalar_lea.vmem %s7, %s629
      // Predicated region
      $region49: #{transformer_encoder_forward.7} parent=47 // pred_check
        %p631 = pneg %p188
      $region50: #{transformer_encoder_forward.7} parent=47 // pred_check_branch
        %633 = sbr.rel (%p631) target = $region52
      $region51: #{transformer_encoder_forward.7} parent=47 // pred_region
        %s634 = smul.u32 4, %s18
      $region52: #{transformer_encoder_forward.7} parent=47 // pred_fallthru
        _
    $region48: #{transformer_encoder_forward.7} parent=5 // pred_fallthru
      _
    %p635 = scmp.le.s32.totalorder 2, %s13
    // Predicated region
    $region53: #{transformer_encoder_forward.7} parent=5 // pred_check
      %p636 = pneg %p635
    $region54: #{transformer_encoder_forward.7} parent=5 // pred_check_branch
      %638 = sbr.rel (%p636) target = $region56
    $region55: #{transformer_encoder_forward.7} parent=5 // pred_region
      %s639 = ssub.s32 %s13, 2
      // Predicated region
      $region57: #{transformer_encoder_forward.7} parent=55 // pred_check
        %p640 = pneg %p194
      $region58: #{transformer_encoder_forward.7} parent=55 // pred_check_branch
        %642 = sbr.rel (%p640) target = $region60
      $region59: #{transformer_encoder_forward.7} parent=55 // pred_region
        %s643 = smul.u32 4, %s19
        %p644 = scmp.lt.s32.totalorder %s643, 7
        %s645 = scalar_select %p644, %s643, 7
        %s646 = smul.addr %s645, 8
        %s647 = scalar_lea.vmem %s7, %s646
      $region60: #{transformer_encoder_forward.7} parent=55 // pred_fallthru
        _
    $region56: #{transformer_encoder_forward.7} parent=5 // pred_fallthru
      _
  $region6: #{transformer_encoder_forward.7} parent=0 // loop_footer
    %s17 = sadd.s32 1, %s13
  $region7: #{transformer_encoder_forward.7} parent=0 // loop_footer_branch
    %12 = sbr.rel target = $region3
  $region8: #{transformer_encoder_forward.7} parent=0 // loop_exit
    _

// kernel: transformer_encoder_forward.6
$region0: #{transformer_encoder_forward.6}
  #allocation0 [shape = 'u32[]', space=smem, size = 0x4, offset = 0x4, fixed_abs, tag = 'smem constant byte address 0x4 - core index']
  #allocation1 [shape = 'u32[144,128]{1,0:T(1,128)}', space=vmem, size = 0x12000, scoped, tag = 'internal scratch']
  %s0 = inlined_call_operand.vmem [shape: f32[4,16,128], index: 0, kind: input, shape index: {}]
  %s1 = inlined_call_operand.vmem [shape: f32[2,128,64], index: 1, kind: input, shape index: {}]
  %s2 = inlined_call_operand.vmem [shape: f32[2,1,64], index: 2, kind: input, shape index: {}]
  %s3 = inlined_call_operand.vmem [shape: f32[2,128,64], index: 3, kind: input, shape index: {}]
  %s4 = inlined_call_operand.vmem [shape: f32[2,1,64], index: 4, kind: input, shape index: {}]
  %s5 = inlined_call_operand.vmem [shape: f32[2,128,64], index: 5, kind: input, shape index: {}]
  %s6 = inlined_call_operand.vmem [shape: f32[2,1,64], index: 6, kind: input, shape index: {}]
  %s7 = inlined_call_operand.vmem [shape: f32[2,64,128], index: 7, kind: input, shape index: {}]
  %s8 = inlined_call_operand.vmem [shape: f32[1,128], index: 8, kind: input, shape index: {}]
  %s9 = inlined_call_operand.vmem [shape: f32[1,128], index: 9, kind: input, shape index: {}]
  %s10 = inlined_call_operand.vmem [shape: f32[1,128], index: 10, kind: input, shape index: {}]
  %s11 = inlined_call_operand.vmem [shape: f32[4,16,128], index: 11, kind: output, shape index: {0}]
  %s12 = inlined_call_operand.hbm [shape: f32[4,2,16,64], index: 12, kind: output, shape index: {1}]
  %s13 = inlined_call_operand.hbm [shape: f32[4,2,16,64], index: 13, kind: output, shape index: {2}]
  %14 = xla_tuple %s11, %s12, %s13
  %s15 = sld [smem:[#allocation0]]
  $region93: #{transformer_encoder_forward.6} parent=0
    _
  %s17 = ssub.s32 1, %s15
  %s18 = scalar_select 0, %s17, %s15
  $region1: #{transformer_encoder_forward.6} parent=0
    #allocation2 [shape = 'u8[32768]{0}', space=vmem, size = 0x8000, scoped, tag = 'output window, operand 1']
    #allocation3 [shape = 's32[2]{0}', space=sflag, size = 0x8, scoped, tag = 'scoped memory for transformer_encoder_forward.6']
    #allocation4 [shape = 'u8[32768]{0}', space=vmem, size = 0x8000, scoped, tag = 'output window, operand 2']
    #allocation5 [shape = 's32[2]{0}', space=sflag, size = 0x8, scoped, tag = 'scoped memory for transformer_encoder_forward.6']
    %19 = vsyncpa [#allocation3], 0
    %s20 = scalar_lea.sflag [#allocation3], 1
    %21 = vsyncpa %s20, 0
    %22 = vsyncpa [#allocation5], 0
    %s23 = scalar_lea.sflag [#allocation5], 1
    %24 = vsyncpa %s23, 0
    loop: start=0, step=1, limit=6
    $region2: #{transformer_encoder_forward.6} parent=1 // loop_pre_header
      _
    $region3: #{transformer_encoder_forward.6} parent=1 // loop_header
      %s26 = sphi 0, %s30
      %p27 = scmp.ge.s32.totalorder %s26, 6
      %s36 = sphi 0, %s38
      %s39 = sphi 0, %s36
      %s40 = sphi 0, %s39
      %s56 = sphi 0, %s40
      %s60 = sphi 0, %s60
      %s62 = sphi 0, %s60
      %s63 = sphi 0, %s62
      %s77 = sphi 0, %s63
      %s81 = sphi 0, %s81
      %s83 = sphi 0, %s81
      %s84 = sphi 0, %s83
      %s98 = sphi 0, %s84
      %s102 = sphi 0, %s102
      %s104 = sphi 0, %s102
      %s105 = sphi 0, %s104
      %s119 = sphi 0, %s105
      %s123 = sphi 0, %s123
      %s125 = sphi 0, %s123
      %s126 = sphi 0, %s125
      %s140 = sphi 0, %s126
      %s144 = sphi 0, %s144
      %s146 = sphi 0, %s144
      %s147 = sphi 0, %s146
      %s161 = sphi 0, %s147
      %s165 = sphi 0, %s165
      %s167 = sphi 0, %s165
      %s168 = sphi 0, %s167
      %s182 = sphi 0, %s168
      %s186 = sphi 0, %s186
      %s188 = sphi 0, %s186
      %s189 = sphi 0, %s188
      %s203 = sphi 0, %s189
      %s207 = sphi 0, %s207
      %s209 = sphi 0, %s207
      %s210 = sphi 0, %s209
      %s224 = sphi 0, %s210
      %s228 = sphi 0, %s228
      %s230 = sphi 0, %s228
      %s231 = sphi 0, %s230
      %s245 = sphi 0, %s231
      %s249 = sphi 0, %s249
      %s251 = sphi 0, %s249
      %s252 = sphi 0, %s251
      %s266 = sphi 0, %s252
      %s272 = sphi 0, %s274
      %s275 = sphi 0, %s272
      %s276 = sphi 0, %s275
      %s292 = sphi 0, %s276
      %s298 = sphi 0, %s300
      %s301 = sphi 0, %s298
      %s302 = sphi 0, %s301
      %s318 = sphi 0, %s302
      %s324 = sphi 0, %s326
      %s327 = sphi 0, %s324
      %s328 = sphi 0, %s327
      %s344 = sphi 0, %s328
    $region4: #{transformer_encoder_forward.6} parent=1 // loop_header_branch
      %29 = sbr.rel (%p27) target = $region8
    $region5: #{transformer_encoder_forward.6} parent=1 // loop_body
      %s31 = ssub.s32 %s26, 1
      %s32 = ssub.s32 %s26, 2
      %s33 = sadd.s32 %s26, 1
      %s34 = ssub.s32 %s26, %s33
      %p35 = scmp.eq.s32.totalorder %s34, 0
      %s37 = sadd.s32 %s36, 1
      %s38 = scalar_select %p35, %s36, %s37
      %p41 = pneg %p35
      %p42 = scmp.eq.s32.totalorder %s26, 3
      %p43 = por %p41, %p42
      %p44 = scmp.ne.s32.totalorder %s36, %s39
      %p45 = scmp.eq.s32.totalorder %s26, 0
      %p46 = por %p44, %p45
      %p47 = scmp.ne.s32.totalorder %s36, %s39
      %p48 = scmp.eq.s32.totalorder %s31, 3
      %p49 = por %p47, %p48
      %p50 = scmp.ne.s32.totalorder %s39, %s40
      %p51 = scmp.eq.s32.totalorder %s31, 0
      %p52 = por %p50, %p51
      %p53 = scmp.ne.s32.totalorder %s39, %s40
      %p54 = scmp.eq.s32.totalorder %s32, 3
      %p55 = por %p53, %p54
      %p57 = scmp.ne.s32.totalorder %s40, %s56
      %p58 = scmp.eq.s32.totalorder %s32, 0
      %p59 = por %p57, %p58
      %s61 = sadd.s32 %s60, 1
      %p64 = scmp.eq.s32.totalorder %s26, 3
      %p65 = scmp.ne.s32.totalorder %s60, %s62
      %p66 = scmp.eq.s32.totalorder %s26, 0
      %p67 = por %p65, %p66
      %p68 = scmp.ne.s32.totalorder %s60, %s62
      %p69 = scmp.eq.s32.totalorder %s31, 3
      %p70 = por %p68, %p69
      %p71 = scmp.ne.s32.totalorder %s62, %s63
      %p72 = scmp.eq.s32.totalorder %s31, 0
      %p73 = por %p71, %p72
      %p74 = scmp.ne.s32.totalorder %s62, %s63
      %p75 = scmp.eq.s32.totalorder %s32, 3
      %p76 = por %p74, %p75
      %p78 = scmp.ne.s32.totalorder %s63, %s77
      %p79 = scmp.eq.s32.totalorder %s32, 0
      %p80 = por %p78, %p79
      %s82 = sadd.s32 %s81, 1
      %p85 = scmp.eq.s32.totalorder %s26, 3
      %p86 = scmp.ne.s32.totalorder %s81, %s83
      %p87 = scmp.eq.s32.totalorder %s26, 0
      %p88 = por %p86, %p87
      %p89 = scmp.ne.s32.totalorder %s81, %s83
      %p90 = scmp.eq.s32.totalorder %s31, 3
      %p91 = por %p89, %p90
      %p92 = scmp.ne.s32.totalorder %s83, %s84
      %p93 = scmp.eq.s32.totalorder %s31, 0
      %p94 = por %p92, %p93
      %p95 = scmp.ne.s32.totalorder %s83, %s84
      %p96 = scmp.eq.s32.totalorder %s32, 3
      %p97 = por %p95, %p96
      %p99 = scmp.ne.s32.totalorder %s84, %s98
      %p100 = scmp.eq.s32.totalorder %s32, 0
      %p101 = por %p99, %p100
      %s103 = sadd.s32 %s102, 1
      %p106 = scmp.eq.s32.totalorder %s26, 3
      %p107 = scmp.ne.s32.totalorder %s102, %s104
      %p108 = scmp.eq.s32.totalorder %s26, 0
      %p109 = por %p107, %p108
      %p110 = scmp.ne.s32.totalorder %s102, %s104
      %p111 = scmp.eq.s32.totalorder %s31, 3
      %p112 = por %p110, %p111
      %p113 = scmp.ne.s32.totalorder %s104, %s105
      %p114 = scmp.eq.s32.totalorder %s31, 0
      %p115 = por %p113, %p114
      %p116 = scmp.ne.s32.totalorder %s104, %s105
      %p117 = scmp.eq.s32.totalorder %s32, 3
      %p118 = por %p116, %p117
      %p120 = scmp.ne.s32.totalorder %s105, %s119
      %p121 = scmp.eq.s32.totalorder %s32, 0
      %p122 = por %p120, %p121
      %s124 = sadd.s32 %s123, 1
      %p127 = scmp.eq.s32.totalorder %s26, 3
      %p128 = scmp.ne.s32.totalorder %s123, %s125
      %p129 = scmp.eq.s32.totalorder %s26, 0
      %p130 = por %p128, %p129
      %p131 = scmp.ne.s32.totalorder %s123, %s125
      %p132 = scmp.eq.s32.totalorder %s31, 3
      %p133 = por %p131, %p132
      %p134 = scmp.ne.s32.totalorder %s125, %s126
      %p135 = scmp.eq.s32.totalorder %s31, 0
      %p136 = por %p134, %p135
      %p137 = scmp.ne.s32.totalorder %s125, %s126
      %p138 = scmp.eq.s32.totalorder %s32, 3
      %p139 = por %p137, %p138
      %p141 = scmp.ne.s32.totalorder %s126, %s140
      %p142 = scmp.eq.s32.totalorder %s32, 0
      %p143 = por %p141, %p142
      %s145 = sadd.s32 %s144, 1
      %p148 = scmp.eq.s32.totalorder %s26, 3
      %p149 = scmp.ne.s32.totalorder %s144, %s146
      %p150 = scmp.eq.s32.totalorder %s26, 0
      %p151 = por %p149, %p150
      %p152 = scmp.ne.s32.totalorder %s144, %s146
      %p153 = scmp.eq.s32.totalorder %s31, 3
      %p154 = por %p152, %p153
      %p155 = scmp.ne.s32.totalorder %s146, %s147
      %p156 = scmp.eq.s32.totalorder %s31, 0
      %p157 = por %p155, %p156
      %p158 = scmp.ne.s32.totalorder %s146, %s147
      %p159 = scmp.eq.s32.totalorder %s32, 3
      %p160 = por %p158, %p159
      %p162 = scmp.ne.s32.totalorder %s147, %s161
      %p163 = scmp.eq.s32.totalorder %s32, 0
      %p164 = por %p162, %p163
      %s166 = sadd.s32 %s165, 1
      %p169 = scmp.eq.s32.totalorder %s26, 3
      %p170 = scmp.ne.s32.totalorder %s165, %s167
      %p171 = scmp.eq.s32.totalorder %s26, 0
      %p172 = por %p170, %p171
      %p173 = scmp.ne.s32.totalorder %s165, %s167
      %p174 = scmp.eq.s32.totalorder %s31, 3
      %p175 = por %p173, %p174
      %p176 = scmp.ne.s32.totalorder %s167, %s168
      %p177 = scmp.eq.s32.totalorder %s31, 0
      %p178 = por %p176, %p177
      %p179 = scmp.ne.s32.totalorder %s167, %s168
      %p180 = scmp.eq.s32.totalorder %s32, 3
      %p181 = por %p179, %p180
      %p183 = scmp.ne.s32.totalorder %s168, %s182
      %p184 = scmp.eq.s32.totalorder %s32, 0
      %p185 = por %p183, %p184
      %s187 = sadd.s32 %s186, 1
      %p190 = scmp.eq.s32.totalorder %s26, 3
      %p191 = scmp.ne.s32.totalorder %s186, %s188
      %p192 = scmp.eq.s32.totalorder %s26, 0
      %p193 = por %p191, %p192
      %p194 = scmp.ne.s32.totalorder %s186, %s188
      %p195 = scmp.eq.s32.totalorder %s31, 3
      %p196 = por %p194, %p195
      %p197 = scmp.ne.s32.totalorder %s188, %s189
      %p198 = scmp.eq.s32.totalorder %s31, 0
      %p199 = por %p197, %p198
      %p200 = scmp.ne.s32.totalorder %s188, %s189
      %p201 = scmp.eq.s32.totalorder %s32, 3
      %p202 = por %p200, %p201
      %p204 = scmp.ne.s32.totalorder %s189, %s203
      %p205 = scmp.eq.s32.totalorder %s32, 0
      %p206 = por %p204, %p205
      %s208 = sadd.s32 %s207, 1
      %p211 = scmp.eq.s32.totalorder %s26, 3
      %p212 = scmp.ne.s32.totalorder %s207, %s209
      %p213 = scmp.eq.s32.totalorder %s26, 0
      %p214 = por %p212, %p213
      %p215 = scmp.ne.s32.totalorder %s207, %s209
      %p216 = scmp.eq.s32.totalorder %s31, 3
      %p217 = por %p215, %p216
      %p218 = scmp.ne.s32.totalorder %s209, %s210
      %p219 = scmp.eq.s32.totalorder %s31, 0
      %p220 = por %p218, %p219
      %p221 = scmp.ne.s32.totalorder %s209, %s210
      %p222 = scmp.eq.s32.totalorder %s32, 3
      %p223 = por %p221, %p222
      %p225 = scmp.ne.s32.totalorder %s210, %s224
      %p226 = scmp.eq.s32.totalorder %s32, 0
      %p227 = por %p225, %p226
      %s229 = sadd.s32 %s228, 1
      %p232 = scmp.eq.s32.totalorder %s26, 3
      %p233 = scmp.ne.s32.totalorder %s228, %s230
      %p234 = scmp.eq.s32.totalorder %s26, 0
      %p235 = por %p233, %p234
      %p236 = scmp.ne.s32.totalorder %s228, %s230
      %p237 = scmp.eq.s32.totalorder %s31, 3
      %p238 = por %p236, %p237
      %p239 = scmp.ne.s32.totalorder %s230, %s231
      %p240 = scmp.eq.s32.totalorder %s31, 0
      %p241 = por %p239, %p240
      %p242 = scmp.ne.s32.totalorder %s230, %s231
      %p243 = scmp.eq.s32.totalorder %s32, 3
      %p244 = por %p242, %p243
      %p246 = scmp.ne.s32.totalorder %s231, %s245
      %p247 = scmp.eq.s32.totalorder %s32, 0
      %p248 = por %p246, %p247
      %s250 = sadd.s32 %s249, 1
      %p253 = scmp.eq.s32.totalorder %s26, 3
      %p254 = scmp.ne.s32.totalorder %s249, %s251
      %p255 = scmp.eq.s32.totalorder %s26, 0
      %p256 = por %p254, %p255
      %p257 = scmp.ne.s32.totalorder %s249, %s251
      %p258 = scmp.eq.s32.totalorder %s31, 3
      %p259 = por %p257, %p258
      %p260 = scmp.ne.s32.totalorder %s251, %s252
      %p261 = scmp.eq.s32.totalorder %s31, 0
      %p262 = por %p260, %p261
      %p263 = scmp.ne.s32.totalorder %s251, %s252
      %p264 = scmp.eq.s32.totalorder %s32, 3
      %p265 = por %p263, %p264
      %p267 = scmp.ne.s32.totalorder %s252, %s266
      %p268 = scmp.eq.s32.totalorder %s32, 0
      %p269 = por %p267, %p268
      %s270 = ssub.s32 %s26, %s33
      %p271 = scmp.eq.s32.totalorder %s270, 0
      %s273 = sadd.s32 %s272, 1
      %s274 = scalar_select %p271, %s272, %s273
      %p277 = pneg %p271
      %p278 = scmp.eq.s32.totalorder %s26, 3
      %p279 = por %p277, %p278
      %p280 = scmp.ne.s32.totalorder %s272, %s275
      %p281 = scmp.eq.s32.totalorder %s26, 0
      %p282 = por %p280, %p281
      %p283 = scmp.ne.s32.totalorder %s272, %s275
      %p284 = scmp.eq.s32.totalorder %s31, 3
      %p285 = por %p283, %p284
      %p286 = scmp.ne.s32.totalorder %s275, %s276
      %p287 = scmp.eq.s32.totalorder %s31, 0
      %p288 = por %p286, %p287
      %p289 = scmp.ne.s32.totalorder %s275, %s276
      %p290 = scmp.eq.s32.totalorder %s32, 3
      %p291 = por %p289, %p290
      %p293 = scmp.ne.s32.totalorder %s276, %s292
      %p294 = scmp.eq.s32.totalorder %s32, 0
      %p295 = por %p293, %p294
      %s296 = ssub.s32 %s26, %s33
      %p297 = scmp.eq.s32.totalorder %s296, 0
      %s299 = sadd.s32 %s298, 1
      %s300 = scalar_select %p297, %s298, %s299
      %p303 = pneg %p297
      %p304 = scmp.eq.s32.totalorder %s26, 3
      %p305 = por %p303, %p304
      %p306 = scmp.ne.s32.totalorder %s298, %s301
      %p307 = scmp.eq.s32.totalorder %s26, 0
      %p308 = por %p306, %p307
      %p309 = scmp.ne.s32.totalorder %s298, %s301
      %p310 = scmp.eq.s32.totalorder %s31, 3
      %p311 = por %p309, %p310
      %p312 = scmp.ne.s32.totalorder %s301, %s302
      %p313 = scmp.eq.s32.totalorder %s31, 0
      %p314 = por %p312, %p313
      %p315 = scmp.ne.s32.totalorder %s301, %s302
      %p316 = scmp.eq.s32.totalorder %s32, 3
      %p317 = por %p315, %p316
      %p319 = scmp.ne.s32.totalorder %s302, %s318
      %p320 = scmp.eq.s32.totalorder %s32, 0
      %p321 = por %p319, %p320
      %s322 = ssub.s32 %s26, %s33
      %p323 = scmp.eq.s32.totalorder %s322, 0
      %s325 = sadd.s32 %s324, 1
      %s326 = scalar_select %p323, %s324, %s325
      %p329 = pneg %p323
      %p330 = scmp.eq.s32.totalorder %s26, 3
      %p331 = por %p329, %p330
      %p332 = scmp.ne.s32.totalorder %s324, %s327
      %p333 = scmp.eq.s32.totalorder %s26, 0
      %p334 = por %p332, %p333
      %p335 = scmp.ne.s32.totalorder %s324, %s327
      %p336 = scmp.eq.s32.totalorder %s31, 3
      %p337 = por %p335, %p336
      %p338 = scmp.ne.s32.totalorder %s327, %s328
      %p339 = scmp.eq.s32.totalorder %s31, 0
      %p340 = por %p338, %p339
      %p341 = scmp.ne.s32.totalorder %s327, %s328
      %p342 = scmp.eq.s32.totalorder %s32, 3
      %p343 = por %p341, %p342
      %p345 = scmp.ne.s32.totalorder %s328, %s344
      %p346 = scmp.eq.s32.totalorder %s32, 0
      %p347 = por %p345, %p346
      %p348 = scmp.le.s32.totalorder 1, %s26
      %p349 = scmp.lt.s32.totalorder %s26, 5
      %p350 = pnand %p348, %p349
      %p351 = pneg %p350
      // Predicated region
      $region9: #{transformer_encoder_forward.6} parent=5 // pred_check
        _
      $region10: #{transformer_encoder_forward.6} parent=5 // pred_check_branch
        %353 = sbr.rel (%p350) target = $region12
      $region11: #{transformer_encoder_forward.6} parent=5 // pred_region
        %s354 = ssub.s32 %s26, 1
        // Predicated region
        $region13: #{transformer_encoder_forward.6} parent=11 // pred_check
          %p355 = pneg %p73
        $region14: #{transformer_encoder_forward.6} parent=11 // pred_check_branch
          %357 = sbr.rel (%p355) target = $region16
        $region15: #{transformer_encoder_forward.6} parent=11 // pred_region
          _
        $region16: #{transformer_encoder_forward.6} parent=11 // pred_fallthru
          _
        // Predicated region
        $region17: #{transformer_encoder_forward.6} parent=11 // pred_check
          %p358 = pneg %p94
        $region18: #{transformer_encoder_forward.6} parent=11 // pred_check_branch
          %360 = sbr.rel (%p358) target = $region20
        $region19: #{transformer_encoder_forward.6} parent=11 // pred_region
          _
        $region20: #{transformer_encoder_forward.6} parent=11 // pred_fallthru
          _
        // Predicated region
        $region21: #{transformer_encoder_forward.6} parent=11 // pred_check
          %p361 = pneg %p115
        $region22: #{transformer_encoder_forward.6} parent=11 // pred_check_branch
          %363 = sbr.rel (%p361) target = $region24
        $region23: #{transformer_encoder_forward.6} parent=11 // pred_region
          _
        $region24: #{transformer_encoder_forward.6} parent=11 // pred_fallthru
          _
        // Predicated region
        $region25: #{transformer_encoder_forward.6} parent=11 // pred_check
          %p364 = pneg %p136
        $region26: #{transformer_encoder_forward.6} parent=11 // pred_check_branch
          %366 = sbr.rel (%p364) target = $region28
        $region27: #{transformer_encoder_forward.6} parent=11 // pred_region
          _
        $region28: #{transformer_encoder_forward.6} parent=11 // pred_fallthru
          _
        // Predicated region
        $region29: #{transformer_encoder_forward.6} parent=11 // pred_check
          %p367 = pneg %p157
        $region30: #{transformer_encoder_forward.6} parent=11 // pred_check_branch
          %369 = sbr.rel (%p367) target = $region32
        $region31: #{transformer_encoder_forward.6} parent=11 // pred_region
          _
        $region32: #{transformer_encoder_forward.6} parent=11 // pred_fallthru
          _
        // Predicated region
        $region33: #{transformer_encoder_forward.6} parent=11 // pred_check
          %p370 = pneg %p178
        $region34: #{transformer_encoder_forward.6} parent=11 // pred_check_branch
          %372 = sbr.rel (%p370) target = $region36
        $region35: #{transformer_encoder_forward.6} parent=11 // pred_region
          _
        $region36: #{transformer_encoder_forward.6} parent=11 // pred_fallthru
          _
        // Predicated region
        $region37: #{transformer_encoder_forward.6} parent=11 // pred_check
          %p373 = pneg %p199
        $region38: #{transformer_encoder_forward.6} parent=11 // pred_check_branch
          %375 = sbr.rel (%p373) target = $region40
        $region39: #{transformer_encoder_forward.6} parent=11 // pred_region
          _
        $region40: #{transformer_encoder_forward.6} parent=11 // pred_fallthru
          _
        // Predicated region
        $region41: #{transformer_encoder_forward.6} parent=11 // pred_check
          %p376 = pneg %p220
        $region42: #{transformer_encoder_forward.6} parent=11 // pred_check_branch
          %378 = sbr.rel (%p376) target = $region44
        $region43: #{transformer_encoder_forward.6} parent=11 // pred_region
          _
        $region44: #{transformer_encoder_forward.6} parent=11 // pred_fallthru
          _
        // Predicated region
        $region45: #{transformer_encoder_forward.6} parent=11 // pred_check
          %p379 = pneg %p241
        $region46: #{transformer_encoder_forward.6} parent=11 // pred_check_branch
          %381 = sbr.rel (%p379) target = $region48
        $region47: #{transformer_encoder_forward.6} parent=11 // pred_region
          _
        $region48: #{transformer_encoder_forward.6} parent=11 // pred_fallthru
          _
        // Predicated region
        $region49: #{transformer_encoder_forward.6} parent=11 // pred_check
          %p382 = pneg %p262
        $region50: #{transformer_encoder_forward.6} parent=11 // pred_check_branch
          %384 = sbr.rel (%p382) target = $region52
        $region51: #{transformer_encoder_forward.6} parent=11 // pred_region
          _
        $region52: #{transformer_encoder_forward.6} parent=11 // pred_fallthru
          _
      $region12: #{transformer_encoder_forward.6} parent=5 // pred_fallthru
        _
      %p385 = scmp.lt.s32.totalorder %s26, 4
      // Predicated region
      $region53: #{transformer_encoder_forward.6} parent=5 // pred_check
        %p386 = pneg %p385
      $region54: #{transformer_encoder_forward.6} parent=5 // pred_check_branch
        %388 = sbr.rel (%p386) target = $region56
      $region55: #{transformer_encoder_forward.6} parent=5 // pred_region
        // Predicated region
        $region57: #{transformer_encoder_forward.6} parent=55 // pred_check
          %p389 = pneg %p46
        $region58: #{transformer_encoder_forward.6} parent=55 // pred_check_branch
          %391 = sbr.rel (%p389) target = $region60
        $region59: #{transformer_encoder_forward.6} parent=55 // pred_region
          %p392 = scmp.lt.s32.totalorder %s26, 3
          %s393 = scalar_select %p392, %s26, 3
          %s394 = smul.addr %s393, 2
          %s395 = smul.addr %s394, 8
          %s396 = scalar_lea.vmem %s0, %s395
        $region60: #{transformer_encoder_forward.6} parent=55 // pred_fallthru
          _
      $region56: #{transformer_encoder_forward.6} parent=5 // pred_fallthru
        _
      %p397 = scmp.le.s32.totalorder 1, %s26
      %p398 = scmp.lt.s32.totalorder %s26, 5
      %p399 = pnand %p397, %p398
      %p400 = pneg %p399
      // Predicated region
      $region61: #{transformer_encoder_forward.6} parent=5 // pred_check
        _
      $region62: #{transformer_encoder_forward.6} parent=5 // pred_check_branch
        %402 = sbr.rel (%p399) target = $region64
      $region63: #{transformer_encoder_forward.6} parent=5 // pred_region
        %s403 = ssub.s32 %s26, 1
        %p404 = scmp.lt.s32.totalorder %s31, 3
        %s405 = scalar_select %p404, %s31, 3
        %s406 = smul.addr %s405, 2
        %s407 = smul.addr %s406, 8
        %s408 = scalar_lea.vmem %s0, %s407
        %p409 = pneg %p52
        %p410 = pneg %p49
        %p411 = pneg %p73
        %p412 = pneg %p70
        %p413 = pneg %p94
        %p414 = pneg %p91
        %p415 = pneg %p115
        %p416 = pneg %p112
        %p417 = pneg %p136
        %p418 = pneg %p133
        %p419 = pneg %p157
        %p420 = pneg %p154
        %p421 = pneg %p178
        %p422 = pneg %p175
        %p423 = pneg %p199
        %p424 = pneg %p196
        %p425 = pneg %p220
        %p426 = pneg %p217
        %p427 = pneg %p241
        %p428 = pneg %p238
        %p429 = pneg %p262
        %p430 = pneg %p259
        %p431 = pneg %p288
        %p432 = pneg %p285
        %p433 = scmp.lt.s32.totalorder %s31, 3
        %s434 = scalar_select %p433, %s31, 3
        %s435 = smul.addr %s434, 2
        %s436 = smul.addr %s435, 8
        %s437 = scalar_lea.vmem %s11, %s436
        %p438 = pneg %p314
        %p439 = pneg %p311
        %s440 = sand.u32 %s301, 1
        %s441 = scalar_lea.sflag [#allocation3], %s440
        %s442 = sand.u32 %s301, 1
        %s443 = smul.addr %s442, 32
        %s444 = scalar_lea.vmem [#allocation2], %s443
        %p445 = pneg %p340
        %p446 = pneg %p337
        %s447 = sand.u32 %s327, 1
        %s448 = scalar_lea.sflag [#allocation5], %s447
        %s449 = sand.u32 %s327, 1
        %s450 = smul.addr %s449, 32
        %s451 = scalar_lea.vmem [#allocation4], %s450
        %p452 = scmp.lt.s32.totalorder %s31, 3
        %s453 = scalar_select %p452, %s31, 3
        %s454 = smul.addr %s453, 2
        %s455 = smul.addr %s454, 8
        %s456 = scalar_lea.vmem %s0, %s455
        %p457 = scmp.lt.s32.totalorder %s31, 3
        %s458 = scalar_select %p457, %s31, 3
        %s459 = smul.addr %s458, 2
        %s460 = smul.addr %s459, 8
        %s461 = scalar_lea.vmem %s11, %s460
        %v462 = vld [vmem:[%s456] sm:$0xff]
        %v463 = vld [vmem:[%s456 + $0x8] sm:$0xff]
        %v464 = vld [vmem:[%s1] sm:$0xff]
        %v465 = vld [vmem:[%s1 + $0x8] sm:$0xff]
        %v466 = vld [vmem:[%s1 + $0x10] sm:$0xff]
        %v467 = vld [vmem:[%s1 + $0x18] sm:$0xff]
        %v468 = vld [vmem:[%s1 + $0x20] sm:$0xff]
        %v469 = vld [vmem:[%s1 + $0x28] sm:$0xff]
        %v470 = vld [vmem:[%s1 + $0x30] sm:$0xff]
        %v471 = vld [vmem:[%s1 + $0x38] sm:$0xff]
        %v472 = vld [vmem:[%s1 + $0x40] sm:$0xff]
        %v473 = vld [vmem:[%s1 + $0x48] sm:$0xff]
        %v474 = vld [vmem:[%s1 + $0x50] sm:$0xff]
        %v475 = vld [vmem:[%s1 + $0x58] sm:$0xff]
        %v476 = vld [vmem:[%s1 + $0x60] sm:$0xff]
        %v477 = vld [vmem:[%s1 + $0x68] sm:$0xff]
        %v478 = vld [vmem:[%s1 + $0x70] sm:$0xff]
        %v479 = vld [vmem:[%s1 + $0x78] sm:$0xff]
        %v480 = vld [vmem:[%s2] sm:$0x1]
        %v482 = vlaneseq
        %v483 = vshrl.u32 %v482, 7
        %v484 = vsub.s32 0, %v483
        %v485 = vrot.slane %v480, %v484
        %487 = vmatprep.subr.mxu0 0.0
        %488 = vmatpush1.msra.mxu0 %v464
        %489 = vmatprep.subr.mxu0 0.0
        %490 = vmatpush1.msra.mxu0 %v465
        %491 = vmatprep.subr.mxu0 0.0
        %492 = vmatpush1.msra.mxu0 %v466
        %493 = vmatprep.subr.mxu0 0.0
        %494 = vmatpush1.msra.mxu0 %v467
        %495 = vmatprep.subr.mxu0 0.0
        %496 = vmatpush1.msra.mxu0 %v468
        %497 = vmatprep.subr.mxu0 0.0
        %498 = vmatpush1.msra.mxu0 %v469
        %499 = vmatprep.subr.mxu0 0.0
        %500 = vmatpush1.msra.mxu0 %v470
        %501 = vmatprep.subr.mxu0 0.0
        %502 = vmatpush1.msra.mxu0 %v471
        %503 = vmatprep.subr.mxu0 0.0
        %504 = vmatpush1.msra.mxu0 %v472
        %505 = vmatprep.subr.mxu0 0.0
        %506 = vmatpush1.msra.mxu0 %v473
        %507 = vmatprep.subr.mxu0 0.0
        %508 = vmatpush1.msra.mxu0 %v474
        %509 = vmatprep.subr.mxu0 0.0
        %510 = vmatpush1.msra.mxu0 %v475
        %511 = vmatprep.subr.mxu0 0.0
        %512 = vmatpush1.msra.mxu0 %v476
        %513 = vmatprep.subr.mxu0 0.0
        %514 = vmatpush1.msra.mxu0 %v477
        %515 = vmatprep.subr.mxu0 0.0
        %516 = vmatpush1.msra.mxu0 %v478
        %517 = vmatprep.subr.mxu0 0.0
        %518 = vmatpush1.msra.mxu0 %v479
        %519 = vmatprep.subr.mxu0 0.0
        %520 = vmatpush1.msra.mxu0 0.0
        %521 = vmatprep.subr.mxu0 0.0
        %522 = vmatpush1.msra.mxu0 0.0
        %523 = vmatprep.subr.mxu0 0.0
        %524 = vmatpush1.msra.mxu0 0.0
        %525 = vmatprep.subr.mxu0 0.0
        %526 = vmatpush1.msra.mxu0 0.0
        %527 = vmatprep.subr.mxu0 0.0
        %528 = vmatpush1.msra.mxu0 0.0
        %529 = vmatprep.subr.mxu0 0.0
        %530 = vmatpush1.msra.mxu0 0.0
        %531 = vmatprep.subr.mxu0 0.0
        %532 = vmatpush1.msra.mxu0 0.0
        %533 = vmatprep.subr.mxu0 0.0
        %534 = vmatpush1.msra.mxu0 0.0
        %535 = vmatprep.subr.mxu0 0.0
        %536 = vmatpush1.msra.mxu0 0.0
        %537 = vmatprep.subr.mxu0 0.0
        %538 = vmatpush1.msra.mxu0 0.0
        %539 = vmatprep.subr.mxu0 0.0
        %540 = vmatpush1.msra.mxu0 0.0
        %541 = vmatprep.subr.mxu0 0.0
        %542 = vmatpush1.msra.mxu0 0.0
        %543 = vmatprep.subr.mxu0 0.0
        %544 = vmatpush1.msra.mxu0 0.0
        %545 = vmatprep.subr.mxu0 0.0
        %546 = vmatpush1.msra.mxu0 0.0
        %547 = vmatprep.subr.mxu0 0.0
        %548 = vmatpush1.msra.mxu0 0.0
        %549 = vmatprep.subr.mxu0 0.0
        %550 = vmatpush1.msra.mxu0 0.0
        %551 = vmatprep.mubr.f32.mxu0 0.0
        %552 = vmatmul.mubr.f32.gmra.mrb[0].mxu0 %v462
        %v553 = vpop.f32.mrb[0].mxu0
        %v554 = vadd.f32 %v485, %v553
        %v555 = vpop.f32.mrb[0].mxu0
        %556 = vmatprep.mubr.f32.mxu0 0.0
        %557 = vmatmul.mubr.f32.gmra.mrb[0].mxu0 %v463
        %v558 = vpop.f32.mrb[0].mxu0
        %v559 = vadd.f32 %v485, %v558
        %v560 = vpop.f32.mrb[0].mxu0
        %561 = vdwg.mxu0
        %v562 = vld [vmem:[%s3] sm:$0xff]
        %v563 = vld [vmem:[%s3 + $0x8] sm:$0xff]
        %v564 = vld [vmem:[%s3 + $0x10] sm:$0xff]
        %v565 = vld [vmem:[%s3 + $0x18] sm:$0xff]
        %v566 = vld [vmem:[%s3 + $0x20] sm:$0xff]
        %v567 = vld [vmem:[%s3 + $0x28] sm:$0xff]
        %v568 = vld [vmem:[%s3 + $0x30] sm:$0xff]
        %v569 = vld [vmem:[%s3 + $0x38] sm:$0xff]
        %v570 = vld [vmem:[%s3 + $0x40] sm:$0xff]
        %v571 = vld [vmem:[%s3 + $0x48] sm:$0xff]
        %v572 = vld [vmem:[%s3 + $0x50] sm:$0xff]
        %v573 = vld [vmem:[%s3 + $0x58] sm:$0xff]
        %v574 = vld [vmem:[%s3 + $0x60] sm:$0xff]
        %v575 = vld [vmem:[%s3 + $0x68] sm:$0xff]
        %v576 = vld [vmem:[%s3 + $0x70] sm:$0xff]
        %v577 = vld [vmem:[%s3 + $0x78] sm:$0xff]
        %v578 = vld [vmem:[%s4] sm:$0x1]
        %v580 = vlaneseq
        %v581 = vshrl.u32 %v580, 7
        %v582 = vsub.s32 0, %v581
        %v583 = vrot.slane %v578, %v582
        %585 = vmatprep.subr.mxu0 0.0
        %586 = vmatpush1.msra.mxu0 %v562
        %587 = vmatprep.subr.mxu0 0.0
        %588 = vmatpush1.msra.mxu0 %v563
        %589 = vmatprep.subr.mxu0 0.0
        %590 = vmatpush1.msra.mxu0 %v564
        %591 = vmatprep.subr.mxu0 0.0
        %592 = vmatpush1.msra.mxu0 %v565
        %593 = vmatprep.subr.mxu0 0.0
        %594 = vmatpush1.msra.mxu0 %v566
        %595 = vmatprep.subr.mxu0 0.0
        %596 = vmatpush1.msra.mxu0 %v567
        %597 = vmatprep.subr.mxu0 0.0
        %598 = vmatpush1.msra.mxu0 %v568
        %599 = vmatprep.subr.mxu0 0.0
        %600 = vmatpush1.msra.mxu0 %v569
        %601 = vmatprep.subr.mxu0 0.0
        %602 = vmatpush1.msra.mxu0 %v570
        %603 = vmatprep.subr.mxu0 0.0
        %604 = vmatpush1.msra.mxu0 %v571
        %605 = vmatprep.subr.mxu0 0.0
        %606 = vmatpush1.msra.mxu0 %v572
        %607 = vmatprep.subr.mxu0 0.0
        %608 = vmatpush1.msra.mxu0 %v573
        %609 = vmatprep.subr.mxu0 0.0
        %610 = vmatpush1.msra.mxu0 %v574
        %611 = vmatprep.subr.mxu0 0.0
        %612 = vmatpush1.msra.mxu0 %v575
        %613 = vmatprep.subr.mxu0 0.0
        %614 = vmatpush1.msra.mxu0 %v576
        %615 = vmatprep.subr.mxu0 0.0
        %616 = vmatpush1.msra.mxu0 %v577
        %617 = vmatprep.subr.mxu0 0.0
        %618 = vmatpush1.msra.mxu0 0.0
        %619 = vmatprep.subr.mxu0 0.0
        %620 = vmatpush1.msra.mxu0 0.0
        %621 = vmatprep.subr.mxu0 0.0
        %622 = vmatpush1.msra.mxu0 0.0
        %623 = vmatprep.subr.mxu0 0.0
        %624 = vmatpush1.msra.mxu0 0.0
        %625 = vmatprep.subr.mxu0 0.0
        %626 = vmatpush1.msra.mxu0 0.0
        %627 = vmatprep.subr.mxu0 0.0
        %628 = vmatpush1.msra.mxu0 0.0
        %629 = vmatprep.subr.mxu0 0.0
        %630 = vmatpush1.msra.mxu0 0.0
        %631 = vmatprep.subr.mxu0 0.0
        %632 = vmatpush1.msra.mxu0 0.0
        %633 = vmatprep.subr.mxu0 0.0
        %634 = vmatpush1.msra.mxu0 0.0
        %635 = vmatprep.subr.mxu0 0.0
        %636 = vmatpush1.msra.mxu0 0.0
        %637 = vmatprep.subr.mxu0 0.0
        %638 = vmatpush1.msra.mxu0 0.0
        %639 = vmatprep.subr.mxu0 0.0
        %640 = vmatpush1.msra.mxu0 0.0
        %641 = vmatprep.subr.mxu0 0.0
        %642 = vmatpush1.msra.mxu0 0.0
        %643 = vmatprep.subr.mxu0 0.0
        %644 = vmatpush1.msra.mxu0 0.0
        %645 = vmatprep.subr.mxu0 0.0
        %646 = vmatpush1.msra.mxu0 0.0
        %647 = vmatprep.subr.mxu0 0.0
        %648 = vmatpush1.msra.mxu0 0.0
        %649 = vmatprep.mubr.f32.mxu0 0.0
        %650 = vmatmul.mubr.f32.gmra.mrb[0].mxu0 %v462
        %v651 = vpop.f32.mrb[0].mxu0
        %v652 = vadd.f32 %v583, %v651
        %v653 = vpop.f32.mrb[0].mxu0
        %654 = vmatprep.mubr.f32.mxu0 0.0
        %655 = vmatmul.mubr.f32.gmra.mrb[0].mxu0 %v463
        %v656 = vpop.f32.mrb[0].mxu0
        %v657 = vadd.f32 %v583, %v656
        %v658 = vpop.f32.mrb[0].mxu0
        %659 = vdwg.mxu0
        %v660 = vld [vmem:[%s5] sm:$0xff]
        %v661 = vld [vmem:[%s5 + $0x8] sm:$0xff]
        %v662 = vld [vmem:[%s5 + $0x10] sm:$0xff]
        %v663 = vld [vmem:[%s5 + $0x18] sm:$0xff]
        %v664 = vld [vmem:[%s5 + $0x20] sm:$0xff]
        %v665 = vld [vmem:[%s5 + $0x28] sm:$0xff]
        %v666 = vld [vmem:[%s5 + $0x30] sm:$0xff]
        %v667 = vld [vmem:[%s5 + $0x38] sm:$0xff]
        %v668 = vld [vmem:[%s5 + $0x40] sm:$0xff]
        %v669 = vld [vmem:[%s5 + $0x48] sm:$0xff]
        %v670 = vld [vmem:[%s5 + $0x50] sm:$0xff]
        %v671 = vld [vmem:[%s5 + $0x58] sm:$0xff]
        %v672 = vld [vmem:[%s5 + $0x60] sm:$0xff]
        %v673 = vld [vmem:[%s5 + $0x68] sm:$0xff]
        %v674 = vld [vmem:[%s5 + $0x70] sm:$0xff]
        %v675 = vld [vmem:[%s5 + $0x78] sm:$0xff]
        %v676 = vld [vmem:[%s6] sm:$0x1]
        %v678 = vlaneseq
        %v679 = vshrl.u32 %v678, 7
        %v680 = vsub.s32 0, %v679
        %v681 = vrot.slane %v676, %v680
        %683 = vmatprep.subr.mxu0 0.0
        %684 = vmatpush1.msra.mxu0 %v660
        %685 = vmatprep.subr.mxu0 0.0
        %686 = vmatpush1.msra.mxu0 %v661
        %687 = vmatprep.subr.mxu0 0.0
        %688 = vmatpush1.msra.mxu0 %v662
        %689 = vmatprep.subr.mxu0 0.0
        %690 = vmatpush1.msra.mxu0 %v663
        %691 = vmatprep.subr.mxu0 0.0
        %692 = vmatpush1.msra.mxu0 %v664
        %693 = vmatprep.subr.mxu0 0.0
        %694 = vmatpush1.msra.mxu0 %v665
        %695 = vmatprep.subr.mxu0 0.0
        %696 = vmatpush1.msra.mxu0 %v666
        %697 = vmatprep.subr.mxu0 0.0
        %698 = vmatpush1.msra.mxu0 %v667
        %699 = vmatprep.subr.mxu0 0.0
        %700 = vmatpush1.msra.mxu0 %v668
        %701 = vmatprep.subr.mxu0 0.0
        %702 = vmatpush1.msra.mxu0 %v669
        %703 = vmatprep.subr.mxu0 0.0
        %704 = vmatpush1.msra.mxu0 %v670
        %705 = vmatprep.subr.mxu0 0.0
        %706 = vmatpush1.msra.mxu0 %v671
        %707 = vmatprep.subr.mxu0 0.0
        %708 = vmatpush1.msra.mxu0 %v672
        %709 = vmatprep.subr.mxu0 0.0
        %710 = vmatpush1.msra.mxu0 %v673
        %711 = vmatprep.subr.mxu0 0.0
        %712 = vmatpush1.msra.mxu0 %v674
        %713 = vmatprep.subr.mxu0 0.0
        %714 = vmatpush1.msra.mxu0 %v675
        %715 = vmatprep.subr.mxu0 0.0
        %716 = vmatpush1.msra.mxu0 0.0
        %717 = vmatprep.subr.mxu0 0.0
        %718 = vmatpush1.msra.mxu0 0.0
        %719 = vmatprep.subr.mxu0 0.0
        %720 = vmatpush1.msra.mxu0 0.0
        %721 = vmatprep.subr.mxu0 0.0
        %722 = vmatpush1.msra.mxu0 0.0
        %723 = vmatprep.subr.mxu0 0.0
        %724 = vmatpush1.msra.mxu0 0.0
        %725 = vmatprep.subr.mxu0 0.0
        %726 = vmatpush1.msra.mxu0 0.0
        %727 = vmatprep.subr.mxu0 0.0
        %728 = vmatpush1.msra.mxu0 0.0
        %729 = vmatprep.subr.mxu0 0.0
        %730 = vmatpush1.msra.mxu0 0.0
        %731 = vmatprep.subr.mxu0 0.0
        %732 = vmatpush1.msra.mxu0 0.0
        %733 = vmatprep.subr.mxu0 0.0
        %734 = vmatpush1.msra.mxu0 0.0
        %735 = vmatprep.subr.mxu0 0.0
        %736 = vmatpush1.msra.mxu0 0.0
        %737 = vmatprep.subr.mxu0 0.0
        %738 = vmatpush1.msra.mxu0 0.0
        %739 = vmatprep.subr.mxu0 0.0
        %740 = vmatpush1.msra.mxu0 0.0
        %741 = vmatprep.subr.mxu0 0.0
        %742 = vmatpush1.msra.mxu0 0.0
        %743 = vmatprep.subr.mxu0 0.0
        %744 = vmatpush1.msra.mxu0 0.0
        %745 = vmatprep.subr.mxu0 0.0
        %746 = vmatpush1.msra.mxu0 0.0
        %747 = vmatprep.mubr.f32.mxu0 0.0
        %748 = vmatmul.mubr.f32.gmra.mrb[0].mxu0 %v462
        %v749 = vpop.f32.mrb[0].mxu0
        %v750 = vadd.f32 %v681, %v749
        %v751 = vpop.f32.mrb[0].mxu0
        %752 = vmatprep.mubr.f32.mxu0 0.0
        %753 = vmatmul.mubr.f32.gmra.mrb[0].mxu0 %v463
        %v754 = vpop.f32.mrb[0].mxu0
        %v755 = vadd.f32 %v681, %v754
        %v756 = vpop.f32.mrb[0].mxu0
        %757 = vdwg.mxu0
        %vm758 = vcmask 523264
        %759 = vst.msk [vmem:[%s444] sm:$0xff] %vm758, %v652
        %760 = vst.msk [vmem:[%s444 + $0x8] sm:$0xff] %vm758, %v657
        %761 = vst.msk [vmem:[%s451] sm:$0xff] %vm758, %v750
        %762 = vst.msk [vmem:[%s451 + $0x8] sm:$0xff] %vm758, %v755
        %v764 = vsel %vm758, %v554, 0
        %v767 = vsel %vm758, %v559, 0
        %v770 = vsel %vm758, %v652, 0
        %v773 = vsel %vm758, %v657, 0
        %775 = vmatprep.subr.mxu0 0.0
        %776 = vmatpush1.xpose.msra.mxu0 %v770
        %777 = vmatprep.subr.mxu0 0.0
        %778 = vmatpush1.xpose.msra.mxu0 %v773
        %779 = vmatprep.subr.mxu0 0.0
        %780 = vmatpush1.xpose.msra.mxu0 0.0
        %781 = vmatprep.subr.mxu0 0.0
        %782 = vmatpush1.xpose.msra.mxu0 0.0
        %783 = vmatprep.subr.mxu0 0.0
        %784 = vmatpush1.xpose.msra.mxu0 0.0
        %785 = vmatprep.subr.mxu0 0.0
        %786 = vmatpush1.xpose.msra.mxu0 0.0
        %787 = vmatprep.subr.mxu0 0.0
        %788 = vmatpush1.xpose.msra.mxu0 0.0
        %789 = vmatprep.subr.mxu0 0.0
        %790 = vmatpush1.xpose.msra.mxu0 0.0
        %791 = vmatprep.subr.mxu0 0.0
        %792 = vmatpush1.xpose.msra.mxu0 0.0
        %793 = vmatprep.subr.mxu0 0.0
        %794 = vmatpush1.xpose.msra.mxu0 0.0
        %795 = vmatprep.subr.mxu0 0.0
        %796 = vmatpush1.xpose.msra.mxu0 0.0
        %797 = vmatprep.subr.mxu0 0.0
        %798 = vmatpush1.xpose.msra.mxu0 0.0
        %799 = vmatprep.subr.mxu0 0.0
        %800 = vmatpush1.xpose.msra.mxu0 0.0
        %801 = vmatprep.subr.mxu0 0.0
        %802 = vmatpush1.xpose.msra.mxu0 0.0
        %803 = vmatprep.subr.mxu0 0.0
        %804 = vmatpush1.xpose.msra.mxu0 0.0
        %805 = vmatprep.subr.mxu0 0.0
        %806 = vmatpush1.xpose.msra.mxu0 0.0
        %807 = vmatprep.subr.mxu0 0.0
        %808 = vmatpush1.xpose.msra.mxu0 0.0
        %809 = vmatprep.subr.mxu0 0.0
        %810 = vmatpush1.xpose.msra.mxu0 0.0
        %811 = vmatprep.subr.mxu0 0.0
        %812 = vmatpush1.xpose.msra.mxu0 0.0
        %813 = vmatprep.subr.mxu0 0.0
        %814 = vmatpush1.xpose.msra.mxu0 0.0
        %815 = vmatprep.subr.mxu0 0.0
        %816 = vmatpush1.xpose.msra.mxu0 0.0
        %817 = vmatprep.subr.mxu0 0.0
        %818 = vmatpush1.xpose.msra.mxu0 0.0
        %819 = vmatprep.subr.mxu0 0.0
        %820 = vmatpush1.xpose.msra.mxu0 0.0
        %821 = vmatprep.subr.mxu0 0.0
        %822 = vmatpush1.xpose.msra.mxu0 0.0
        %823 = vmatprep.subr.mxu0 0.0
        %824 = vmatpush1.xpose.msra.mxu0 0.0
        %825 = vmatprep.subr.mxu0 0.0
        %826 = vmatpush1.xpose.msra.mxu0 0.0
        %827 = vmatprep.subr.mxu0 0.0
        %828 = vmatpush1.xpose.msra.mxu0 0.0
        %829 = vmatprep.subr.mxu0 0.0
        %830 = vmatpush1.xpose.msra.mxu0 0.0
        %831 = vmatprep.subr.mxu0 0.0
        %832 = vmatpush1.xpose.msra.mxu0 0.0
        %833 = vmatprep.subr.mxu0 0.0
        %834 = vmatpush1.xpose.msra.mxu0 0.0
        %835 = vmatprep.subr.mxu0 0.0
        %836 = vmatpush1.xpose.msra.mxu0 0.0
        %837 = vmatprep.subr.mxu0 0.0
        %838 = vmatpush1.xpose.msra.mxu0 0.0
        %839 = vmatprep.mubr.f32.mxu0 0.0
        %840 = vmatmul.mubr.f32.gmra.mrb[0].mxu0 %v764
        %v841 = vpop.f32.mrb[0].mxu0
        %v842 = vadd.f32 0.0, %v841
        %v843 = vpop.f32.mrb[0].mxu0
        %844 = vmatprep.mubr.f32.mxu0 0.0
        %845 = vmatmul.mubr.f32.gmra.mrb[0].mxu0 %v767
        %v846 = vpop.f32.mrb[0].mxu0
        %v847 = vadd.f32 0.0, %v846
        %v848 = vpop.f32.mrb[0].mxu0
        %849 = vdwg.mxu0
        %v850 = vmul.f32 %v842, 0.125
        %v851 = vmul.f32 %v847, 0.125
        %vm852 = vcmask 130048
        %v853 = vsel %vm852, %v850, -inf
        %854 = vmax.xlane.f32.xlu0 %v853
        %v855 = vpop.xlane.xlu0 %854
        %v856 = vsel %vm852, %v851, -inf
        %857 = vmax.xlane.f32.xlu0 %v856
        %v858 = vpop.xlane.xlu0 %857
        %v859 = vsub.f32 %v850, %v855
        %v860 = vsub.f32 %v851, %v858
        %v861 = vmul.f32 %v859, 1.442695
        %v862 = vpow.pop %v861
        %v863 = vmul.f32 %v860, 1.442695
        %v864 = vpow.pop %v863
        %v865 = vsel %vm852, %v862, 0.0
        %866 = vadd.xlane.f32.xlu0 %v865
        %v867 = vpop.xlane.xlu0 %866
        %v868 = vsel %vm852, %v864, 0.0
        %869 = vadd.xlane.f32.xlu0 %v868
        %v870 = vpop.xlane.xlu0 %869
        %v871 = vrcp.pop %v867
        %v872 = vmul.f32 %v862, %v871
        %v873 = vrcp.pop %v870
        %v874 = vmul.f32 %v864, %v873
        %v876 = vsel %vm852, %v872, 0
        %v879 = vsel %vm852, %v874, 0
        %881 = vmatprep.subr.mxu0 0.0
        %882 = vmatpush1.msra.mxu0 %v750
        %883 = vmatprep.subr.mxu0 0.0
        %884 = vmatpush1.msra.mxu0 %v755
        %885 = vmatprep.subr.mxu0 0.0
        %886 = vmatpush1.msra.mxu0 0.0
        %887 = vmatprep.subr.mxu0 0.0
        %888 = vmatpush1.msra.mxu0 0.0
        %889 = vmatprep.subr.mxu0 0.0
        %890 = vmatpush1.msra.mxu0 0.0
        %891 = vmatprep.subr.mxu0 0.0
        %892 = vmatpush1.msra.mxu0 0.0
        %893 = vmatprep.subr.mxu0 0.0
        %894 = vmatpush1.msra.mxu0 0.0
        %895 = vmatprep.subr.mxu0 0.0
        %896 = vmatpush1.msra.mxu0 0.0
        %897 = vmatprep.subr.mxu0 0.0
        %898 = vmatpush1.msra.mxu0 0.0
        %899 = vmatprep.subr.mxu0 0.0
        %900 = vmatpush1.msra.mxu0 0.0
        %901 = vmatprep.subr.mxu0 0.0
        %902 = vmatpush1.msra.mxu0 0.0
        %903 = vmatprep.subr.mxu0 0.0
        %904 = vmatpush1.msra.mxu0 0.0
        %905 = vmatprep.subr.mxu0 0.0
        %906 = vmatpush1.msra.mxu0 0.0
        %907 = vmatprep.subr.mxu0 0.0
        %908 = vmatpush1.msra.mxu0 0.0
        %909 = vmatprep.subr.mxu0 0.0
        %910 = vmatpush1.msra.mxu0 0.0
        %911 = vmatprep.subr.mxu0 0.0
        %912 = vmatpush1.msra.mxu0 0.0
        %913 = vmatprep.subr.mxu0 0.0
        %914 = vmatpush1.msra.mxu0 0.0
        %915 = vmatprep.subr.mxu0 0.0
        %916 = vmatpush1.msra.mxu0 0.0
        %917 = vmatprep.subr.mxu0 0.0
        %918 = vmatpush1.msra.mxu0 0.0
        %919 = vmatprep.subr.mxu0 0.0
        %920 = vmatpush1.msra.mxu0 0.0
        %921 = vmatprep.subr.mxu0 0.0
        %922 = vmatpush1.msra.mxu0 0.0
        %923 = vmatprep.subr.mxu0 0.0
        %924 = vmatpush1.msra.mxu0 0.0
        %925 = vmatprep.subr.mxu0 0.0
        %926 = vmatpush1.msra.mxu0 0.0
        %927 = vmatprep.subr.mxu0 0.0
        %928 = vmatpush1.msra.mxu0 0.0
        %929 = vmatprep.subr.mxu0 0.0
        %930 = vmatpush1.msra.mxu0 0.0
        %931 = vmatprep.subr.mxu0 0.0
        %932 = vmatpush1.msra.mxu0 0.0
        %933 = vmatprep.subr.mxu0 0.0
        %934 = vmatpush1.msra.mxu0 0.0
        %935 = vmatprep.subr.mxu0 0.0
        %936 = vmatpush1.msra.mxu0 0.0
        %937 = vmatprep.subr.mxu0 0.0
        %938 = vmatpush1.msra.mxu0 0.0
        %939 = vmatprep.subr.mxu0 0.0
        %940 = vmatpush1.msra.mxu0 0.0
        %941 = vmatprep.subr.mxu0 0.0
        %942 = vmatpush1.msra.mxu0 0.0
        %943 = vmatprep.subr.mxu0 0.0
        %944 = vmatpush1.msra.mxu0 0.0
        %945 = vmatprep.mubr.f32.mxu0 0.0
        %946 = vmatmul.mubr.f32.gmra.mrb[0].mxu0 %v876
        %v947 = vpop.f32.mrb[0].mxu0
        %v948 = vadd.f32 0.0, %v947
        %v949 = vpop.f32.mrb[0].mxu0
        %950 = vmatprep.mubr.f32.mxu0 0.0
        %951 = vmatmul.mubr.f32.gmra.mrb[0].mxu0 %v879
        %v952 = vpop.f32.mrb[0].mxu0
        %v953 = vadd.f32 0.0, %v952
        %v954 = vpop.f32.mrb[0].mxu0
        %955 = vdwg.mxu0
        %v956 = vld [vmem:[%s7] sm:$0xff]
        %v957 = vld [vmem:[%s7 + $0x8] sm:$0xff]
        %v958 = vld [vmem:[%s7 + $0x10] sm:$0xff]
        %v959 = vld [vmem:[%s7 + $0x18] sm:$0xff]
        %v960 = vld [vmem:[%s7 + $0x20] sm:$0xff]
        %v961 = vld [vmem:[%s7 + $0x28] sm:$0xff]
        %v962 = vld [vmem:[%s7 + $0x30] sm:$0xff]
        %v963 = vld [vmem:[%s7 + $0x38] sm:$0xff]
        %s964 = scalar_lea.vmem %s1, 128
        %v965 = vld [vmem:[%s964] sm:$0xff]
        %v966 = vld [vmem:[%s964 + $0x8] sm:$0xff]
        %v967 = vld [vmem:[%s964 + $0x10] sm:$0xff]
        %v968 = vld [vmem:[%s964 + $0x18] sm:$0xff]
        %v969 = vld [vmem:[%s964 + $0x20] sm:$0xff]
        %v970 = vld [vmem:[%s964 + $0x28] sm:$0xff]
        %v971 = vld [vmem:[%s964 + $0x30] sm:$0xff]
        %v972 = vld [vmem:[%s964 + $0x38] sm:$0xff]
        %v973 = vld [vmem:[%s964 + $0x40] sm:$0xff]
        %v974 = vld [vmem:[%s964 + $0x48] sm:$0xff]
        %v975 = vld [vmem:[%s964 + $0x50] sm:$0xff]
        %v976 = vld [vmem:[%s964 + $0x58] sm:$0xff]
        %v977 = vld [vmem:[%s964 + $0x60] sm:$0xff]
        %v978 = vld [vmem:[%s964 + $0x68] sm:$0xff]
        %v979 = vld [vmem:[%s964 + $0x70] sm:$0xff]
        %v980 = vld [vmem:[%s964 + $0x78] sm:$0xff]
        %s981 = scalar_lea.vmem %s2, 1
        %v982 = vld [vmem:[%s981] sm:$0x1]
        %v984 = vlaneseq
        %v985 = vshrl.u32 %v984, 7
        %v986 = vsub.s32 0, %v985
        %v987 = vrot.slane %v982, %v986
        %989 = vmatprep.subr.mxu0 0.0
        %990 = vmatpush1.msra.mxu0 %v965
        %991 = vmatprep.subr.mxu0 0.0
        %992 = vmatpush1.msra.mxu0 %v966
        %993 = vmatprep.subr.mxu0 0.0
        %994 = vmatpush1.msra.mxu0 %v967
        %995 = vmatprep.subr.mxu0 0.0
        %996 = vmatpush1.msra.mxu0 %v968
        %997 = vmatprep.subr.mxu0 0.0
        %998 = vmatpush1.msra.mxu0 %v969
        %999 = vmatprep.subr.mxu0 0.0
        %1000 = vmatpush1.msra.mxu0 %v970
        %1001 = vmatprep.subr.mxu0 0.0
        %1002 = vmatpush1.msra.mxu0 %v971
        %1003 = vmatprep.subr.mxu0 0.0
        %1004 = vmatpush1.msra.mxu0 %v972
        %1005 = vmatprep.subr.mxu0 0.0
        %1006 = vmatpush1.msra.mxu0 %v973
        %1007 = vmatprep.subr.mxu0 0.0
        %1008 = vmatpush1.msra.mxu0 %v974
        %1009 = vmatprep.subr.mxu0 0.0
        %1010 = vmatpush1.msra.mxu0 %v975
        %1011 = vmatprep.subr.mxu0 0.0
        %1012 = vmatpush1.msra.mxu0 %v976
        %1013 = vmatprep.subr.mxu0 0.0
        %1014 = vmatpush1.msra.mxu0 %v977
        %1015 = vmatprep.subr.mxu0 0.0
        %1016 = vmatpush1.msra.mxu0 %v978
        %1017 = vmatprep.subr.mxu0 0.0
        %1018 = vmatpush1.msra.mxu0 %v979
        %1019 = vmatprep.subr.mxu0 0.0
        %1020 = vmatpush1.msra.mxu0 %v980
        %1021 = vmatprep.subr.mxu0 0.0
        %1022 = vmatpush1.msra.mxu0 0.0
        %1023 = vmatprep.subr.mxu0 0.0
        %1024 = vmatpush1.msra.mxu0 0.0
        %1025 = vmatprep.subr.mxu0 0.0
        %1026 = vmatpush1.msra.mxu0 0.0
        %1027 = vmatprep.subr.mxu0 0.0
        %1028 = vmatpush1.msra.mxu0 0.0
        %1029 = vmatprep.subr.mxu0 0.0
        %1030 = vmatpush1.msra.mxu0 0.0
        %1031 = vmatprep.subr.mxu0 0.0
        %1032 = vmatpush1.msra.mxu0 0.0
        %1033 = vmatprep.subr.mxu0 0.0
        %1034 = vmatpush1.msra.mxu0 0.0
        %1035 = vmatprep.subr.mxu0 0.0
        %1036 = vmatpush1.msra.mxu0 0.0
        %1037 = vmatprep.subr.mxu0 0.0
        %1038 = vmatpush1.msra.mxu0 0.0
        %1039 = vmatprep.subr.mxu0 0.0
        %1040 = vmatpush1.msra.mxu0 0.0
        %1041 = vmatprep.subr.mxu0 0.0
        %1042 = vmatpush1.msra.mxu0 0.0
        %1043 = vmatprep.subr.mxu0 0.0
        %1044 = vmatpush1.msra.mxu0 0.0
        %1045 = vmatprep.subr.mxu0 0.0
        %1046 = vmatpush1.msra.mxu0 0.0
        %1047 = vmatprep.subr.mxu0 0.0
        %1048 = vmatpush1.msra.mxu0 0.0
        %1049 = vmatprep.subr.mxu0 0.0
        %1050 = vmatpush1.msra.mxu0 0.0
        %1051 = vmatprep.subr.mxu0 0.0
        %1052 = vmatpush1.msra.mxu0 0.0
        %1053 = vmatprep.mubr.f32.mxu0 0.0
        %1054 = vmatmul.mubr.f32.gmra.mrb[0].mxu0 %v462
        %v1055 = vpop.f32.mrb[0].mxu0
        %v1056 = vadd.f32 %v987, %v1055
        %v1057 = vpop.f32.mrb[0].mxu0
        %1058 = vmatprep.mubr.f32.mxu0 0.0
        %1059 = vmatmul.mubr.f32.gmra.mrb[0].mxu0 %v463
        %v1060 = vpop.f32.mrb[0].mxu0
        %v1061 = vadd.f32 %v987, %v1060
        %v1062 = vpop.f32.mrb[0].mxu0
        %1063 = vdwg.mxu0
        %s1064 = scalar_lea.vmem %s3, 128
        %v1065 = vld [vmem:[%s1064] sm:$0xff]
        %v1066 = vld [vmem:[%s1064 + $0x8] sm:$0xff]
        %v1067 = vld [vmem:[%s1064 + $0x10] sm:$0xff]
        %v1068 = vld [vmem:[%s1064 + $0x18] sm:$0xff]
        %v1069 = vld [vmem:[%s1064 + $0x20] sm:$0xff]
        %v1070 = vld [vmem:[%s1064 + $0x28] sm:$0xff]
        %v1071 = vld [vmem:[%s1064 + $0x30] sm:$0xff]
        %v1072 = vld [vmem:[%s1064 + $0x38] sm:$0xff]
        %v1073 = vld [vmem:[%s1064 + $0x40] sm:$0xff]
        %v1074 = vld [vmem:[%s1064 + $0x48] sm:$0xff]
        %v1075 = vld [vmem:[%s1064 + $0x50] sm:$0xff]
        %v1076 = vld [vmem:[%s1064 + $0x58] sm:$0xff]
        %v1077 = vld [vmem:[%s1064 + $0x60] sm:$0xff]
        %v1078 = vld [vmem:[%s1064 + $0x68] sm:$0xff]
        %v1079 = vld [vmem:[%s1064 + $0x70] sm:$0xff]
        %v1080 = vld [vmem:[%s1064 + $0x78] sm:$0xff]
        %s1081 = scalar_lea.vmem %s4, 1
        %v1082 = vld [vmem:[%s1081] sm:$0x1]
        %v1084 = vlaneseq
        %v1085 = vshrl.u32 %v1084, 7
        %v1086 = vsub.s32 0, %v1085
        %v1087 = vrot.slane %v1082, %v1086
        %1089 = vmatprep.subr.mxu0 0.0
        %1090 = vmatpush1.msra.mxu0 %v1065
        %1091 = vmatprep.subr.mxu0 0.0
        %1092 = vmatpush1.msra.mxu0 %v1066
        %1093 = vmatprep.subr.mxu0 0.0
        %1094 = vmatpush1.msra.mxu0 %v1067
        %1095 = vmatprep.subr.mxu0 0.0
        %1096 = vmatpush1.msra.mxu0 %v1068
        %1097 = vmatprep.subr.mxu0 0.0
        %1098 = vmatpush1.msra.mxu0 %v1069
        %1099 = vmatprep.subr.mxu0 0.0
        %1100 = vmatpush1.msra.mxu0 %v1070
        %1101 = vmatprep.subr.mxu0 0.0
        %1102 = vmatpush1.msra.mxu0 %v1071
        %1103 = vmatprep.subr.mxu0 0.0
        %1104 = vmatpush1.msra.mxu0 %v1072
        %1105 = vmatprep.subr.mxu0 0.0
        %1106 = vmatpush1.msra.mxu0 %v1073
        %1107 = vmatprep.subr.mxu0 0.0
        %1108 = vmatpush1.msra.mxu0 %v1074
        %1109 = vmatprep.subr.mxu0 0.0
        %1110 = vmatpush1.msra.mxu0 %v1075
        %1111 = vmatprep.subr.mxu0 0.0
        %1112 = vmatpush1.msra.mxu0 %v1076
        %1113 = vmatprep.subr.mxu0 0.0
        %1114 = vmatpush1.msra.mxu0 %v1077
        %1115 = vmatprep.subr.mxu0 0.0
        %1116 = vmatpush1.msra.mxu0 %v1078
        %1117 = vmatprep.subr.mxu0 0.0
        %1118 = vmatpush1.msra.mxu0 %v1079
        %1119 = vmatprep.subr.mxu0 0.0
        %1120 = vmatpush1.msra.mxu0 %v1080
        %1121 = vmatprep.subr.mxu0 0.0
        %1122 = vmatpush1.msra.mxu0 0.0
        %1123 = vmatprep.subr.mxu0 0.0
        %1124 = vmatpush1.msra.mxu0 0.0
        %1125 = vmatprep.subr.mxu0 0.0
        %1126 = vmatpush1.msra.mxu0 0.0
        %1127 = vmatprep.subr.mxu0 0.0
        %1128 = vmatpush1.msra.mxu0 0.0
        %1129 = vmatprep.subr.mxu0 0.0
        %1130 = vmatpush1.msra.mxu0 0.0
        %1131 = vmatprep.subr.mxu0 0.0
        %1132 = vmatpush1.msra.mxu0 0.0
        %1133 = vmatprep.subr.mxu0 0.0
        %1134 = vmatpush1.msra.mxu0 0.0
        %1135 = vmatprep.subr.mxu0 0.0
        %1136 = vmatpush1.msra.mxu0 0.0
        %1137 = vmatprep.subr.mxu0 0.0
        %1138 = vmatpush1.msra.mxu0 0.0
        %1139 = vmatprep.subr.mxu0 0.0
        %1140 = vmatpush1.msra.mxu0 0.0
        %1141 = vmatprep.subr.mxu0 0.0
        %1142 = vmatpush1.msra.mxu0 0.0
        %1143 = vmatprep.subr.mxu0 0.0
        %1144 = vmatpush1.msra.mxu0 0.0
        %1145 = vmatprep.subr.mxu0 0.0
        %1146 = vmatpush1.msra.mxu0 0.0
        %1147 = vmatprep.subr.mxu0 0.0
        %1148 = vmatpush1.msra.mxu0 0.0
        %1149 = vmatprep.subr.mxu0 0.0
        %1150 = vmatpush1.msra.mxu0 0.0
        %1151 = vmatprep.subr.mxu0 0.0
        %1152 = vmatpush1.msra.mxu0 0.0
        %1153 = vmatprep.mubr.f32.mxu0 0.0
        %1154 = vmatmul.mubr.f32.gmra.mrb[0].mxu0 %v462
        %v1155 = vpop.f32.mrb[0].mxu0
        %v1156 = vadd.f32 %v1087, %v1155
        %v1157 = vpop.f32.mrb[0].mxu0
        %1158 = vmatprep.mubr.f32.mxu0 0.0
        %1159 = vmatmul.mubr.f32.gmra.mrb[0].mxu0 %v463
        %v1160 = vpop.f32.mrb[0].mxu0
        %v1161 = vadd.f32 %v1087, %v1160
        %v1162 = vpop.f32.mrb[0].mxu0
        %1163 = vdwg.mxu0
        %s1164 = scalar_lea.vmem %s5, 128
        %v1165 = vld [vmem:[%s1164] sm:$0xff]
        %v1166 = vld [vmem:[%s1164 + $0x8] sm:$0xff]
        %v1167 = vld [vmem:[%s1164 + $0x10] sm:$0xff]
        %v1168 = vld [vmem:[%s1164 + $0x18] sm:$0xff]
        %v1169 = vld [vmem:[%s1164 + $0x20] sm:$0xff]
        %v1170 = vld [vmem:[%s1164 + $0x28] sm:$0xff]
        %v1171 = vld [vmem:[%s1164 + $0x30] sm:$0xff]
        %v1172 = vld [vmem:[%s1164 + $0x38] sm:$0xff]
        %v1173 = vld [vmem:[%s1164 + $0x40] sm:$0xff]
        %v1174 = vld [vmem:[%s1164 + $0x48] sm:$0xff]
        %v1175 = vld [vmem:[%s1164 + $0x50] sm:$0xff]
        %v1176 = vld [vmem:[%s1164 + $0x58] sm:$0xff]
        %v1177 = vld [vmem:[%s1164 + $0x60] sm:$0xff]
        %v1178 = vld [vmem:[%s1164 + $0x68] sm:$0xff]
        %v1179 = vld [vmem:[%s1164 + $0x70] sm:$0xff]
        %v1180 = vld [vmem:[%s1164 + $0x78] sm:$0xff]
        %s1181 = scalar_lea.vmem %s6, 1
        %v1182 = vld [vmem:[%s1181] sm:$0x1]
        %v1184 = vlaneseq
        %v1185 = vshrl.u32 %v1184, 7
        %v1186 = vsub.s32 0, %v1185
        %v1187 = vrot.slane %v1182, %v1186
        %1189 = vmatprep.subr.mxu0 0.0
        %1190 = vmatpush1.msra.mxu0 %v1165
        %1191 = vmatprep.subr.mxu0 0.0
        %1192 = vmatpush1.msra.mxu0 %v1166
        %1193 = vmatprep.subr.mxu0 0.0
        %1194 = vmatpush1.msra.mxu0 %v1167
        %1195 = vmatprep.subr.mxu0 0.0
        %1196 = vmatpush1.msra.mxu0 %v1168
        %1197 = vmatprep.subr.mxu0 0.0
        %1198 = vmatpush1.msra.mxu0 %v1169
        %1199 = vmatprep.subr.mxu0 0.0
        %1200 = vmatpush1.msra.mxu0 %v1170
        %1201 = vmatprep.subr.mxu0 0.0
        %1202 = vmatpush1.msra.mxu0 %v1171
        %1203 = vmatprep.subr.mxu0 0.0
        %1204 = vmatpush1.msra.mxu0 %v1172
        %1205 = vmatprep.subr.mxu0 0.0
        %1206 = vmatpush1.msra.mxu0 %v1173
        %1207 = vmatprep.subr.mxu0 0.0
        %1208 = vmatpush1.msra.mxu0 %v1174
        %1209 = vmatprep.subr.mxu0 0.0
        %1210 = vmatpush1.msra.mxu0 %v1175
        %1211 = vmatprep.subr.mxu0 0.0
        %1212 = vmatpush1.msra.mxu0 %v1176
        %1213 = vmatprep.subr.mxu0 0.0
        %1214 = vmatpush1.msra.mxu0 %v1177
        %1215 = vmatprep.subr.mxu0 0.0
        %1216 = vmatpush1.msra.mxu0 %v1178
        %1217 = vmatprep.subr.mxu0 0.0
        %1218 = vmatpush1.msra.mxu0 %v1179
        %1219 = vmatprep.subr.mxu0 0.0
        %1220 = vmatpush1.msra.mxu0 %v1180
        %1221 = vmatprep.subr.mxu0 0.0
        %1222 = vmatpush1.msra.mxu0 0.0
        %1223 = vmatprep.subr.mxu0 0.0
        %1224 = vmatpush1.msra.mxu0 0.0
        %1225 = vmatprep.subr.mxu0 0.0
        %1226 = vmatpush1.msra.mxu0 0.0
        %1227 = vmatprep.subr.mxu0 0.0
        %1228 = vmatpush1.msra.mxu0 0.0
        %1229 = vmatprep.subr.mxu0 0.0
        %1230 = vmatpush1.msra.mxu0 0.0
        %1231 = vmatprep.subr.mxu0 0.0
        %1232 = vmatpush1.msra.mxu0 0.0
        %1233 = vmatprep.subr.mxu0 0.0
        %1234 = vmatpush1.msra.mxu0 0.0
        %1235 = vmatprep.subr.mxu0 0.0
        %1236 = vmatpush1.msra.mxu0 0.0
        %1237 = vmatprep.subr.mxu0 0.0
        %1238 = vmatpush1.msra.mxu0 0.0
        %1239 = vmatprep.subr.mxu0 0.0
        %1240 = vmatpush1.msra.mxu0 0.0
        %1241 = vmatprep.subr.mxu0 0.0
        %1242 = vmatpush1.msra.mxu0 0.0
        %1243 = vmatprep.subr.mxu0 0.0
        %1244 = vmatpush1.msra.mxu0 0.0
        %1245 = vmatprep.subr.mxu0 0.0
        %1246 = vmatpush1.msra.mxu0 0.0
        %1247 = vmatprep.subr.mxu0 0.0
        %1248 = vmatpush1.msra.mxu0 0.0
        %1249 = vmatprep.subr.mxu0 0.0
        %1250 = vmatpush1.msra.mxu0 0.0
        %1251 = vmatprep.subr.mxu0 0.0
        %1252 = vmatpush1.msra.mxu0 0.0
        %1253 = vmatprep.mubr.f32.mxu0 0.0
        %1254 = vmatmul.mubr.f32.gmra.mrb[0].mxu0 %v462
        %v1255 = vpop.f32.mrb[0].mxu0
        %v1256 = vadd.f32 %v1187, %v1255
        %v1257 = vpop.f32.mrb[0].mxu0
        %1258 = vmatprep.mubr.f32.mxu0 0.0
        %1259 = vmatmul.mubr.f32.gmra.mrb[0].mxu0 %v463
        %v1260 = vpop.f32.mrb[0].mxu0
        %v1261 = vadd.f32 %v1187, %v1260
        %v1262 = vpop.f32.mrb[0].mxu0
        %1263 = vdwg.mxu0
        %s1264 = scalar_lea.vmem %s444, 16 [#allocation2]
        %1265 = vst.msk [vmem:[%s1264] sm:$0xff] %vm758, %v1156
        %1266 = vst.msk [vmem:[%s1264 + $0x8] sm:$0xff] %vm758, %v1161
        %s1267 = scalar_lea.vmem %s451, 16 [#allocation4]
        %1268 = vst.msk [vmem:[%s1267] sm:$0xff] %vm758, %v1256
        %1269 = vst.msk [vmem:[%s1267 + $0x8] sm:$0xff] %vm758, %v1261
        %v1271 = vsel %vm758, %v1056, 0
        %v1274 = vsel %vm758, %v1061, 0
        %v1277 = vsel %vm758, %v1156, 0
        %v1280 = vsel %vm758, %v1161, 0
        %1282 = vmatprep.subr.mxu0 0.0
        %1283 = vmatpush1.xpose.msra.mxu0 %v1277
        %1284 = vmatprep.subr.mxu0 0.0
        %1285 = vmatpush1.xpose.msra.mxu0 %v1280
        %1286 = vmatprep.subr.mxu0 0.0
        %1287 = vmatpush1.xpose.msra.mxu0 0.0
        %1288 = vmatprep.subr.mxu0 0.0
        %1289 = vmatpush1.xpose.msra.mxu0 0.0
        %1290 = vmatprep.subr.mxu0 0.0
        %1291 = vmatpush1.xpose.msra.mxu0 0.0
        %1292 = vmatprep.subr.mxu0 0.0
        %1293 = vmatpush1.xpose.msra.mxu0 0.0
        %1294 = vmatprep.subr.mxu0 0.0
        %1295 = vmatpush1.xpose.msra.mxu0 0.0
        %1296 = vmatprep.subr.mxu0 0.0
        %1297 = vmatpush1.xpose.msra.mxu0 0.0
        %1298 = vmatprep.subr.mxu0 0.0
        %1299 = vmatpush1.xpose.msra.mxu0 0.0
        %1300 = vmatprep.subr.mxu0 0.0
        %1301 = vmatpush1.xpose.msra.mxu0 0.0
        %1302 = vmatprep.subr.mxu0 0.0
        %1303 = vmatpush1.xpose.msra.mxu0 0.0
        %1304 = vmatprep.subr.mxu0 0.0
        %1305 = vmatpush1.xpose.msra.mxu0 0.0
        %1306 = vmatprep.subr.mxu0 0.0
        %1307 = vmatpush1.xpose.msra.mxu0 0.0
        %1308 = vmatprep.subr.mxu0 0.0
        %1309 = vmatpush1.xpose.msra.mxu0 0.0
        %1310 = vmatprep.subr.mxu0 0.0
        %1311 = vmatpush1.xpose.msra.mxu0 0.0
        %1312 = vmatprep.subr.mxu0 0.0
        %1313 = vmatpush1.xpose.msra.mxu0 0.0
        %1314 = vmatprep.subr.mxu0 0.0
        %1315 = vmatpush1.xpose.msra.mxu0 0.0
        %1316 = vmatprep.subr.mxu0 0.0
        %1317 = vmatpush1.xpose.msra.mxu0 0.0
        %1318 = vmatprep.subr.mxu0 0.0
        %1319 = vmatpush1.xpose.msra.mxu0 0.0
        %1320 = vmatprep.subr.mxu0 0.0
        %1321 = vmatpush1.xpose.msra.mxu0 0.0
        %1322 = vmatprep.subr.mxu0 0.0
        %1323 = vmatpush1.xpose.msra.mxu0 0.0
        %1324 = vmatprep.subr.mxu0 0.0
        %1325 = vmatpush1.xpose.msra.mxu0 0.0
        %1326 = vmatprep.subr.mxu0 0.0
        %1327 = vmatpush1.xpose.msra.mxu0 0.0
        %1328 = vmatprep.subr.mxu0 0.0
        %1329 = vmatpush1.xpose.msra.mxu0 0.0
        %1330 = vmatprep.subr.mxu0 0.0
        %1331 = vmatpush1.xpose.msra.mxu0 0.0
        %1332 = vmatprep.subr.mxu0 0.0
        %1333 = vmatpush1.xpose.msra.mxu0 0.0
        %1334 = vmatprep.subr.mxu0 0.0
        %1335 = vmatpush1.xpose.msra.mxu0 0.0
        %1336 = vmatprep.subr.mxu0 0.0
        %1337 = vmatpush1.xpose.msra.mxu0 0.0
        %1338 = vmatprep.subr.mxu0 0.0
        %1339 = vmatpush1.xpose.msra.mxu0 0.0
        %1340 = vmatprep.subr.mxu0 0.0
        %1341 = vmatpush1.xpose.msra.mxu0 0.0
        %1342 = vmatprep.subr.mxu0 0.0
        %1343 = vmatpush1.xpose.msra.mxu0 0.0
        %1344 = vmatprep.subr.mxu0 0.0
        %1345 = vmatpush1.xpose.msra.mxu0 0.0
        %1346 = vmatprep.mubr.f32.mxu0 0.0
        %1347 = vmatmul.mubr.f32.gmra.mrb[0].mxu0 %v1271
        %v1348 = vpop.f32.mrb[0].mxu0
        %v1349 = vadd.f32 0.0, %v1348
        %v1350 = vpop.f32.mrb[0].mxu0
        %1351 = vmatprep.mubr.f32.mxu0 0.0
        %1352 = vmatmul.mubr.f32.gmra.mrb[0].mxu0 %v1274
        %v1353 = vpop.f32.mrb[0].mxu0
        %v1354 = vadd.f32 0.0, %v1353
        %v1355 = vpop.f32.mrb[0].mxu0
        %1356 = vdwg.mxu0
        %v1357 = vmul.f32 %v1349, 0.125
        %v1358 = vmul.f32 %v1354, 0.125
        %v1359 = vsel %vm852, %v1357, -inf
        %1360 = vmax.xlane.f32.xlu0 %v1359
        %v1361 = vpop.xlane.xlu0 %1360
        %v1362 = vsel %vm852, %v1358, -inf
        %1363 = vmax.xlane.f32.xlu0 %v1362
        %v1364 = vpop.xlane.xlu0 %1363
        %v1365 = vsub.f32 %v1357, %v1361
        %v1366 = vsub.f32 %v1358, %v1364
        %v1367 = vmul.f32 %v1365, 1.442695
        %v1368 = vpow.pop %v1367
        %v1369 = vmul.f32 %v1366, 1.442695
        %v1370 = vpow.pop %v1369
        %v1371 = vsel %vm852, %v1368, 0.0
        %1372 = vadd.xlane.f32.xlu0 %v1371
        %v1373 = vpop.xlane.xlu0 %1372
        %v1374 = vsel %vm852, %v1370, 0.0
        %1375 = vadd.xlane.f32.xlu0 %v1374
        %v1376 = vpop.xlane.xlu0 %1375
        %v1377 = vrcp.pop %v1373
        %v1378 = vmul.f32 %v1368, %v1377
        %v1379 = vrcp.pop %v1376
        %v1380 = vmul.f32 %v1370, %v1379
        %v1382 = vsel %vm852, %v1378, 0
        %v1385 = vsel %vm852, %v1380, 0
        %1387 = vmatprep.subr.mxu0 0.0
        %1388 = vmatpush1.msra.mxu0 %v1256
        %1389 = vmatprep.subr.mxu0 0.0
        %1390 = vmatpush1.msra.mxu0 %v1261
        %1391 = vmatprep.subr.mxu0 0.0
        %1392 = vmatpush1.msra.mxu0 0.0
        %1393 = vmatprep.subr.mxu0 0.0
        %1394 = vmatpush1.msra.mxu0 0.0
        %1395 = vmatprep.subr.mxu0 0.0
        %1396 = vmatpush1.msra.mxu0 0.0
        %1397 = vmatprep.subr.mxu0 0.0
        %1398 = vmatpush1.msra.mxu0 0.0
        %1399 = vmatprep.subr.mxu0 0.0
        %1400 = vmatpush1.msra.mxu0 0.0
        %1401 = vmatprep.subr.mxu0 0.0
        %1402 = vmatpush1.msra.mxu0 0.0
        %1403 = vmatprep.subr.mxu0 0.0
        %1404 = vmatpush1.msra.mxu0 0.0
        %1405 = vmatprep.subr.mxu0 0.0
        %1406 = vmatpush1.msra.mxu0 0.0
        %1407 = vmatprep.subr.mxu0 0.0
        %1408 = vmatpush1.msra.mxu0 0.0
        %1409 = vmatprep.subr.mxu0 0.0
        %1410 = vmatpush1.msra.mxu0 0.0
        %1411 = vmatprep.subr.mxu0 0.0
        %1412 = vmatpush1.msra.mxu0 0.0
        %1413 = vmatprep.subr.mxu0 0.0
        %1414 = vmatpush1.msra.mxu0 0.0
        %1415 = vmatprep.subr.mxu0 0.0
        %1416 = vmatpush1.msra.mxu0 0.0
        %1417 = vmatprep.subr.mxu0 0.0
        %1418 = vmatpush1.msra.mxu0 0.0
        %1419 = vmatprep.subr.mxu0 0.0
        %1420 = vmatpush1.msra.mxu0 0.0
        %1421 = vmatprep.subr.mxu0 0.0
        %1422 = vmatpush1.msra.mxu0 0.0
        %1423 = vmatprep.subr.mxu0 0.0
        %1424 = vmatpush1.msra.mxu0 0.0
        %1425 = vmatprep.subr.mxu0 0.0
        %1426 = vmatpush1.msra.mxu0 0.0
        %1427 = vmatprep.subr.mxu0 0.0
        %1428 = vmatpush1.msra.mxu0 0.0
        %1429 = vmatprep.subr.mxu0 0.0
        %1430 = vmatpush1.msra.mxu0 0.0
        %1431 = vmatprep.subr.mxu0 0.0
        %1432 = vmatpush1.msra.mxu0 0.0
        %1433 = vmatprep.subr.mxu0 0.0
        %1434 = vmatpush1.msra.mxu0 0.0
        %1435 = vmatprep.subr.mxu0 0.0
        %1436 = vmatpush1.msra.mxu0 0.0
        %1437 = vmatprep.subr.mxu0 0.0
        %1438 = vmatpush1.msra.mxu0 0.0
        %1439 = vmatprep.subr.mxu0 0.0
        %1440 = vmatpush1.msra.mxu0 0.0
        %1441 = vmatprep.subr.mxu0 0.0
        %1442 = vmatpush1.msra.mxu0 0.0
        %1443 = vmatprep.subr.mxu0 0.0
        %1444 = vmatpush1.msra.mxu0 0.0
        %1445 = vmatprep.subr.mxu0 0.0
        %1446 = vmatpush1.msra.mxu0 0.0
        %1447 = vmatprep.subr.mxu0 0.0
        %1448 = vmatpush1.msra.mxu0 0.0
        %1449 = vmatprep.subr.mxu0 0.0
        %1450 = vmatpush1.msra.mxu0 0.0
        %1451 = vmatprep.mubr.f32.mxu0 0.0
        %1452 = vmatmul.mubr.f32.gmra.mrb[0].mxu0 %v1382
        %v1453 = vpop.f32.mrb[0].mxu0
        %v1454 = vadd.f32 0.0, %v1453
        %v1455 = vpop.f32.mrb[0].mxu0
        %1456 = vmatprep.mubr.f32.mxu0 0.0
        %1457 = vmatmul.mubr.f32.gmra.mrb[0].mxu0 %v1385
        %v1458 = vpop.f32.mrb[0].mxu0
        %v1459 = vadd.f32 0.0, %v1458
        %v1460 = vpop.f32.mrb[0].mxu0
        %1461 = vdwg.mxu0
        %s1462 = scalar_lea.vmem %s7, 64
        %v1463 = vld [vmem:[%s1462] sm:$0xff]
        %v1464 = vld [vmem:[%s1462 + $0x8] sm:$0xff]
        %v1465 = vld [vmem:[%s1462 + $0x10] sm:$0xff]
        %v1466 = vld [vmem:[%s1462 + $0x18] sm:$0xff]
        %v1467 = vld [vmem:[%s1462 + $0x20] sm:$0xff]
        %v1468 = vld [vmem:[%s1462 + $0x28] sm:$0xff]
        %v1469 = vld [vmem:[%s1462 + $0x30] sm:$0xff]
        %v1470 = vld [vmem:[%s1462 + $0x38] sm:$0xff]
        %v1472 = vsel %vm758, %v1454, 0
        %v1475 = vsel %vm758, %v1459, 0
        %1477 = vmatprep.subr.mxu0 0.0
        %1478 = vmatpush1.msra.mxu0 %v1463
        %1479 = vmatprep.subr.mxu0 0.0
        %1480 = vmatpush1.msra.mxu0 %v1464
        %1481 = vmatprep.subr.mxu0 0.0
        %1482 = vmatpush1.msra.mxu0 %v1465
        %1483 = vmatprep.subr.mxu0 0.0
        %1484 = vmatpush1.msra.mxu0 %v1466
        %1485 = vmatprep.subr.mxu0 0.0
        %1486 = vmatpush1.msra.mxu0 %v1467
        %1487 = vmatprep.subr.mxu0 0.0
        %1488 = vmatpush1.msra.mxu0 %v1468
        %1489 = vmatprep.subr.mxu0 0.0
        %1490 = vmatpush1.msra.mxu0 %v1469
        %1491 = vmatprep.subr.mxu0 0.0
        %1492 = vmatpush1.msra.mxu0 %v1470
        %1493 = vmatprep.subr.mxu0 0.0
        %1494 = vmatpush1.msra.mxu0 0.0
        %1495 = vmatprep.subr.mxu0 0.0
        %1496 = vmatpush1.msra.mxu0 0.0
        %1497 = vmatprep.subr.mxu0 0.0
        %1498 = vmatpush1.msra.mxu0 0.0
        %1499 = vmatprep.subr.mxu0 0.0
        %1500 = vmatpush1.msra.mxu0 0.0
        %1501 = vmatprep.subr.mxu0 0.0
        %1502 = vmatpush1.msra.mxu0 0.0
        %1503 = vmatprep.subr.mxu0 0.0
        %1504 = vmatpush1.msra.mxu0 0.0
        %1505 = vmatprep.subr.mxu0 0.0
        %1506 = vmatpush1.msra.mxu0 0.0
        %1507 = vmatprep.subr.mxu0 0.0
        %1508 = vmatpush1.msra.mxu0 0.0
        %1509 = vmatprep.subr.mxu0 0.0
        %1510 = vmatpush1.msra.mxu0 0.0
        %1511 = vmatprep.subr.mxu0 0.0
        %1512 = vmatpush1.msra.mxu0 0.0
        %1513 = vmatprep.subr.mxu0 0.0
        %1514 = vmatpush1.msra.mxu0 0.0
        %1515 = vmatprep.subr.mxu0 0.0
        %1516 = vmatpush1.msra.mxu0 0.0
        %1517 = vmatprep.subr.mxu0 0.0
        %1518 = vmatpush1.msra.mxu0 0.0
        %1519 = vmatprep.subr.mxu0 0.0
        %1520 = vmatpush1.msra.mxu0 0.0
        %1521 = vmatprep.subr.mxu0 0.0
        %1522 = vmatpush1.msra.mxu0 0.0
        %1523 = vmatprep.subr.mxu0 0.0
        %1524 = vmatpush1.msra.mxu0 0.0
        %1525 = vmatprep.subr.mxu0 0.0
        %1526 = vmatpush1.msra.mxu0 0.0
        %1527 = vmatprep.subr.mxu0 0.0
        %1528 = vmatpush1.msra.mxu0 0.0
        %1529 = vmatprep.subr.mxu0 0.0
        %1530 = vmatpush1.msra.mxu0 0.0
        %1531 = vmatprep.subr.mxu0 0.0
        %1532 = vmatpush1.msra.mxu0 0.0
        %1533 = vmatprep.subr.mxu0 0.0
        %1534 = vmatpush1.msra.mxu0 0.0
        %1535 = vmatprep.subr.mxu0 0.0
        %1536 = vmatpush1.msra.mxu0 0.0
        %1537 = vmatprep.subr.mxu0 0.0
        %1538 = vmatpush1.msra.mxu0 0.0
        %1539 = vmatprep.subr.mxu0 0.0
        %1540 = vmatpush1.msra.mxu0 0.0
        %1541 = vmatprep.mubr.f32.mxu0 0.0
        %1542 = vmatmul.mubr.f32.gmra.mrb[0].mxu0 %v1472
        %v1543 = vpop.f32.mrb[0].mxu0
        %v1544 = vadd.f32 0.0, %v1543
        %v1545 = vpop.f32.mrb[0].mxu0
        %1546 = vmatprep.mubr.f32.mxu0 0.0
        %1547 = vmatmul.mubr.f32.gmra.mrb[0].mxu0 %v1475
        %v1548 = vpop.f32.mrb[0].mxu0
        %v1549 = vadd.f32 0.0, %v1548
        %v1550 = vpop.f32.mrb[0].mxu0
        %1551 = vdwg.mxu0
        %v1553 = vsel %vm758, %v948, 0
        %v1556 = vsel %vm758, %v953, 0
        %1558 = vmatprep.subr.mxu0 0.0
        %1559 = vmatpush1.msra.mxu0 %v956
        %1560 = vmatprep.subr.mxu0 0.0
        %1561 = vmatpush1.msra.mxu0 %v957
        %1562 = vmatprep.subr.mxu0 0.0
        %1563 = vmatpush1.msra.mxu0 %v958
        %1564 = vmatprep.subr.mxu0 0.0
        %1565 = vmatpush1.msra.mxu0 %v959
        %1566 = vmatprep.subr.mxu0 0.0
        %1567 = vmatpush1.msra.mxu0 %v960
        %1568 = vmatprep.subr.mxu0 0.0
        %1569 = vmatpush1.msra.mxu0 %v961
        %1570 = vmatprep.subr.mxu0 0.0
        %1571 = vmatpush1.msra.mxu0 %v962
        %1572 = vmatprep.subr.mxu0 0.0
        %1573 = vmatpush1.msra.mxu0 %v963
        %1574 = vmatprep.subr.mxu0 0.0
        %1575 = vmatpush1.msra.mxu0 0.0
        %1576 = vmatprep.subr.mxu0 0.0
        %1577 = vmatpush1.msra.mxu0 0.0
        %1578 = vmatprep.subr.mxu0 0.0
        %1579 = vmatpush1.msra.mxu0 0.0
        %1580 = vmatprep.subr.mxu0 0.0
        %1581 = vmatpush1.msra.mxu0 0.0
        %1582 = vmatprep.subr.mxu0 0.0
        %1583 = vmatpush1.msra.mxu0 0.0
        %1584 = vmatprep.subr.mxu0 0.0
        %1585 = vmatpush1.msra.mxu0 0.0
        %1586 = vmatprep.subr.mxu0 0.0
        %1587 = vmatpush1.msra.mxu0 0.0
        %1588 = vmatprep.subr.mxu0 0.0
        %1589 = vmatpush1.msra.mxu0 0.0
        %1590 = vmatprep.subr.mxu0 0.0
        %1591 = vmatpush1.msra.mxu0 0.0
        %1592 = vmatprep.subr.mxu0 0.0
        %1593 = vmatpush1.msra.mxu0 0.0
        %1594 = vmatprep.subr.mxu0 0.0
        %1595 = vmatpush1.msra.mxu0 0.0
        %1596 = vmatprep.subr.mxu0 0.0
        %1597 = vmatpush1.msra.mxu0 0.0
        %1598 = vmatprep.subr.mxu0 0.0
        %1599 = vmatpush1.msra.mxu0 0.0
        %1600 = vmatprep.subr.mxu0 0.0
        %1601 = vmatpush1.msra.mxu0 0.0
        %1602 = vmatprep.subr.mxu0 0.0
        %1603 = vmatpush1.msra.mxu0 0.0
        %1604 = vmatprep.subr.mxu0 0.0
        %1605 = vmatpush1.msra.mxu0 0.0
        %1606 = vmatprep.subr.mxu0 0.0
        %1607 = vmatpush1.msra.mxu0 0.0
        %1608 = vmatprep.subr.mxu0 0.0
        %1609 = vmatpush1.msra.mxu0 0.0
        %1610 = vmatprep.subr.mxu0 0.0
        %1611 = vmatpush1.msra.mxu0 0.0
        %1612 = vmatprep.subr.mxu0 0.0
        %1613 = vmatpush1.msra.mxu0 0.0
        %1614 = vmatprep.subr.mxu0 0.0
        %1615 = vmatpush1.msra.mxu0 0.0
        %1616 = vmatprep.subr.mxu0 0.0
        %1617 = vmatpush1.msra.mxu0 0.0
        %1618 = vmatprep.subr.mxu0 0.0
        %1619 = vmatpush1.msra.mxu0 0.0
        %1620 = vmatprep.subr.mxu0 0.0
        %1621 = vmatpush1.msra.mxu0 0.0
        %1622 = vmatprep.mubr.f32.mxu0 0.0
        %1623 = vmatmul.mubr.f32.gmra.mrb[0].mxu0 %v1553
        %v1624 = vpop.f32.mrb[0].mxu0
        %v1625 = vadd.f32 %v1544, %v1624
        %v1626 = vpop.f32.mrb[0].mxu0
        %1627 = vmatprep.mubr.f32.mxu0 0.0
        %1628 = vmatmul.mubr.f32.gmra.mrb[0].mxu0 %v1556
        %v1629 = vpop.f32.mrb[0].mxu0
        %v1630 = vadd.f32 %v1549, %v1629
        %v1631 = vpop.f32.mrb[0].mxu0
        %1632 = vdwg.mxu0
        %v1633 = vld [vmem:[%s8] sm:$0x1]
        %v1635 = vlaneseq
        %v1636 = vshrl.u32 %v1635, 7
        %v1637 = vsub.s32 0, %v1636
        %v1638 = vrot.slane %v1633, %v1637
        %v1640 = vadd.f32 %v1625, %v1638
        %v1641 = vadd.f32 %v1630, %v1638
        %v1642 = vadd.f32 %v1640, %v462
        %v1643 = vadd.f32 %v1641, %v463
        %1644 = vadd.xlane.f32.xlu0 %v1642
        %v1645 = vpop.xlane.xlu0 %1644
        %1646 = vadd.xlane.f32.xlu0 %v1643
        %v1647 = vpop.xlane.xlu0 %1646
        %v1648 = vrcp.pop 128.0
        %v1649 = vmul.f32 %v1645, %v1648
        %v1650 = vmul.f32 %v1647, %v1648
        %v1651 = vsub.f32 %v1642, %v1649
        %v1652 = vsub.f32 %v1643, %v1650
        %v1653 = vmul.f32 %v1651, %v1651
        %v1654 = vmul.f32 %v1652, %v1652
        %1655 = vadd.xlane.f32.xlu0 %v1653
        %v1656 = vpop.xlane.xlu0 %1655
        %1657 = vadd.xlane.f32.xlu0 %v1654
        %v1658 = vpop.xlane.xlu0 %1657
        %v1659 = vmul.f32 %v1656, %v1648
        %v1660 = vmul.f32 %v1658, %v1648
        %v1661 = vadd.f32 %v1659, 1e-05
        %v1662 = vadd.f32 %v1660, 1e-05
        %v1663 = vrsqrt.pop %v1661
        %v1664 = vrsqrt.pop %v1662
        %v1665 = vmul.f32 %v1651, %v1663
        %v1666 = vmul.f32 %v1652, %v1664
        %v1667 = vld [vmem:[%s9] sm:$0x1]
        %v1669 = vlaneseq
        %v1670 = vshrl.u32 %v1669, 7
        %v1671 = vsub.s32 0, %v1670
        %v1672 = vrot.slane %v1667, %v1671
        %v1674 = vmul.f32 %v1665, %v1672
        %v1675 = vmul.f32 %v1666, %v1672
        %v1676 = vld [vmem:[%s10] sm:$0x1]
        %v1678 = vlaneseq
        %v1679 = vshrl.u32 %v1678, 7
        %v1680 = vsub.s32 0, %v1679
        %v1681 = vrot.slane %v1676, %v1680
        %v1683 = vadd.f32 %v1674, %v1681
        %v1684 = vadd.f32 %v1675, %v1681
        %1685 = vst [vmem:[%s461] sm:$0xff] %v1683
        %1686 = vst [vmem:[%s461 + $0x8] sm:$0xff] %v1684
        %p1687 = scmp.lt.s32.totalorder %s31, 3
        %s1688 = scalar_select %p1687, %s31, 3
        %s1689 = smul.addr %s1688, 2
        %s1690 = smul.addr %s1689, 8
        %s1691 = scalar_lea.vmem %s11, %s1690
        %s1692 = sand.u32 %s301, 1
        %s1693 = scalar_lea.sflag [#allocation3], %s1692
        %s1694 = sand.u32 %s301, 1
        %s1695 = smul.addr %s1694, 32
        %s1696 = scalar_lea.vmem [#allocation2], %s1695
        %s1697 = sand.u32 %s327, 1
        %s1698 = scalar_lea.sflag [#allocation5], %s1697
        %s1699 = sand.u32 %s327, 1
        %s1700 = smul.addr %s1699, 32
        %s1701 = scalar_lea.vmem [#allocation4], %s1700
        // Predicated region
        $region65: #{transformer_encoder_forward.6} parent=63 // pred_check
          %p1702 = pneg %p285
        $region66: #{transformer_encoder_forward.6} parent=63 // pred_check_branch
          %1704 = sbr.rel (%p1702) target = $region68
        $region67: #{transformer_encoder_forward.6} parent=63 // pred_region
          _
        $region68: #{transformer_encoder_forward.6} parent=63 // pred_fallthru
          _
        // Predicated region
        $region69: #{transformer_encoder_forward.6} parent=63 // pred_check
          %p1705 = pneg %p311
        $region70: #{transformer_encoder_forward.6} parent=63 // pred_check_branch
          %1707 = sbr.rel (%p1705) target = $region72
        $region71: #{transformer_encoder_forward.6} parent=63 // pred_region
          %s1709 = ssub.s32 512, 512
          %1710 = vsyncadd %s1693, %s1709
          %s1711 = smul.addr %s31, 4
          %s1712 = smul.addr %s1711, 128
          %s1713 = scalar_lea.hbm %s12, %s1712
          %s1714 = sshll.u32 %s1696, 4
          %s1715 = int_to_ptr.vmem [resolvable:$true] %s1714
          %1720 = dma.vmem_to_hbm [thread:$0]  %s1715, 512, %s1713, %s1693, 128, 128, 8
        $region72: #{transformer_encoder_forward.6} parent=63 // pred_fallthru
          _
        // Predicated region
        $region73: #{transformer_encoder_forward.6} parent=63 // pred_check
          %p1721 = pneg %p337
        $region74: #{transformer_encoder_forward.6} parent=63 // pred_check_branch
          %1723 = sbr.rel (%p1721) target = $region76
        $region75: #{transformer_encoder_forward.6} parent=63 // pred_region
          %s1725 = ssub.s32 512, 512
          %1726 = vsyncadd %s1698, %s1725
          %s1727 = smul.addr %s31, 4
          %s1728 = smul.addr %s1727, 128
          %s1729 = scalar_lea.hbm %s13, %s1728
          %s1730 = sshll.u32 %s1701, 4
          %s1731 = int_to_ptr.vmem [resolvable:$true] %s1730
          %1736 = dma.vmem_to_hbm [thread:$0]  %s1731, 512, %s1729, %s1698, 128, 128, 8
        $region76: #{transformer_encoder_forward.6} parent=63 // pred_fallthru
          _
      $region64: #{transformer_encoder_forward.6} parent=5 // pred_fallthru
        _
      %p1737 = scmp.le.s32.totalorder 2, %s26
      // Predicated region
      $region77: #{transformer_encoder_forward.6} parent=5 // pred_check
        %p1738 = pneg %p1737
      $region78: #{transformer_encoder_forward.6} parent=5 // pred_check_branch
        %1740 = sbr.rel (%p1738) target = $region80
      $region79: #{transformer_encoder_forward.6} parent=5 // pred_region
        %s1741 = ssub.s32 %s26, 2
        // Predicated region
        $region81: #{transformer_encoder_forward.6} parent=79 // pred_check
          %p1742 = pneg %p291
        $region82: #{transformer_encoder_forward.6} parent=79 // pred_check_branch
          %1744 = sbr.rel (%p1742) target = $region84
        $region83: #{transformer_encoder_forward.6} parent=79 // pred_region
          %p1745 = scmp.lt.s32.totalorder %s32, 3
          %s1746 = scalar_select %p1745, %s32, 3
          %s1747 = smul.addr %s1746, 2
          %s1748 = smul.addr %s1747, 8
          %s1749 = scalar_lea.vmem %s11, %s1748
        $region84: #{transformer_encoder_forward.6} parent=79 // pred_fallthru
          _
        // Predicated region
        $region85: #{transformer_encoder_forward.6} parent=79 // pred_check
          %p1750 = pneg %p317
        $region86: #{transformer_encoder_forward.6} parent=79 // pred_check_branch
          %1752 = sbr.rel (%p1750) target = $region88
        $region87: #{transformer_encoder_forward.6} parent=79 // pred_region
          %s1753 = sand.u32 %s302, 1
          %s1754 = scalar_lea.sflag [#allocation3], %s1753
          %s1755 = sand.u32 %s302, 1
          %s1756 = smul.addr %s1755, 32
          %s1757 = scalar_lea.vmem [#allocation2], %s1756
          %1758 = dma.done %s1754, 512
        $region88: #{transformer_encoder_forward.6} parent=79 // pred_fallthru
          _
        // Predicated region
        $region89: #{transformer_encoder_forward.6} parent=79 // pred_check
          %p1759 = pneg %p343
        $region90: #{transformer_encoder_forward.6} parent=79 // pred_check_branch
          %1761 = sbr.rel (%p1759) target = $region92
        $region91: #{transformer_encoder_forward.6} parent=79 // pred_region
          %s1762 = sand.u32 %s328, 1
          %s1763 = scalar_lea.sflag [#allocation5], %s1762
          %s1764 = sand.u32 %s328, 1
          %s1765 = smul.addr %s1764, 32
          %s1766 = scalar_lea.vmem [#allocation4], %s1765
          %1767 = dma.done %s1763, 512
        $region92: #{transformer_encoder_forward.6} parent=79 // pred_fallthru
          _
      $region80: #{transformer_encoder_forward.6} parent=5 // pred_fallthru
        _
    $region6: #{transformer_encoder_forward.6} parent=1 // loop_footer
      %s30 = sadd.s32 1, %s26
    $region7: #{transformer_encoder_forward.6} parent=1 // loop_footer_branch
      %25 = sbr.rel target = $region3
    $region8: #{transformer_encoder_forward.6} parent=1 // loop_exit
      _
    %1768 = vsyncpa [#allocation3], 1
    %s1769 = scalar_lea.sflag [#allocation3], 1
    %1770 = vsyncpa %s1769, 1
    %1771 = vsyncpa [#allocation5], 1
    %s1772 = scalar_lea.sflag [#allocation5], 1
    %1773 = vsyncpa %s1772, 1

</llo_original>
